<compile_context>
chip_gen: v7x
topology: tpu7x:2x2x1
jax: 0.10.0
libtpu: 0.0.40
codegen_flags: <defaults>
</compile_context>

<pallas_src>
import functools
import math

import jax
import jax.numpy as jnp
from jax.experimental import pallas as pl
from jax.experimental.pallas import tpu as pltpu

# Small deterministic synthetic DistilBERT-like config (distilbert-base is
# 6 layers / 768 hidden; same structure at toy size, hidden=128 / inter=512
# chosen so all kernel tensors are lane-dense).
CFG = dict(vocab=100, max_pos=40, hidden=128, heads=4, layers=2,
           inter=512, eps=1e-12)


# ----------------------------- in-kernel helpers ----------------------------

def _gelu(x):
    # TODO(synk): HF DistilBERT uses exact erf-GELU; tanh approximation is used
    # since erf lowering on Mosaic is not guaranteed.
    c = math.sqrt(2.0 / math.pi)
    return 0.5 * x * (1.0 + jnp.tanh(c * (x + 0.044715 * x * x * x)))


def _layernorm(h, g, b, eps):
    mu = jnp.mean(h, axis=-1, keepdims=True)
    var = jnp.mean((h - mu) ** 2, axis=-1, keepdims=True)
    return (h - mu) * jax.lax.rsqrt(var + eps) * g + b


# ------------------------------ fused kernel --------------------------------

def _encoder_kernel(x_ref, bias_ref, emb_g_ref, emb_b_ref,
                    wqkv_ref, bqkv_ref, wo_ref, bo_ref, g1_ref, b1_ref,
                    wi_ref, bi_ref, wf_ref, bf_ref, g2_ref, b2_ref,
                    pw_ref, pb_ref, feat_ref, *, batch, seq, heads, layers,
                    eps):
    """Whole DistilBERT encoder forward on the flattened [M=B*S, D] slab."""
    M, D = x_ref.shape
    Dh = D // heads
    bias2d = bias_ref[...]                        # [M, M] batch-block + key mask

    # ---- embedding LayerNorm (prologue, no residual operand) ----
    h = _layernorm(x_ref[...], emb_g_ref[...], emb_b_ref[...], eps)

    for l in range(layers):                       # static unroll (L known)
        # ---- fused QKV projection on the full [M, D] slab ----
        qkv = jnp.dot(h.astype(jnp.bfloat16), wqkv_ref[l],
                      preferred_element_type=jnp.float32) + bqkv_ref[l]
        # cast once; per-head slices below reuse the bf16 arrays
        q = qkv[:, :D].astype(jnp.bfloat16)       # 1/sqrt(Dh) folded into Wq
        k = qkv[:, D:2 * D].astype(jnp.bfloat16)
        v = qkv[:, 2 * D:].astype(jnp.bfloat16)
        wo = wo_ref[l]                            # [D, D] bf16

        # ---- attention: per head, accumulate straight into Wo projection ----
        attn = None
        for hd in range(heads):
            sl = slice(hd * Dh, (hd + 1) * Dh)
            s = jax.lax.dot_general(q[:, sl], k[:, sl],
                                    (((1,), (1,)), ((), ())),
                                    preferred_element_type=jnp.float32)
            s = s + bias2d                        # f32 mask add before softmax
            m = jnp.max(s, axis=-1, keepdims=True)
            p = jnp.exp(s - m)
            p = p * pl.reciprocal(jnp.sum(p, axis=-1, keepdims=True),
                                  approx=True)
            ctx = jnp.dot(p.astype(jnp.bfloat16), v[:, sl],
                          preferred_element_type=jnp.float32)      # [M, Dh]
            part = jnp.dot(ctx.astype(jnp.bfloat16), wo[sl, :],
                           preferred_element_type=jnp.float32)      # [M, D]
            attn = part if attn is None else attn + part

        # ---- output-proj bias + residual + LayerNorm ----
        h1 = _layernorm(attn + bo_ref[l] + h, g1_ref[l], b1_ref[l], eps)

        # ---- FFN: up-proj + GELU + down-proj + residual + LayerNorm ----
        inter = jnp.dot(h1.astype(jnp.bfloat16), wi_ref[l],
                        preferred_element_type=jnp.float32) + bi_ref[l]
        inter = _gelu(inter)
        ffn = jnp.dot(inter.astype(jnp.bfloat16), wf_ref[l],
                      preferred_element_type=jnp.float32) + bf_ref[l]
        h = _layernorm(ffn + h1, g2_ref[l], b2_ref[l], eps)

    # ---- pooler Linear on the CLS rows (row b*S of each sequence) ----
    cls = jnp.concatenate(
        [h[b * seq:b * seq + 1, :] for b in range(batch)], axis=0)  # [B, D]
    feat_ref[...] = jnp.dot(cls.astype(jnp.bfloat16), pw_ref[...],
                            preferred_element_type=jnp.float32) + pb_ref[...]


# ------------------------------- Parameters ----------------------------------

def init_params(key):
    # TODO(synk): real DistilBertModel.from_pretrained weights cannot be
    # downloaded in-script; deterministic synthetic weights of the same
    # structure are used instead.
    c = CFG
    D, I, L, H = c["hidden"], c["inter"], c["layers"], c["heads"]
    Dh = D // H
    scale = 1.0 / math.sqrt(Dh)
    keys = jax.random.split(key, 3 + 6 * L)
    ki = iter(keys)

    def nrm(shape):
        return 0.02 * jax.random.normal(next(ki), shape, jnp.float32)

    wqkv, wo, wi, wf = [], [], [], []
    for _ in range(L):
        q_w, k_w, v_w = nrm((D, D)), nrm((D, D)), nrm((D, D))
        # Fused QKV weight with 1/sqrt(Dh) folded into the Q slice.
        wqkv.append(jnp.concatenate([q_w * scale, k_w, v_w], axis=1))
        wo.append(nrm((D, D)))
        wi.append(nrm((D, I)))
        wf.append(nrm((I, D)))

    return dict(
        word_emb=nrm((c["vocab"], D)),
        pos_emb=nrm((c["max_pos"], D)),
        emb_ln_g=jnp.ones((1, D), jnp.float32),
        emb_ln_b=jnp.zeros((1, D), jnp.float32),
        # per-layer weights stacked on a leading L axis (statically indexed
        # inside the fused kernel)
        wqkv=jnp.stack(wqkv).astype(jnp.bfloat16),
        bqkv=jnp.zeros((L, 1, 3 * D), jnp.float32),   # Q-bias scale folded (0)
        wo=jnp.stack(wo).astype(jnp.bfloat16),
        bo=jnp.zeros((L, 1, D), jnp.float32),
        ln1_g=jnp.ones((L, 1, D), jnp.float32),
        ln1_b=jnp.zeros((L, 1, D), jnp.float32),
        wi=jnp.stack(wi).astype(jnp.bfloat16),
        bi=jnp.zeros((L, 1, I), jnp.float32),
        wf=jnp.stack(wf).astype(jnp.bfloat16),
        bf=jnp.zeros((L, 1, D), jnp.float32),
        ln2_g=jnp.ones((L, 1, D), jnp.float32),
        ln2_b=jnp.zeros((L, 1, D), jnp.float32),
        pooler_w=nrm((D, D)).astype(jnp.bfloat16),
        pooler_b=jnp.zeros((1, D), jnp.float32),
    )


# --------------------------------- Forward -----------------------------------

def distilbert_encoder(params, input_ids, mask=None):
    """Equivalent of DistilBertEncoder.forward: pooler(hidden_state[:, 0])."""
    c = CFG
    B, S = input_ids.shape
    D, H, L = c["hidden"], c["heads"], c["layers"]
    M = B * S

    # DistilBERT embeddings: word + absolute position (arange).  The embedding
    # gather stays in plain JAX (no clean Pallas equivalent at this size).
    pos_ids = jnp.arange(S)
    emb = params["word_emb"][input_ids] + params["pos_emb"][pos_ids][None, :, :]
    x = emb.reshape(M, D).astype(jnp.float32)

    # Block-diagonal additive attention bias on the flattened [M, M] scores:
    # rows attend only within their own sequence, masked keys get -1e9.
    if mask is None:
        mask = jnp.ones((B, S), jnp.float32)
    key_bias = ((1.0 - mask.astype(jnp.float32)) * -1e9).reshape(M)
    batch_ids = jnp.repeat(jnp.arange(B), S)
    same_batch = batch_ids[:, None] == batch_ids[None, :]
    bias2d = jnp.where(same_batch, key_bias[None, :], jnp.float32(-1e9))

    kernel = functools.partial(_encoder_kernel, batch=B, seq=S, heads=H,
                               layers=L, eps=c["eps"])
    feat = pl.pallas_call(
        kernel,
        out_shape=jax.ShapeDtypeStruct((B, D), jnp.float32),
        compiler_params=pltpu.CompilerParams(vmem_limit_bytes=32 << 20),
    )(x, bias2d, params["emb_ln_g"], params["emb_ln_b"],
      params["wqkv"], params["bqkv"], params["wo"], params["bo"],
      params["ln1_g"], params["ln1_b"], params["wi"], params["bi"],
      params["wf"], params["bf"], params["ln2_g"], params["ln2_b"],
      params["pooler_w"], params["pooler_b"])
    return feat


if __name__ == "__main__":
    key = jax.random.PRNGKey(0)
    pkey, ikey = jax.random.split(key)
    params = init_params(pkey)

    B, S = 2, 8
    input_ids = jax.random.randint(ikey, (B, S), 1, CFG["vocab"], dtype=jnp.int32)
    # pad the tail of the second sequence (DistilBERT pad id = 0), mask it out
    input_ids = input_ids.at[1, 6:].set(0)
    mask = jnp.ones((B, S), jnp.float32).at[1, 6:].set(0.0)

    feat = jax.block_until_ready(distilbert_encoder(params, input_ids, mask))
    assert feat.shape == (B, CFG["hidden"]) and feat.dtype == jnp.float32
    assert bool(jnp.all(jnp.isfinite(feat)))
    print("KERNEL_OK")
</pallas_src>

<mosaic_0001>
module attributes {stable_mosaic.version = 11 : i64} {
  func.func @_encoder_kernel(%arg0: memref<16x128xf32, #tpu.memory_space<vmem>>, %arg1: memref<16x16xf32, #tpu.memory_space<vmem>>, %arg2: memref<1x128xf32, #tpu.memory_space<vmem>>, %arg3: memref<1x128xf32, #tpu.memory_space<vmem>>, %arg4: memref<2x128x384xbf16, #tpu.memory_space<vmem>>, %arg5: memref<2x1x384xf32, #tpu.memory_space<vmem>>, %arg6: memref<2x128x128xbf16, #tpu.memory_space<vmem>>, %arg7: memref<2x1x128xf32, #tpu.memory_space<vmem>>, %arg8: memref<2x1x128xf32, #tpu.memory_space<vmem>>, %arg9: memref<2x1x128xf32, #tpu.memory_space<vmem>>, %arg10: memref<2x128x512xbf16, #tpu.memory_space<vmem>>, %arg11: memref<2x1x512xf32, #tpu.memory_space<vmem>>, %arg12: memref<2x512x128xbf16, #tpu.memory_space<vmem>>, %arg13: memref<2x1x128xf32, #tpu.memory_space<vmem>>, %arg14: memref<2x1x128xf32, #tpu.memory_space<vmem>>, %arg15: memref<2x1x128xf32, #tpu.memory_space<vmem>>, %arg16: memref<128x128xbf16, #tpu.memory_space<vmem>>, %arg17: memref<1x128xf32, #tpu.memory_space<vmem>>, %arg18: memref<2x128xf32, #tpu.memory_space<vmem>>) attributes {dimension_semantics = [], scalar_prefetch = 0 : i64, scratch_operands = 0 : i64, tpu.core_type = #tpu.core_type<tc>} {
    %c0 = arith.constant 0 : index
    %c0_0 = arith.constant 0 : index
    %0 = vector.load %arg1[%c0, %c0_0] : memref<16x16xf32, #tpu.memory_space<vmem>>, vector<16x16xf32>
    %c0_1 = arith.constant 0 : index
    %c0_2 = arith.constant 0 : index
    %1 = vector.load %arg0[%c0_1, %c0_2] : memref<16x128xf32, #tpu.memory_space<vmem>>, vector<16x128xf32>
    %c0_3 = arith.constant 0 : index
    %c0_4 = arith.constant 0 : index
    %2 = vector.load %arg2[%c0_3, %c0_4] : memref<1x128xf32, #tpu.memory_space<vmem>>, vector<1x128xf32>
    %c0_5 = arith.constant 0 : index
    %c0_6 = arith.constant 0 : index
    %3 = vector.load %arg3[%c0_5, %c0_6] : memref<1x128xf32, #tpu.memory_space<vmem>>, vector<1x128xf32>
    %cst = arith.constant dense<0.000000e+00> : vector<16xf32>
    %4 = vector.multi_reduction <add>, %1, %cst [1] : vector<16x128xf32> to vector<16xf32>
    %5 = vector.shape_cast %4 : vector<16xf32> to vector<16x1xf32>
    %cst_7 = arith.constant 1.280000e+02 : f32
    %6 = vector.broadcast %cst_7 : f32 to vector<16x1xf32>
    %7 = arith.divf %5, %6 : vector<16x1xf32>
    %8 = vector.broadcast %7 : vector<16x1xf32> to vector<16x128xf32>
    %9 = arith.subf %1, %8 : vector<16x128xf32>
    %10 = arith.mulf %9, %9 : vector<16x128xf32>
    %cst_8 = arith.constant dense<0.000000e+00> : vector<16xf32>
    %11 = vector.multi_reduction <add>, %10, %cst_8 [1] : vector<16x128xf32> to vector<16xf32>
    %12 = vector.shape_cast %11 : vector<16xf32> to vector<16x1xf32>
    %cst_9 = arith.constant 1.280000e+02 : f32
    %13 = vector.broadcast %cst_9 : f32 to vector<16x1xf32>
    %14 = arith.divf %12, %13 : vector<16x1xf32>
    %15 = vector.broadcast %7 : vector<16x1xf32> to vector<16x128xf32>
    %16 = arith.subf %1, %15 : vector<16x128xf32>
    %cst_10 = arith.constant 9.99999996E-13 : f32
    %17 = vector.broadcast %cst_10 : f32 to vector<16x1xf32>
    %18 = arith.addf %14, %17 : vector<16x1xf32>
    %19 = math.rsqrt %18 : vector<16x1xf32>
    %20 = vector.broadcast %19 : vector<16x1xf32> to vector<16x128xf32>
    %21 = arith.mulf %16, %20 : vector<16x128xf32>
    %22 = vector.broadcast %2 : vector<1x128xf32> to vector<16x128xf32>
    %23 = arith.mulf %21, %22 : vector<16x128xf32>
    %24 = vector.broadcast %3 : vector<1x128xf32> to vector<16x128xf32>
    %25 = arith.addf %23, %24 : vector<16x128xf32>
    %26 = arith.truncf %25 : vector<16x128xf32> to vector<16x128xbf16>
    %c0_11 = arith.constant 0 : index
    %c0_12 = arith.constant 0 : index
    %c0_13 = arith.constant 0 : index
    %27 = vector.load %arg4[%c0_11, %c0_12, %c0_13] : memref<2x128x384xbf16, #tpu.memory_space<vmem>>, vector<1x128x384xbf16>
    %28 = vector.shape_cast %27 : vector<1x128x384xbf16> to vector<128x384xbf16>
    %cst_14 = arith.constant dense<0.000000e+00> : vector<16x384xf32>
    %29 = tpu.matmul %26, %28, %cst_14 {dimension_numbers = #tpu.dot_dimension_numbers<[1], [0], [0], [1], [0, 0, 1, 1], [], []>} : vector<16x128xbf16>, vector<128x384xbf16>, vector<16x384xf32> -> vector<16x384xf32>
    %c0_15 = arith.constant 0 : index
    %c0_16 = arith.constant 0 : index
    %c0_17 = arith.constant 0 : index
    %30 = vector.load %arg5[%c0_15, %c0_16, %c0_17] : memref<2x1x384xf32, #tpu.memory_space<vmem>>, vector<1x1x384xf32>
    %31 = vector.shape_cast %30 : vector<1x1x384xf32> to vector<1x384xf32>
    %32 = vector.broadcast %31 : vector<1x384xf32> to vector<16x384xf32>
    %33 = arith.addf %29, %32 : vector<16x384xf32>
    %34 = vector.extract_strided_slice %33 {offsets = [0, 0], sizes = [16, 128], strides = [1, 1]} : vector<16x384xf32> to vector<16x128xf32>
    %35 = arith.truncf %34 : vector<16x128xf32> to vector<16x128xbf16>
    %36 = vector.extract_strided_slice %33 {offsets = [0, 128], sizes = [16, 128], strides = [1, 1]} : vector<16x384xf32> to vector<16x128xf32>
    %37 = arith.truncf %36 : vector<16x128xf32> to vector<16x128xbf16>
    %38 = vector.extract_strided_slice %33 {offsets = [0, 256], sizes = [16, 128], strides = [1, 1]} : vector<16x384xf32> to vector<16x128xf32>
    %39 = arith.truncf %38 : vector<16x128xf32> to vector<16x128xbf16>
    %c0_18 = arith.constant 0 : index
    %c0_19 = arith.constant 0 : index
    %c0_20 = arith.constant 0 : index
    %40 = vector.load %arg6[%c0_18, %c0_19, %c0_20] : memref<2x128x128xbf16, #tpu.memory_space<vmem>>, vector<1x128x128xbf16>
    %41 = vector.shape_cast %40 : vector<1x128x128xbf16> to vector<128x128xbf16>
    %42 = vector.extract_strided_slice %35 {offsets = [0, 0], sizes = [16, 32], strides = [1, 1]} : vector<16x128xbf16> to vector<16x32xbf16>
    %43 = vector.extract_strided_slice %37 {offsets = [0, 0], sizes = [16, 32], strides = [1, 1]} : vector<16x128xbf16> to vector<16x32xbf16>
    %cst_21 = arith.constant dense<0.000000e+00> : vector<16x16xf32>
    %44 = tpu.matmul %42, %43, %cst_21 {dimension_numbers = #tpu.dot_dimension_numbers<[1], [1], [0], [0], [0, 0, 1, 0], [], []>} : vector<16x32xbf16>, vector<16x32xbf16>, vector<16x16xf32> -> vector<16x16xf32>
    %45 = arith.addf %44, %0 : vector<16x16xf32>
    %cst_22 = arith.constant dense<0xFF800000> : vector<16xf32>
    %46 = vector.multi_reduction <maximumf>, %45, %cst_22 [1] : vector<16x16xf32> to vector<16xf32>
    %47 = vector.shape_cast %46 : vector<16xf32> to vector<16x1xf32>
    %48 = vector.broadcast %47 : vector<16x1xf32> to vector<16x16xf32>
    %49 = arith.subf %45, %48 : vector<16x16xf32>
    %50 = math.exp %49 : vector<16x16xf32>
    %cst_23 = arith.constant dense<0.000000e+00> : vector<16xf32>
    %51 = vector.multi_reduction <add>, %50, %cst_23 [1] : vector<16x16xf32> to vector<16xf32>
    %52 = vector.shape_cast %51 : vector<16xf32> to vector<16x1xf32>
    %53 = tpu.reciprocal %52 {approx = true} : vector<16x1xf32> -> vector<16x1xf32>
    %54 = vector.broadcast %53 : vector<16x1xf32> to vector<16x16xf32>
    %55 = arith.mulf %50, %54 : vector<16x16xf32>
    %56 = arith.truncf %55 : vector<16x16xf32> to vector<16x16xbf16>
    %57 = vector.extract_strided_slice %39 {offsets = [0, 0], sizes = [16, 32], strides = [1, 1]} : vector<16x128xbf16> to vector<16x32xbf16>
    %cst_24 = arith.constant dense<0.000000e+00> : vector<16x32xf32>
    %58 = tpu.matmul %56, %57, %cst_24 {dimension_numbers = #tpu.dot_dimension_numbers<[1], [0], [0], [1], [0, 0, 1, 1], [], []>} : vector<16x16xbf16>, vector<16x32xbf16>, vector<16x32xf32> -> vector<16x32xf32>
    %59 = arith.truncf %58 : vector<16x32xf32> to vector<16x32xbf16>
    %60 = vector.extract_strided_slice %41 {offsets = [0, 0], sizes = [32, 128], strides = [1, 1]} : vector<128x128xbf16> to vector<32x128xbf16>
    %cst_25 = arith.constant dense<0.000000e+00> : vector<16x128xf32>
    %61 = tpu.matmul %59, %60, %cst_25 {dimension_numbers = #tpu.dot_dimension_numbers<[1], [0], [0], [1], [0, 0, 1, 1], [], []>} : vector<16x32xbf16>, vector<32x128xbf16>, vector<16x128xf32> -> vector<16x128xf32>
    %62 = vector.extract_strided_slice %35 {offsets = [0, 32], sizes = [16, 32], strides = [1, 1]} : vector<16x128xbf16> to vector<16x32xbf16>
    %63 = vector.extract_strided_slice %37 {offsets = [0, 32], sizes = [16, 32], strides = [1, 1]} : vector<16x128xbf16> to vector<16x32xbf16>
    %cst_26 = arith.constant dense<0.000000e+00> : vector<16x16xf32>
    %64 = tpu.matmul %62, %63, %cst_26 {dimension_numbers = #tpu.dot_dimension_numbers<[1], [1], [0], [0], [0, 0, 1, 0], [], []>} : vector<16x32xbf16>, vector<16x32xbf16>, vector<16x16xf32> -> vector<16x16xf32>
    %65 = arith.addf %64, %0 : vector<16x16xf32>
    %cst_27 = arith.constant dense<0xFF800000> : vector<16xf32>
    %66 = vector.multi_reduction <maximumf>, %65, %cst_27 [1] : vector<16x16xf32> to vector<16xf32>
    %67 = vector.shape_cast %66 : vector<16xf32> to vector<16x1xf32>
    %68 = vector.broadcast %67 : vector<16x1xf32> to vector<16x16xf32>
    %69 = arith.subf %65, %68 : vector<16x16xf32>
    %70 = math.exp %69 : vector<16x16xf32>
    %cst_28 = arith.constant dense<0.000000e+00> : vector<16xf32>
    %71 = vector.multi_reduction <add>, %70, %cst_28 [1] : vector<16x16xf32> to vector<16xf32>
    %72 = vector.shape_cast %71 : vector<16xf32> to vector<16x1xf32>
    %73 = tpu.reciprocal %72 {approx = true} : vector<16x1xf32> -> vector<16x1xf32>
    %74 = vector.broadcast %73 : vector<16x1xf32> to vector<16x16xf32>
    %75 = arith.mulf %70, %74 : vector<16x16xf32>
    %76 = arith.truncf %75 : vector<16x16xf32> to vector<16x16xbf16>
    %77 = vector.extract_strided_slice %39 {offsets = [0, 32], sizes = [16, 32], strides = [1, 1]} : vector<16x128xbf16> to vector<16x32xbf16>
    %cst_29 = arith.constant dense<0.000000e+00> : vector<16x32xf32>
    %78 = tpu.matmul %76, %77, %cst_29 {dimension_numbers = #tpu.dot_dimension_numbers<[1], [0], [0], [1], [0, 0, 1, 1], [], []>} : vector<16x16xbf16>, vector<16x32xbf16>, vector<16x32xf32> -> vector<16x32xf32>
    %79 = arith.truncf %78 : vector<16x32xf32> to vector<16x32xbf16>
    %80 = vector.extract_strided_slice %41 {offsets = [32, 0], sizes = [32, 128], strides = [1, 1]} : vector<128x128xbf16> to vector<32x128xbf16>
    %cst_30 = arith.constant dense<0.000000e+00> : vector<16x128xf32>
    %81 = tpu.matmul %79, %80, %cst_30 {dimension_numbers = #tpu.dot_dimension_numbers<[1], [0], [0], [1], [0, 0, 1, 1], [], []>} : vector<16x32xbf16>, vector<32x128xbf16>, vector<16x128xf32> -> vector<16x128xf32>
    %82 = arith.addf %61, %81 : vector<16x128xf32>
    %83 = vector.extract_strided_slice %35 {offsets = [0, 64], sizes = [16, 32], strides = [1, 1]} : vector<16x128xbf16> to vector<16x32xbf16>
    %84 = vector.extract_strided_slice %37 {offsets = [0, 64], sizes = [16, 32], strides = [1, 1]} : vector<16x128xbf16> to vector<16x32xbf16>
    %cst_31 = arith.constant dense<0.000000e+00> : vector<16x16xf32>
    %85 = tpu.matmul %83, %84, %cst_31 {dimension_numbers = #tpu.dot_dimension_numbers<[1], [1], [0], [0], [0, 0, 1, 0], [], []>} : vector<16x32xbf16>, vector<16x32xbf16>, vector<16x16xf32> -> vector<16x16xf32>
    %86 = arith.addf %85, %0 : vector<16x16xf32>
    %cst_32 = arith.constant dense<0xFF800000> : vector<16xf32>
    %87 = vector.multi_reduction <maximumf>, %86, %cst_32 [1] : vector<16x16xf32> to vector<16xf32>
    %88 = vector.shape_cast %87 : vector<16xf32> to vector<16x1xf32>
    %89 = vector.broadcast %88 : vector<16x1xf32> to vector<16x16xf32>
    %90 = arith.subf %86, %89 : vector<16x16xf32>
    %91 = math.exp %90 : vector<16x16xf32>
    %cst_33 = arith.constant dense<0.000000e+00> : vector<16xf32>
    %92 = vector.multi_reduction <add>, %91, %cst_33 [1] : vector<16x16xf32> to vector<16xf32>
    %93 = vector.shape_cast %92 : vector<16xf32> to vector<16x1xf32>
    %94 = tpu.reciprocal %93 {approx = true} : vector<16x1xf32> -> vector<16x1xf32>
    %95 = vector.broadcast %94 : vector<16x1xf32> to vector<16x16xf32>
    %96 = arith.mulf %91, %95 : vector<16x16xf32>
    %97 = arith.truncf %96 : vector<16x16xf32> to vector<16x16xbf16>
    %98 = vector.extract_strided_slice %39 {offsets = [0, 64], sizes = [16, 32], strides = [1, 1]} : vector<16x128xbf16> to vector<16x32xbf16>
    %cst_34 = arith.constant dense<0.000000e+00> : vector<16x32xf32>
    %99 = tpu.matmul %97, %98, %cst_34 {dimension_numbers = #tpu.dot_dimension_numbers<[1], [0], [0], [1], [0, 0, 1, 1], [], []>} : vector<16x16xbf16>, vector<16x32xbf16>, vector<16x32xf32> -> vector<16x32xf32>
    %100 = arith.truncf %99 : vector<16x32xf32> to vector<16x32xbf16>
    %101 = vector.extract_strided_slice %41 {offsets = [64, 0], sizes = [32, 128], strides = [1, 1]} : vector<128x128xbf16> to vector<32x128xbf16>
    %cst_35 = arith.constant dense<0.000000e+00> : vector<16x128xf32>
    %102 = tpu.matmul %100, %101, %cst_35 {dimension_numbers = #tpu.dot_dimension_numbers<[1], [0], [0], [1], [0, 0, 1, 1], [], []>} : vector<16x32xbf16>, vector<32x128xbf16>, vector<16x128xf32> -> vector<16x128xf32>
    %103 = arith.addf %82, %102 : vector<16x128xf32>
    %104 = vector.extract_strided_slice %35 {offsets = [0, 96], sizes = [16, 32], strides = [1, 1]} : vector<16x128xbf16> to vector<16x32xbf16>
    %105 = vector.extract_strided_slice %37 {offsets = [0, 96], sizes = [16, 32], strides = [1, 1]} : vector<16x128xbf16> to vector<16x32xbf16>
    %cst_36 = arith.constant dense<0.000000e+00> : vector<16x16xf32>
    %106 = tpu.matmul %104, %105, %cst_36 {dimension_numbers = #tpu.dot_dimension_numbers<[1], [1], [0], [0], [0, 0, 1, 0], [], []>} : vector<16x32xbf16>, vector<16x32xbf16>, vector<16x16xf32> -> vector<16x16xf32>
    %107 = arith.addf %106, %0 : vector<16x16xf32>
    %cst_37 = arith.constant dense<0xFF800000> : vector<16xf32>
    %108 = vector.multi_reduction <maximumf>, %107, %cst_37 [1] : vector<16x16xf32> to vector<16xf32>
    %109 = vector.shape_cast %108 : vector<16xf32> to vector<16x1xf32>
    %110 = vector.broadcast %109 : vector<16x1xf32> to vector<16x16xf32>
    %111 = arith.subf %107, %110 : vector<16x16xf32>
    %112 = math.exp %111 : vector<16x16xf32>
    %cst_38 = arith.constant dense<0.000000e+00> : vector<16xf32>
    %113 = vector.multi_reduction <add>, %112, %cst_38 [1] : vector<16x16xf32> to vector<16xf32>
    %114 = vector.shape_cast %113 : vector<16xf32> to vector<16x1xf32>
    %115 = tpu.reciprocal %114 {approx = true} : vector<16x1xf32> -> vector<16x1xf32>
    %116 = vector.broadcast %115 : vector<16x1xf32> to vector<16x16xf32>
    %117 = arith.mulf %112, %116 : vector<16x16xf32>
    %118 = arith.truncf %117 : vector<16x16xf32> to vector<16x16xbf16>
    %119 = vector.extract_strided_slice %39 {offsets = [0, 96], sizes = [16, 32], strides = [1, 1]} : vector<16x128xbf16> to vector<16x32xbf16>
    %cst_39 = arith.constant dense<0.000000e+00> : vector<16x32xf32>
    %120 = tpu.matmul %118, %119, %cst_39 {dimension_numbers = #tpu.dot_dimension_numbers<[1], [0], [0], [1], [0, 0, 1, 1], [], []>} : vector<16x16xbf16>, vector<16x32xbf16>, vector<16x32xf32> -> vector<16x32xf32>
    %121 = arith.truncf %120 : vector<16x32xf32> to vector<16x32xbf16>
    %122 = vector.extract_strided_slice %41 {offsets = [96, 0], sizes = [32, 128], strides = [1, 1]} : vector<128x128xbf16> to vector<32x128xbf16>
    %cst_40 = arith.constant dense<0.000000e+00> : vector<16x128xf32>
    %123 = tpu.matmul %121, %122, %cst_40 {dimension_numbers = #tpu.dot_dimension_numbers<[1], [0], [0], [1], [0, 0, 1, 1], [], []>} : vector<16x32xbf16>, vector<32x128xbf16>, vector<16x128xf32> -> vector<16x128xf32>
    %124 = arith.addf %103, %123 : vector<16x128xf32>
    %c0_41 = arith.constant 0 : index
    %c0_42 = arith.constant 0 : index
    %c0_43 = arith.constant 0 : index
    %125 = vector.load %arg7[%c0_41, %c0_42, %c0_43] : memref<2x1x128xf32, #tpu.memory_space<vmem>>, vector<1x1x128xf32>
    %126 = vector.shape_cast %125 : vector<1x1x128xf32> to vector<1x128xf32>
    %127 = vector.broadcast %126 : vector<1x128xf32> to vector<16x128xf32>
    %128 = arith.addf %124, %127 : vector<16x128xf32>
    %129 = arith.addf %128, %25 : vector<16x128xf32>
    %c0_44 = arith.constant 0 : index
    %c0_45 = arith.constant 0 : index
    %c0_46 = arith.constant 0 : index
    %130 = vector.load %arg8[%c0_44, %c0_45, %c0_46] : memref<2x1x128xf32, #tpu.memory_space<vmem>>, vector<1x1x128xf32>
    %131 = vector.shape_cast %130 : vector<1x1x128xf32> to vector<1x128xf32>
    %c0_47 = arith.constant 0 : index
    %c0_48 = arith.constant 0 : index
    %c0_49 = arith.constant 0 : index
    %132 = vector.load %arg9[%c0_47, %c0_48, %c0_49] : memref<2x1x128xf32, #tpu.memory_space<vmem>>, vector<1x1x128xf32>
    %133 = vector.shape_cast %132 : vector<1x1x128xf32> to vector<1x128xf32>
    %cst_50 = arith.constant dense<0.000000e+00> : vector<16xf32>
    %134 = vector.multi_reduction <add>, %129, %cst_50 [1] : vector<16x128xf32> to vector<16xf32>
    %135 = vector.shape_cast %134 : vector<16xf32> to vector<16x1xf32>
    %cst_51 = arith.constant 1.280000e+02 : f32
    %136 = vector.broadcast %cst_51 : f32 to vector<16x1xf32>
    %137 = arith.divf %135, %136 : vector<16x1xf32>
    %138 = vector.broadcast %137 : vector<16x1xf32> to vector<16x128xf32>
    %139 = arith.subf %129, %138 : vector<16x128xf32>
    %140 = arith.mulf %139, %139 : vector<16x128xf32>
    %cst_52 = arith.constant dense<0.000000e+00> : vector<16xf32>
    %141 = vector.multi_reduction <add>, %140, %cst_52 [1] : vector<16x128xf32> to vector<16xf32>
    %142 = vector.shape_cast %141 : vector<16xf32> to vector<16x1xf32>
    %cst_53 = arith.constant 1.280000e+02 : f32
    %143 = vector.broadcast %cst_53 : f32 to vector<16x1xf32>
    %144 = arith.divf %142, %143 : vector<16x1xf32>
    %145 = vector.broadcast %137 : vector<16x1xf32> to vector<16x128xf32>
    %146 = arith.subf %129, %145 : vector<16x128xf32>
    %cst_54 = arith.constant 9.99999996E-13 : f32
    %147 = vector.broadcast %cst_54 : f32 to vector<16x1xf32>
    %148 = arith.addf %144, %147 : vector<16x1xf32>
    %149 = math.rsqrt %148 : vector<16x1xf32>
    %150 = vector.broadcast %149 : vector<16x1xf32> to vector<16x128xf32>
    %151 = arith.mulf %146, %150 : vector<16x128xf32>
    %152 = vector.broadcast %131 : vector<1x128xf32> to vector<16x128xf32>
    %153 = arith.mulf %151, %152 : vector<16x128xf32>
    %154 = vector.broadcast %133 : vector<1x128xf32> to vector<16x128xf32>
    %155 = arith.addf %153, %154 : vector<16x128xf32>
    %156 = arith.truncf %155 : vector<16x128xf32> to vector<16x128xbf16>
    %c0_55 = arith.constant 0 : index
    %c0_56 = arith.constant 0 : index
    %c0_57 = arith.constant 0 : index
    %157 = vector.load %arg10[%c0_55, %c0_56, %c0_57] : memref<2x128x512xbf16, #tpu.memory_space<vmem>>, vector<1x128x512xbf16>
    %158 = vector.shape_cast %157 : vector<1x128x512xbf16> to vector<128x512xbf16>
    %cst_58 = arith.constant dense<0.000000e+00> : vector<16x512xf32>
    %159 = tpu.matmul %156, %158, %cst_58 {dimension_numbers = #tpu.dot_dimension_numbers<[1], [0], [0], [1], [0, 0, 1, 1], [], []>} : vector<16x128xbf16>, vector<128x512xbf16>, vector<16x512xf32> -> vector<16x512xf32>
    %c0_59 = arith.constant 0 : index
    %c0_60 = arith.constant 0 : index
    %c0_61 = arith.constant 0 : index
    %160 = vector.load %arg11[%c0_59, %c0_60, %c0_61] : memref<2x1x512xf32, #tpu.memory_space<vmem>>, vector<1x1x512xf32>
    %161 = vector.shape_cast %160 : vector<1x1x512xf32> to vector<1x512xf32>
    %162 = vector.broadcast %161 : vector<1x512xf32> to vector<16x512xf32>
    %163 = arith.addf %159, %162 : vector<16x512xf32>
    %cst_62 = arith.constant 5.000000e-01 : f32
    %164 = vector.broadcast %cst_62 : f32 to vector<16x512xf32>
    %165 = arith.mulf %164, %163 : vector<16x512xf32>
    %cst_63 = arith.constant 4.471500e-02 : f32
    %166 = vector.broadcast %cst_63 : f32 to vector<16x512xf32>
    %167 = arith.mulf %166, %163 : vector<16x512xf32>
    %168 = arith.mulf %167, %163 : vector<16x512xf32>
    %169 = arith.mulf %168, %163 : vector<16x512xf32>
    %170 = arith.addf %163, %169 : vector<16x512xf32>
    %cst_64 = arith.constant 0.797884583 : f32
    %171 = vector.broadcast %cst_64 : f32 to vector<16x512xf32>
    %172 = arith.mulf %171, %170 : vector<16x512xf32>
    %173 = math.tanh %172 : vector<16x512xf32>
    %cst_65 = arith.constant 1.000000e+00 : f32
    %174 = vector.broadcast %cst_65 : f32 to vector<16x512xf32>
    %175 = arith.addf %174, %173 : vector<16x512xf32>
    %176 = arith.mulf %165, %175 : vector<16x512xf32>
    %177 = arith.truncf %176 : vector<16x512xf32> to vector<16x512xbf16>
    %c0_66 = arith.constant 0 : index
    %c0_67 = arith.constant 0 : index
    %c0_68 = arith.constant 0 : index
    %178 = vector.load %arg12[%c0_66, %c0_67, %c0_68] : memref<2x512x128xbf16, #tpu.memory_space<vmem>>, vector<1x512x128xbf16>
    %179 = vector.shape_cast %178 : vector<1x512x128xbf16> to vector<512x128xbf16>
    %cst_69 = arith.constant dense<0.000000e+00> : vector<16x128xf32>
    %180 = tpu.matmul %177, %179, %cst_69 {dimension_numbers = #tpu.dot_dimension_numbers<[1], [0], [0], [1], [0, 0, 1, 1], [], []>} : vector<16x512xbf16>, vector<512x128xbf16>, vector<16x128xf32> -> vector<16x128xf32>
    %c0_70 = arith.constant 0 : index
    %c0_71 = arith.constant 0 : index
    %c0_72 = arith.constant 0 : index
    %181 = vector.load %arg13[%c0_70, %c0_71, %c0_72] : memref<2x1x128xf32, #tpu.memory_space<vmem>>, vector<1x1x128xf32>
    %182 = vector.shape_cast %181 : vector<1x1x128xf32> to vector<1x128xf32>
    %183 = vector.broadcast %182 : vector<1x128xf32> to vector<16x128xf32>
    %184 = arith.addf %180, %183 : vector<16x128xf32>
    %185 = arith.addf %184, %155 : vector<16x128xf32>
    %c0_73 = arith.constant 0 : index
    %c0_74 = arith.constant 0 : index
    %c0_75 = arith.constant 0 : index
    %186 = vector.load %arg14[%c0_73, %c0_74, %c0_75] : memref<2x1x128xf32, #tpu.memory_space<vmem>>, vector<1x1x128xf32>
    %187 = vector.shape_cast %186 : vector<1x1x128xf32> to vector<1x128xf32>
    %c0_76 = arith.constant 0 : index
    %c0_77 = arith.constant 0 : index
    %c0_78 = arith.constant 0 : index
    %188 = vector.load %arg15[%c0_76, %c0_77, %c0_78] : memref<2x1x128xf32, #tpu.memory_space<vmem>>, vector<1x1x128xf32>
    %189 = vector.shape_cast %188 : vector<1x1x128xf32> to vector<1x128xf32>
    %cst_79 = arith.constant dense<0.000000e+00> : vector<16xf32>
    %190 = vector.multi_reduction <add>, %185, %cst_79 [1] : vector<16x128xf32> to vector<16xf32>
    %191 = vector.shape_cast %190 : vector<16xf32> to vector<16x1xf32>
    %cst_80 = arith.constant 1.280000e+02 : f32
    %192 = vector.broadcast %cst_80 : f32 to vector<16x1xf32>
    %193 = arith.divf %191, %192 : vector<16x1xf32>
    %194 = vector.broadcast %193 : vector<16x1xf32> to vector<16x128xf32>
    %195 = arith.subf %185, %194 : vector<16x128xf32>
    %196 = arith.mulf %195, %195 : vector<16x128xf32>
    %cst_81 = arith.constant dense<0.000000e+00> : vector<16xf32>
    %197 = vector.multi_reduction <add>, %196, %cst_81 [1] : vector<16x128xf32> to vector<16xf32>
    %198 = vector.shape_cast %197 : vector<16xf32> to vector<16x1xf32>
    %cst_82 = arith.constant 1.280000e+02 : f32
    %199 = vector.broadcast %cst_82 : f32 to vector<16x1xf32>
    %200 = arith.divf %198, %199 : vector<16x1xf32>
    %201 = vector.broadcast %193 : vector<16x1xf32> to vector<16x128xf32>
    %202 = arith.subf %185, %201 : vector<16x128xf32>
    %cst_83 = arith.constant 9.99999996E-13 : f32
    %203 = vector.broadcast %cst_83 : f32 to vector<16x1xf32>
    %204 = arith.addf %200, %203 : vector<16x1xf32>
    %205 = math.rsqrt %204 : vector<16x1xf32>
    %206 = vector.broadcast %205 : vector<16x1xf32> to vector<16x128xf32>
    %207 = arith.mulf %202, %206 : vector<16x128xf32>
    %208 = vector.broadcast %187 : vector<1x128xf32> to vector<16x128xf32>
    %209 = arith.mulf %207, %208 : vector<16x128xf32>
    %210 = vector.broadcast %189 : vector<1x128xf32> to vector<16x128xf32>
    %211 = arith.addf %209, %210 : vector<16x128xf32>
    %212 = arith.truncf %211 : vector<16x128xf32> to vector<16x128xbf16>
    %c1 = arith.constant 1 : index
    %c0_84 = arith.constant 0 : index
    %c0_85 = arith.constant 0 : index
    %213 = vector.load %arg4[%c1, %c0_84, %c0_85] : memref<2x128x384xbf16, #tpu.memory_space<vmem>>, vector<1x128x384xbf16>
    %214 = vector.shape_cast %213 : vector<1x128x384xbf16> to vector<128x384xbf16>
    %cst_86 = arith.constant dense<0.000000e+00> : vector<16x384xf32>
    %215 = tpu.matmul %212, %214, %cst_86 {dimension_numbers = #tpu.dot_dimension_numbers<[1], [0], [0], [1], [0, 0, 1, 1], [], []>} : vector<16x128xbf16>, vector<128x384xbf16>, vector<16x384xf32> -> vector<16x384xf32>
    %c1_87 = arith.constant 1 : index
    %c0_88 = arith.constant 0 : index
    %c0_89 = arith.constant 0 : index
    %216 = vector.load %arg5[%c1_87, %c0_88, %c0_89] : memref<2x1x384xf32, #tpu.memory_space<vmem>>, vector<1x1x384xf32>
    %217 = vector.shape_cast %216 : vector<1x1x384xf32> to vector<1x384xf32>
    %218 = vector.broadcast %217 : vector<1x384xf32> to vector<16x384xf32>
    %219 = arith.addf %215, %218 : vector<16x384xf32>
    %220 = vector.extract_strided_slice %219 {offsets = [0, 0], sizes = [16, 128], strides = [1, 1]} : vector<16x384xf32> to vector<16x128xf32>
    %221 = arith.truncf %220 : vector<16x128xf32> to vector<16x128xbf16>
    %222 = vector.extract_strided_slice %219 {offsets = [0, 128], sizes = [16, 128], strides = [1, 1]} : vector<16x384xf32> to vector<16x128xf32>
    %223 = arith.truncf %222 : vector<16x128xf32> to vector<16x128xbf16>
    %224 = vector.extract_strided_slice %219 {offsets = [0, 256], sizes = [16, 128], strides = [1, 1]} : vector<16x384xf32> to vector<16x128xf32>
    %225 = arith.truncf %224 : vector<16x128xf32> to vector<16x128xbf16>
    %c1_90 = arith.constant 1 : index
    %c0_91 = arith.constant 0 : index
    %c0_92 = arith.constant 0 : index
    %226 = vector.load %arg6[%c1_90, %c0_91, %c0_92] : memref<2x128x128xbf16, #tpu.memory_space<vmem>>, vector<1x128x128xbf16>
    %227 = vector.shape_cast %226 : vector<1x128x128xbf16> to vector<128x128xbf16>
    %228 = vector.extract_strided_slice %221 {offsets = [0, 0], sizes = [16, 32], strides = [1, 1]} : vector<16x128xbf16> to vector<16x32xbf16>
    %229 = vector.extract_strided_slice %223 {offsets = [0, 0], sizes = [16, 32], strides = [1, 1]} : vector<16x128xbf16> to vector<16x32xbf16>
    %cst_93 = arith.constant dense<0.000000e+00> : vector<16x16xf32>
    %230 = tpu.matmul %228, %229, %cst_93 {dimension_numbers = #tpu.dot_dimension_numbers<[1], [1], [0], [0], [0, 0, 1, 0], [], []>} : vector<16x32xbf16>, vector<16x32xbf16>, vector<16x16xf32> -> vector<16x16xf32>
    %231 = arith.addf %230, %0 : vector<16x16xf32>
    %cst_94 = arith.constant dense<0xFF800000> : vector<16xf32>
    %232 = vector.multi_reduction <maximumf>, %231, %cst_94 [1] : vector<16x16xf32> to vector<16xf32>
    %233 = vector.shape_cast %232 : vector<16xf32> to vector<16x1xf32>
    %234 = vector.broadcast %233 : vector<16x1xf32> to vector<16x16xf32>
    %235 = arith.subf %231, %234 : vector<16x16xf32>
    %236 = math.exp %235 : vector<16x16xf32>
    %cst_95 = arith.constant dense<0.000000e+00> : vector<16xf32>
    %237 = vector.multi_reduction <add>, %236, %cst_95 [1] : vector<16x16xf32> to vector<16xf32>
    %238 = vector.shape_cast %237 : vector<16xf32> to vector<16x1xf32>
    %239 = tpu.reciprocal %238 {approx = true} : vector<16x1xf32> -> vector<16x1xf32>
    %240 = vector.broadcast %239 : vector<16x1xf32> to vector<16x16xf32>
    %241 = arith.mulf %236, %240 : vector<16x16xf32>
    %242 = arith.truncf %241 : vector<16x16xf32> to vector<16x16xbf16>
    %243 = vector.extract_strided_slice %225 {offsets = [0, 0], sizes = [16, 32], strides = [1, 1]} : vector<16x128xbf16> to vector<16x32xbf16>
    %cst_96 = arith.constant dense<0.000000e+00> : vector<16x32xf32>
    %244 = tpu.matmul %242, %243, %cst_96 {dimension_numbers = #tpu.dot_dimension_numbers<[1], [0], [0], [1], [0, 0, 1, 1], [], []>} : vector<16x16xbf16>, vector<16x32xbf16>, vector<16x32xf32> -> vector<16x32xf32>
    %245 = arith.truncf %244 : vector<16x32xf32> to vector<16x32xbf16>
    %246 = vector.extract_strided_slice %227 {offsets = [0, 0], sizes = [32, 128], strides = [1, 1]} : vector<128x128xbf16> to vector<32x128xbf16>
    %cst_97 = arith.constant dense<0.000000e+00> : vector<16x128xf32>
    %247 = tpu.matmul %245, %246, %cst_97 {dimension_numbers = #tpu.dot_dimension_numbers<[1], [0], [0], [1], [0, 0, 1, 1], [], []>} : vector<16x32xbf16>, vector<32x128xbf16>, vector<16x128xf32> -> vector<16x128xf32>
    %248 = vector.extract_strided_slice %221 {offsets = [0, 32], sizes = [16, 32], strides = [1, 1]} : vector<16x128xbf16> to vector<16x32xbf16>
    %249 = vector.extract_strided_slice %223 {offsets = [0, 32], sizes = [16, 32], strides = [1, 1]} : vector<16x128xbf16> to vector<16x32xbf16>
    %cst_98 = arith.constant dense<0.000000e+00> : vector<16x16xf32>
    %250 = tpu.matmul %248, %249, %cst_98 {dimension_numbers = #tpu.dot_dimension_numbers<[1], [1], [0], [0], [0, 0, 1, 0], [], []>} : vector<16x32xbf16>, vector<16x32xbf16>, vector<16x16xf32> -> vector<16x16xf32>
    %251 = arith.addf %250, %0 : vector<16x16xf32>
    %cst_99 = arith.constant dense<0xFF800000> : vector<16xf32>
    %252 = vector.multi_reduction <maximumf>, %251, %cst_99 [1] : vector<16x16xf32> to vector<16xf32>
    %253 = vector.shape_cast %252 : vector<16xf32> to vector<16x1xf32>
    %254 = vector.broadcast %253 : vector<16x1xf32> to vector<16x16xf32>
    %255 = arith.subf %251, %254 : vector<16x16xf32>
    %256 = math.exp %255 : vector<16x16xf32>
    %cst_100 = arith.constant dense<0.000000e+00> : vector<16xf32>
    %257 = vector.multi_reduction <add>, %256, %cst_100 [1] : vector<16x16xf32> to vector<16xf32>
    %258 = vector.shape_cast %257 : vector<16xf32> to vector<16x1xf32>
    %259 = tpu.reciprocal %258 {approx = true} : vector<16x1xf32> -> vector<16x1xf32>
    %260 = vector.broadcast %259 : vector<16x1xf32> to vector<16x16xf32>
    %261 = arith.mulf %256, %260 : vector<16x16xf32>
    %262 = arith.truncf %261 : vector<16x16xf32> to vector<16x16xbf16>
    %263 = vector.extract_strided_slice %225 {offsets = [0, 32], sizes = [16, 32], strides = [1, 1]} : vector<16x128xbf16> to vector<16x32xbf16>
    %cst_101 = arith.constant dense<0.000000e+00> : vector<16x32xf32>
    %264 = tpu.matmul %262, %263, %cst_101 {dimension_numbers = #tpu.dot_dimension_numbers<[1], [0], [0], [1], [0, 0, 1, 1], [], []>} : vector<16x16xbf16>, vector<16x32xbf16>, vector<16x32xf32> -> vector<16x32xf32>
    %265 = arith.truncf %264 : vector<16x32xf32> to vector<16x32xbf16>
    %266 = vector.extract_strided_slice %227 {offsets = [32, 0], sizes = [32, 128], strides = [1, 1]} : vector<128x128xbf16> to vector<32x128xbf16>
    %cst_102 = arith.constant dense<0.000000e+00> : vector<16x128xf32>
    %267 = tpu.matmul %265, %266, %cst_102 {dimension_numbers = #tpu.dot_dimension_numbers<[1], [0], [0], [1], [0, 0, 1, 1], [], []>} : vector<16x32xbf16>, vector<32x128xbf16>, vector<16x128xf32> -> vector<16x128xf32>
    %268 = arith.addf %247, %267 : vector<16x128xf32>
    %269 = vector.extract_strided_slice %221 {offsets = [0, 64], sizes = [16, 32], strides = [1, 1]} : vector<16x128xbf16> to vector<16x32xbf16>
    %270 = vector.extract_strided_slice %223 {offsets = [0, 64], sizes = [16, 32], strides = [1, 1]} : vector<16x128xbf16> to vector<16x32xbf16>
    %cst_103 = arith.constant dense<0.000000e+00> : vector<16x16xf32>
    %271 = tpu.matmul %269, %270, %cst_103 {dimension_numbers = #tpu.dot_dimension_numbers<[1], [1], [0], [0], [0, 0, 1, 0], [], []>} : vector<16x32xbf16>, vector<16x32xbf16>, vector<16x16xf32> -> vector<16x16xf32>
    %272 = arith.addf %271, %0 : vector<16x16xf32>
    %cst_104 = arith.constant dense<0xFF800000> : vector<16xf32>
    %273 = vector.multi_reduction <maximumf>, %272, %cst_104 [1] : vector<16x16xf32> to vector<16xf32>
    %274 = vector.shape_cast %273 : vector<16xf32> to vector<16x1xf32>
    %275 = vector.broadcast %274 : vector<16x1xf32> to vector<16x16xf32>
    %276 = arith.subf %272, %275 : vector<16x16xf32>
    %277 = math.exp %276 : vector<16x16xf32>
    %cst_105 = arith.constant dense<0.000000e+00> : vector<16xf32>
    %278 = vector.multi_reduction <add>, %277, %cst_105 [1] : vector<16x16xf32> to vector<16xf32>
    %279 = vector.shape_cast %278 : vector<16xf32> to vector<16x1xf32>
    %280 = tpu.reciprocal %279 {approx = true} : vector<16x1xf32> -> vector<16x1xf32>
    %281 = vector.broadcast %280 : vector<16x1xf32> to vector<16x16xf32>
    %282 = arith.mulf %277, %281 : vector<16x16xf32>
    %283 = arith.truncf %282 : vector<16x16xf32> to vector<16x16xbf16>
    %284 = vector.extract_strided_slice %225 {offsets = [0, 64], sizes = [16, 32], strides = [1, 1]} : vector<16x128xbf16> to vector<16x32xbf16>
    %cst_106 = arith.constant dense<0.000000e+00> : vector<16x32xf32>
    %285 = tpu.matmul %283, %284, %cst_106 {dimension_numbers = #tpu.dot_dimension_numbers<[1], [0], [0], [1], [0, 0, 1, 1], [], []>} : vector<16x16xbf16>, vector<16x32xbf16>, vector<16x32xf32> -> vector<16x32xf32>
    %286 = arith.truncf %285 : vector<16x32xf32> to vector<16x32xbf16>
    %287 = vector.extract_strided_slice %227 {offsets = [64, 0], sizes = [32, 128], strides = [1, 1]} : vector<128x128xbf16> to vector<32x128xbf16>
    %cst_107 = arith.constant dense<0.000000e+00> : vector<16x128xf32>
    %288 = tpu.matmul %286, %287, %cst_107 {dimension_numbers = #tpu.dot_dimension_numbers<[1], [0], [0], [1], [0, 0, 1, 1], [], []>} : vector<16x32xbf16>, vector<32x128xbf16>, vector<16x128xf32> -> vector<16x128xf32>
    %289 = arith.addf %268, %288 : vector<16x128xf32>
    %290 = vector.extract_strided_slice %221 {offsets = [0, 96], sizes = [16, 32], strides = [1, 1]} : vector<16x128xbf16> to vector<16x32xbf16>
    %291 = vector.extract_strided_slice %223 {offsets = [0, 96], sizes = [16, 32], strides = [1, 1]} : vector<16x128xbf16> to vector<16x32xbf16>
    %cst_108 = arith.constant dense<0.000000e+00> : vector<16x16xf32>
    %292 = tpu.matmul %290, %291, %cst_108 {dimension_numbers = #tpu.dot_dimension_numbers<[1], [1], [0], [0], [0, 0, 1, 0], [], []>} : vector<16x32xbf16>, vector<16x32xbf16>, vector<16x16xf32> -> vector<16x16xf32>
    %293 = arith.addf %292, %0 : vector<16x16xf32>
    %cst_109 = arith.constant dense<0xFF800000> : vector<16xf32>
    %294 = vector.multi_reduction <maximumf>, %293, %cst_109 [1] : vector<16x16xf32> to vector<16xf32>
    %295 = vector.shape_cast %294 : vector<16xf32> to vector<16x1xf32>
    %296 = vector.broadcast %295 : vector<16x1xf32> to vector<16x16xf32>
    %297 = arith.subf %293, %296 : vector<16x16xf32>
    %298 = math.exp %297 : vector<16x16xf32>
    %cst_110 = arith.constant dense<0.000000e+00> : vector<16xf32>
    %299 = vector.multi_reduction <add>, %298, %cst_110 [1] : vector<16x16xf32> to vector<16xf32>
    %300 = vector.shape_cast %299 : vector<16xf32> to vector<16x1xf32>
    %301 = tpu.reciprocal %300 {approx = true} : vector<16x1xf32> -> vector<16x1xf32>
    %302 = vector.broadcast %301 : vector<16x1xf32> to vector<16x16xf32>
    %303 = arith.mulf %298, %302 : vector<16x16xf32>
    %304 = arith.truncf %303 : vector<16x16xf32> to vector<16x16xbf16>
    %305 = vector.extract_strided_slice %225 {offsets = [0, 96], sizes = [16, 32], strides = [1, 1]} : vector<16x128xbf16> to vector<16x32xbf16>
    %cst_111 = arith.constant dense<0.000000e+00> : vector<16x32xf32>
    %306 = tpu.matmul %304, %305, %cst_111 {dimension_numbers = #tpu.dot_dimension_numbers<[1], [0], [0], [1], [0, 0, 1, 1], [], []>} : vector<16x16xbf16>, vector<16x32xbf16>, vector<16x32xf32> -> vector<16x32xf32>
    %307 = arith.truncf %306 : vector<16x32xf32> to vector<16x32xbf16>
    %308 = vector.extract_strided_slice %227 {offsets = [96, 0], sizes = [32, 128], strides = [1, 1]} : vector<128x128xbf16> to vector<32x128xbf16>
    %cst_112 = arith.constant dense<0.000000e+00> : vector<16x128xf32>
    %309 = tpu.matmul %307, %308, %cst_112 {dimension_numbers = #tpu.dot_dimension_numbers<[1], [0], [0], [1], [0, 0, 1, 1], [], []>} : vector<16x32xbf16>, vector<32x128xbf16>, vector<16x128xf32> -> vector<16x128xf32>
    %310 = arith.addf %289, %309 : vector<16x128xf32>
    %c1_113 = arith.constant 1 : index
    %c0_114 = arith.constant 0 : index
    %c0_115 = arith.constant 0 : index
    %311 = vector.load %arg7[%c1_113, %c0_114, %c0_115] : memref<2x1x128xf32, #tpu.memory_space<vmem>>, vector<1x1x128xf32>
    %312 = vector.shape_cast %311 : vector<1x1x128xf32> to vector<1x128xf32>
    %313 = vector.broadcast %312 : vector<1x128xf32> to vector<16x128xf32>
    %314 = arith.addf %310, %313 : vector<16x128xf32>
    %315 = arith.addf %314, %211 : vector<16x128xf32>
    %c1_116 = arith.constant 1 : index
    %c0_117 = arith.constant 0 : index
    %c0_118 = arith.constant 0 : index
    %316 = vector.load %arg8[%c1_116, %c0_117, %c0_118] : memref<2x1x128xf32, #tpu.memory_space<vmem>>, vector<1x1x128xf32>
    %317 = vector.shape_cast %316 : vector<1x1x128xf32> to vector<1x128xf32>
    %c1_119 = arith.constant 1 : index
    %c0_120 = arith.constant 0 : index
    %c0_121 = arith.constant 0 : index
    %318 = vector.load %arg9[%c1_119, %c0_120, %c0_121] : memref<2x1x128xf32, #tpu.memory_space<vmem>>, vector<1x1x128xf32>
    %319 = vector.shape_cast %318 : vector<1x1x128xf32> to vector<1x128xf32>
    %cst_122 = arith.constant dense<0.000000e+00> : vector<16xf32>
    %320 = vector.multi_reduction <add>, %315, %cst_122 [1] : vector<16x128xf32> to vector<16xf32>
    %321 = vector.shape_cast %320 : vector<16xf32> to vector<16x1xf32>
    %cst_123 = arith.constant 1.280000e+02 : f32
    %322 = vector.broadcast %cst_123 : f32 to vector<16x1xf32>
    %323 = arith.divf %321, %322 : vector<16x1xf32>
    %324 = vector.broadcast %323 : vector<16x1xf32> to vector<16x128xf32>
    %325 = arith.subf %315, %324 : vector<16x128xf32>
    %326 = arith.mulf %325, %325 : vector<16x128xf32>
    %cst_124 = arith.constant dense<0.000000e+00> : vector<16xf32>
    %327 = vector.multi_reduction <add>, %326, %cst_124 [1] : vector<16x128xf32> to vector<16xf32>
    %328 = vector.shape_cast %327 : vector<16xf32> to vector<16x1xf32>
    %cst_125 = arith.constant 1.280000e+02 : f32
    %329 = vector.broadcast %cst_125 : f32 to vector<16x1xf32>
    %330 = arith.divf %328, %329 : vector<16x1xf32>
    %331 = vector.broadcast %323 : vector<16x1xf32> to vector<16x128xf32>
    %332 = arith.subf %315, %331 : vector<16x128xf32>
    %cst_126 = arith.constant 9.99999996E-13 : f32
    %333 = vector.broadcast %cst_126 : f32 to vector<16x1xf32>
    %334 = arith.addf %330, %333 : vector<16x1xf32>
    %335 = math.rsqrt %334 : vector<16x1xf32>
    %336 = vector.broadcast %335 : vector<16x1xf32> to vector<16x128xf32>
    %337 = arith.mulf %332, %336 : vector<16x128xf32>
    %338 = vector.broadcast %317 : vector<1x128xf32> to vector<16x128xf32>
    %339 = arith.mulf %337, %338 : vector<16x128xf32>
    %340 = vector.broadcast %319 : vector<1x128xf32> to vector<16x128xf32>
    %341 = arith.addf %339, %340 : vector<16x128xf32>
    %342 = arith.truncf %341 : vector<16x128xf32> to vector<16x128xbf16>
    %c1_127 = arith.constant 1 : index
    %c0_128 = arith.constant 0 : index
    %c0_129 = arith.constant 0 : index
    %343 = vector.load %arg10[%c1_127, %c0_128, %c0_129] : memref<2x128x512xbf16, #tpu.memory_space<vmem>>, vector<1x128x512xbf16>
    %344 = vector.shape_cast %343 : vector<1x128x512xbf16> to vector<128x512xbf16>
    %cst_130 = arith.constant dense<0.000000e+00> : vector<16x512xf32>
    %345 = tpu.matmul %342, %344, %cst_130 {dimension_numbers = #tpu.dot_dimension_numbers<[1], [0], [0], [1], [0, 0, 1, 1], [], []>} : vector<16x128xbf16>, vector<128x512xbf16>, vector<16x512xf32> -> vector<16x512xf32>
    %c1_131 = arith.constant 1 : index
    %c0_132 = arith.constant 0 : index
    %c0_133 = arith.constant 0 : index
    %346 = vector.load %arg11[%c1_131, %c0_132, %c0_133] : memref<2x1x512xf32, #tpu.memory_space<vmem>>, vector<1x1x512xf32>
    %347 = vector.shape_cast %346 : vector<1x1x512xf32> to vector<1x512xf32>
    %348 = vector.broadcast %347 : vector<1x512xf32> to vector<16x512xf32>
    %349 = arith.addf %345, %348 : vector<16x512xf32>
    %cst_134 = arith.constant 5.000000e-01 : f32
    %350 = vector.broadcast %cst_134 : f32 to vector<16x512xf32>
    %351 = arith.mulf %350, %349 : vector<16x512xf32>
    %cst_135 = arith.constant 4.471500e-02 : f32
    %352 = vector.broadcast %cst_135 : f32 to vector<16x512xf32>
    %353 = arith.mulf %352, %349 : vector<16x512xf32>
    %354 = arith.mulf %353, %349 : vector<16x512xf32>
    %355 = arith.mulf %354, %349 : vector<16x512xf32>
    %356 = arith.addf %349, %355 : vector<16x512xf32>
    %cst_136 = arith.constant 0.797884583 : f32
    %357 = vector.broadcast %cst_136 : f32 to vector<16x512xf32>
    %358 = arith.mulf %357, %356 : vector<16x512xf32>
    %359 = math.tanh %358 : vector<16x512xf32>
    %cst_137 = arith.constant 1.000000e+00 : f32
    %360 = vector.broadcast %cst_137 : f32 to vector<16x512xf32>
    %361 = arith.addf %360, %359 : vector<16x512xf32>
    %362 = arith.mulf %351, %361 : vector<16x512xf32>
    %363 = arith.truncf %362 : vector<16x512xf32> to vector<16x512xbf16>
    %c1_138 = arith.constant 1 : index
    %c0_139 = arith.constant 0 : index
    %c0_140 = arith.constant 0 : index
    %364 = vector.load %arg12[%c1_138, %c0_139, %c0_140] : memref<2x512x128xbf16, #tpu.memory_space<vmem>>, vector<1x512x128xbf16>
    %365 = vector.shape_cast %364 : vector<1x512x128xbf16> to vector<512x128xbf16>
    %cst_141 = arith.constant dense<0.000000e+00> : vector<16x128xf32>
    %366 = tpu.matmul %363, %365, %cst_141 {dimension_numbers = #tpu.dot_dimension_numbers<[1], [0], [0], [1], [0, 0, 1, 1], [], []>} : vector<16x512xbf16>, vector<512x128xbf16>, vector<16x128xf32> -> vector<16x128xf32>
    %c1_142 = arith.constant 1 : index
    %c0_143 = arith.constant 0 : index
    %c0_144 = arith.constant 0 : index
    %367 = vector.load %arg13[%c1_142, %c0_143, %c0_144] : memref<2x1x128xf32, #tpu.memory_space<vmem>>, vector<1x1x128xf32>
    %368 = vector.shape_cast %367 : vector<1x1x128xf32> to vector<1x128xf32>
    %369 = vector.broadcast %368 : vector<1x128xf32> to vector<16x128xf32>
    %370 = arith.addf %366, %369 : vector<16x128xf32>
    %371 = arith.addf %370, %341 : vector<16x128xf32>
    %c1_145 = arith.constant 1 : index
    %c0_146 = arith.constant 0 : index
    %c0_147 = arith.constant 0 : index
    %372 = vector.load %arg14[%c1_145, %c0_146, %c0_147] : memref<2x1x128xf32, #tpu.memory_space<vmem>>, vector<1x1x128xf32>
    %373 = vector.shape_cast %372 : vector<1x1x128xf32> to vector<1x128xf32>
    %c1_148 = arith.constant 1 : index
    %c0_149 = arith.constant 0 : index
    %c0_150 = arith.constant 0 : index
    %374 = vector.load %arg15[%c1_148, %c0_149, %c0_150] : memref<2x1x128xf32, #tpu.memory_space<vmem>>, vector<1x1x128xf32>
    %375 = vector.shape_cast %374 : vector<1x1x128xf32> to vector<1x128xf32>
    %cst_151 = arith.constant dense<0.000000e+00> : vector<16xf32>
    %376 = vector.multi_reduction <add>, %371, %cst_151 [1] : vector<16x128xf32> to vector<16xf32>
    %377 = vector.shape_cast %376 : vector<16xf32> to vector<16x1xf32>
    %cst_152 = arith.constant 1.280000e+02 : f32
    %378 = vector.broadcast %cst_152 : f32 to vector<16x1xf32>
    %379 = arith.divf %377, %378 : vector<16x1xf32>
    %380 = vector.broadcast %379 : vector<16x1xf32> to vector<16x128xf32>
    %381 = arith.subf %371, %380 : vector<16x128xf32>
    %382 = arith.mulf %381, %381 : vector<16x128xf32>
    %cst_153 = arith.constant dense<0.000000e+00> : vector<16xf32>
    %383 = vector.multi_reduction <add>, %382, %cst_153 [1] : vector<16x128xf32> to vector<16xf32>
    %384 = vector.shape_cast %383 : vector<16xf32> to vector<16x1xf32>
    %cst_154 = arith.constant 1.280000e+02 : f32
    %385 = vector.broadcast %cst_154 : f32 to vector<16x1xf32>
    %386 = arith.divf %384, %385 : vector<16x1xf32>
    %387 = vector.broadcast %379 : vector<16x1xf32> to vector<16x128xf32>
    %388 = arith.subf %371, %387 : vector<16x128xf32>
    %cst_155 = arith.constant 9.99999996E-13 : f32
    %389 = vector.broadcast %cst_155 : f32 to vector<16x1xf32>
    %390 = arith.addf %386, %389 : vector<16x1xf32>
    %391 = math.rsqrt %390 : vector<16x1xf32>
    %392 = vector.broadcast %391 : vector<16x1xf32> to vector<16x128xf32>
    %393 = arith.mulf %388, %392 : vector<16x128xf32>
    %394 = vector.broadcast %373 : vector<1x128xf32> to vector<16x128xf32>
    %395 = arith.mulf %393, %394 : vector<16x128xf32>
    %396 = vector.broadcast %375 : vector<1x128xf32> to vector<16x128xf32>
    %397 = arith.addf %395, %396 : vector<16x128xf32>
    %398 = vector.extract_strided_slice %397 {offsets = [0, 0], sizes = [1, 128], strides = [1, 1]} : vector<16x128xf32> to vector<1x128xf32>
    %399 = vector.extract_strided_slice %397 {offsets = [8, 0], sizes = [1, 128], strides = [1, 1]} : vector<16x128xf32> to vector<1x128xf32>
    %400 = tpu.concatenate %398, %399 in 0 : vector<1x128xf32>, vector<1x128xf32> -> vector<2x128xf32>
    %401 = arith.truncf %400 : vector<2x128xf32> to vector<2x128xbf16>
    %c0_156 = arith.constant 0 : index
    %c0_157 = arith.constant 0 : index
    %402 = vector.load %arg16[%c0_156, %c0_157] : memref<128x128xbf16, #tpu.memory_space<vmem>>, vector<128x128xbf16>
    %cst_158 = arith.constant dense<0.000000e+00> : vector<2x128xf32>
    %403 = tpu.matmul %401, %402, %cst_158 {dimension_numbers = #tpu.dot_dimension_numbers<[1], [0], [0], [1], [0, 0, 1, 1], [], []>} : vector<2x128xbf16>, vector<128x128xbf16>, vector<2x128xf32> -> vector<2x128xf32>
    %c0_159 = arith.constant 0 : index
    %c0_160 = arith.constant 0 : index
    %404 = vector.load %arg17[%c0_159, %c0_160] : memref<1x128xf32, #tpu.memory_space<vmem>>, vector<1x128xf32>
    %405 = vector.broadcast %404 : vector<1x128xf32> to vector<2x128xf32>
    %406 = arith.addf %403, %405 : vector<2x128xf32>
    %c0_161 = arith.constant 0 : index
    %c0_162 = arith.constant 0 : index
    %407 = vector.load %arg18[%c0_161, %c0_162] : memref<2x128xf32, #tpu.memory_space<vmem>>, vector<2x128xf32>
    tpu.vector_store %arg18[%c0_161, %c0_162], %406 {strides = array<i32>} : memref<2x128xf32, #tpu.memory_space<vmem>>, vector<2x128xf32>,
    return
  }
}

</mosaic_0001>

<llo_original>
// kernel: tpu_custom_call.1
$region0: #{tpu_custom_call.1}
  #allocation0 [shape = 'u32[]', space=smem, size = 0x4, offset = 0x4, fixed_abs, tag = 'smem constant byte address 0x4 - core index']
  #allocation1 [shape = 'u32[144,128]{1,0:T(1,128)}', space=vmem, size = 0x12000, scoped, tag = 'internal scratch']
  %s0 = inlined_call_operand.hbm [shape: f32[16,128], index: 0, kind: input, shape index: {}]
  %s1 = inlined_call_operand.hbm [shape: f32[16,16], index: 1, kind: input, shape index: {}]
  %s2 = inlined_call_operand.hbm [shape: f32[1,128], index: 2, kind: input, shape index: {}]
  %s3 = inlined_call_operand.hbm [shape: f32[1,128], index: 3, kind: input, shape index: {}]
  %s4 = inlined_call_operand.hbm [shape: bf16[2,128,384], index: 4, kind: input, shape index: {}]
  %s5 = inlined_call_operand.vmem [shape: f32[2,1,384], index: 5, kind: input, shape index: {}]
  %s6 = inlined_call_operand.hbm [shape: bf16[2,128,128], index: 6, kind: input, shape index: {}]
  %s7 = inlined_call_operand.vmem [shape: f32[2,1,128], index: 7, kind: input, shape index: {}]
  %s8 = inlined_call_operand.vmem [shape: f32[2,1,128], index: 8, kind: input, shape index: {}]
  %s9 = inlined_call_operand.vmem [shape: f32[2,1,128], index: 9, kind: input, shape index: {}]
  %s10 = inlined_call_operand.hbm [shape: bf16[2,128,512], index: 10, kind: input, shape index: {}]
  %s11 = inlined_call_operand.vmem [shape: f32[2,1,512], index: 11, kind: input, shape index: {}]
  %s12 = inlined_call_operand.hbm [shape: bf16[2,512,128], index: 12, kind: input, shape index: {}]
  %s13 = inlined_call_operand.vmem [shape: f32[2,1,128], index: 13, kind: input, shape index: {}]
  %s14 = inlined_call_operand.vmem [shape: f32[2,1,128], index: 14, kind: input, shape index: {}]
  %s15 = inlined_call_operand.vmem [shape: f32[2,1,128], index: 15, kind: input, shape index: {}]
  %s16 = inlined_call_operand.hbm [shape: bf16[128,128], index: 16, kind: input, shape index: {}]
  %s17 = inlined_call_operand.vmem [shape: f32[1,128], index: 17, kind: input, shape index: {}]
  %s18 = inlined_call_operand.hbm [shape: f32[2,128], index: 18, kind: output, shape index: {}]
  %s19 = sld [smem:[#allocation0]]
  $region118: #{tpu_custom_call.1} parent=0
    _
  %s21 = ssub.s32 1, %s19
  %s22 = scalar_select 0, %s21, %s19
  $region1: #{tpu_custom_call.1} parent=0
    #allocation2 [shape = 'u8[8192]{0}', space=vmem, size = 0x2000, scoped, tag = 'input window, operand 0, single buffered']
    #allocation3 [shape = 's32[1]{0}', space=sflag, size = 0x4, scoped, tag = 'scoped memory for tpu_custom_call.1']
    #allocation4 [shape = 's32[1]{0}', space=sflag, size = 0x4, scoped, tag = 'scoped memory for tpu_custom_call.1']
    #allocation5 [shape = 'u8[8192]{0}', space=vmem, size = 0x2000, scoped, tag = 'input window, operand 1, single buffered']
    #allocation6 [shape = 's32[1]{0}', space=sflag, size = 0x4, scoped, tag = 'scoped memory for tpu_custom_call.1']
    #allocation7 [shape = 'u8[512]{0}', space=vmem, size = 0x400, scoped, tag = 'input window, operand 2, single buffered']
    #allocation8 [shape = 'u8[512]{0}', space=vmem, size = 0x400, scoped, tag = 'input window, operand 3, single buffered']
    #allocation9 [shape = 's32[1]{0}', space=sflag, size = 0x4, scoped, tag = 'scoped memory for tpu_custom_call.1']
    #allocation10 [shape = 'u8[196608]{0}', space=vmem, size = 0x30000, scoped, tag = 'input window, operand 4, single buffered']
    #allocation11 [shape = 'u8[65536]{0}', space=vmem, size = 0x10000, scoped, tag = 'input window, operand 6, single buffered']
    #allocation12 [shape = 's32[1]{0}', space=sflag, size = 0x4, scoped, tag = 'scoped memory for tpu_custom_call.1']
    #allocation13 [shape = 'u8[262144]{0}', space=vmem, size = 0x40000, scoped, tag = 'input window, operand 10, single buffered']
    #allocation14 [shape = 'u8[262144]{0}', space=vmem, size = 0x40000, scoped, tag = 'input window, operand 12, single buffered']
    #allocation15 [shape = 's32[1]{0}', space=sflag, size = 0x4, scoped, tag = 'scoped memory for tpu_custom_call.1']
    #allocation16 [shape = 'u8[32768]{0}', space=vmem, size = 0x8000, scoped, tag = 'input window, operand 16, single buffered']
    #allocation17 [shape = 'u8[1024]{0}', space=vmem, size = 0x400, scoped, tag = 'output window, operand 0, single buffered']
    %23 = vsyncpa [#allocation3], 0
    %24 = vsyncpa [#allocation6], 0
    %25 = vsyncpa [#allocation9], 0
    %26 = vsyncpa [#allocation12], 0
    %27 = vsyncpa [#allocation15], 0
    %28 = vsyncpa [#allocation4], 0
    // Predicated region
    $region2: #{tpu_custom_call.1} parent=1 // pred_check
      _
    $region3: #{tpu_custom_call.1} parent=1 // pred_check_branch
      %30 = sbr.rel (0) target = $region5
    $region4: #{tpu_custom_call.1} parent=1 // pred_region
      %s32 = ssub.s32 256, 256
      %33 = vsyncadd [#allocation3], %s32
      %s34 = sshll.u32 [#allocation2], 4
      %s35 = int_to_ptr.vmem [resolvable:$true] %s34
      %40 = dma.hbm_to_vmem [thread:$0]  %s0, 256, %s35, [#allocation3], 128, 128, 8
    $region5: #{tpu_custom_call.1} parent=1 // pred_fallthru
      _
    // Predicated region
    $region6: #{tpu_custom_call.1} parent=1 // pred_check
      _
    $region7: #{tpu_custom_call.1} parent=1 // pred_check_branch
      %42 = sbr.rel (0) target = $region9
    $region8: #{tpu_custom_call.1} parent=1 // pred_region
      %s44 = ssub.s32 256, 256
      %45 = vsyncadd [#allocation6], %s44
      %s46 = sshll.u32 [#allocation5], 4
      %s47 = int_to_ptr.vmem [resolvable:$true] %s46
      %52 = dma.hbm_to_vmem [thread:$0]  %s1, 256, %s47, [#allocation6], 128, 128, 8
    $region9: #{tpu_custom_call.1} parent=1 // pred_fallthru
      _
    // Predicated region
    $region10: #{tpu_custom_call.1} parent=1 // pred_check
      _
    $region11: #{tpu_custom_call.1} parent=1 // pred_check_branch
      %54 = sbr.rel (0) target = $region13
    $region12: #{tpu_custom_call.1} parent=1 // pred_region
      %s56 = ssub.s32 16, 16
      %57 = vsyncadd [#allocation6], %s56
      %s59 = sshll.u32 [#allocation7], 4
      %s60 = int_to_ptr.vmem [resolvable:$true] %s59
      %62 = dma.hbm_to_vmem [thread:$0]  %s2, 16, %s60, [#allocation6]
    $region13: #{tpu_custom_call.1} parent=1 // pred_fallthru
      _
    // Predicated region
    $region14: #{tpu_custom_call.1} parent=1 // pred_check
      _
    $region15: #{tpu_custom_call.1} parent=1 // pred_check_branch
      %64 = sbr.rel (0) target = $region17
    $region16: #{tpu_custom_call.1} parent=1 // pred_region
      %s66 = ssub.s32 16, 16
      %67 = vsyncadd [#allocation9], %s66
      %s69 = sshll.u32 [#allocation8], 4
      %s70 = int_to_ptr.vmem [resolvable:$true] %s69
      %72 = dma.hbm_to_vmem [thread:$0]  %s3, 16, %s70, [#allocation9]
    $region17: #{tpu_custom_call.1} parent=1 // pred_fallthru
      _
    // Predicated region
    $region18: #{tpu_custom_call.1} parent=1 // pred_check
      _
    $region19: #{tpu_custom_call.1} parent=1 // pred_check_branch
      %74 = sbr.rel (0) target = $region21
    $region20: #{tpu_custom_call.1} parent=1 // pred_region
      %s76 = ssub.s32 6144, 6144
      %77 = vsyncadd [#allocation9], %s76
      %s78 = sshll.u32 [#allocation10], 4
      %s79 = int_to_ptr.vmem [resolvable:$true] %s78
      %84 = dma.hbm_to_vmem [thread:$0]  %s4, 6144, %s79, [#allocation9], 192, 192, 12
    $region21: #{tpu_custom_call.1} parent=1 // pred_fallthru
      _
    // Predicated region
    $region22: #{tpu_custom_call.1} parent=1 // pred_check
      _
    $region23: #{tpu_custom_call.1} parent=1 // pred_check_branch
      %86 = sbr.rel (0) target = $region25
    $region24: #{tpu_custom_call.1} parent=1 // pred_region
      _
    $region25: #{tpu_custom_call.1} parent=1 // pred_fallthru
      _
    // Predicated region
    $region26: #{tpu_custom_call.1} parent=1 // pred_check
      _
    $region27: #{tpu_custom_call.1} parent=1 // pred_check_branch
      %88 = sbr.rel (0) target = $region29
    $region28: #{tpu_custom_call.1} parent=1 // pred_region
      %s90 = ssub.s32 2048, 2048
      %91 = vsyncadd [#allocation12], %s90
      %s92 = sshll.u32 [#allocation11], 4
      %s93 = int_to_ptr.vmem [resolvable:$true] %s92
      %98 = dma.hbm_to_vmem [thread:$0]  %s6, 2048, %s93, [#allocation12], 64, 64, 4
    $region29: #{tpu_custom_call.1} parent=1 // pred_fallthru
      _
    // Predicated region
    $region30: #{tpu_custom_call.1} parent=1 // pred_check
      _
    $region31: #{tpu_custom_call.1} parent=1 // pred_check_branch
      %100 = sbr.rel (0) target = $region33
    $region32: #{tpu_custom_call.1} parent=1 // pred_region
      _
    $region33: #{tpu_custom_call.1} parent=1 // pred_fallthru
      _
    // Predicated region
    $region34: #{tpu_custom_call.1} parent=1 // pred_check
      _
    $region35: #{tpu_custom_call.1} parent=1 // pred_check_branch
      %102 = sbr.rel (0) target = $region37
    $region36: #{tpu_custom_call.1} parent=1 // pred_region
      _
    $region37: #{tpu_custom_call.1} parent=1 // pred_fallthru
      _
    // Predicated region
    $region38: #{tpu_custom_call.1} parent=1 // pred_check
      _
    $region39: #{tpu_custom_call.1} parent=1 // pred_check_branch
      %104 = sbr.rel (0) target = $region41
    $region40: #{tpu_custom_call.1} parent=1 // pred_region
      _
    $region41: #{tpu_custom_call.1} parent=1 // pred_fallthru
      _
    // Predicated region
    $region42: #{tpu_custom_call.1} parent=1 // pred_check
      _
    $region43: #{tpu_custom_call.1} parent=1 // pred_check_branch
      %106 = sbr.rel (0) target = $region45
    $region44: #{tpu_custom_call.1} parent=1 // pred_region
      %s108 = ssub.s32 8192, 8192
      %109 = vsyncadd [#allocation12], %s108
      %s110 = sshll.u32 [#allocation13], 4
      %s111 = int_to_ptr.vmem [resolvable:$true] %s110
      %116 = dma.hbm_to_vmem [thread:$0]  %s10, 8192, %s111, [#allocation12], 256, 256, 16
    $region45: #{tpu_custom_call.1} parent=1 // pred_fallthru
      _
    // Predicated region
    $region46: #{tpu_custom_call.1} parent=1 // pred_check
      _
    $region47: #{tpu_custom_call.1} parent=1 // pred_check_branch
      %118 = sbr.rel (0) target = $region49
    $region48: #{tpu_custom_call.1} parent=1 // pred_region
      _
    $region49: #{tpu_custom_call.1} parent=1 // pred_fallthru
      _
    // Predicated region
    $region50: #{tpu_custom_call.1} parent=1 // pred_check
      _
    $region51: #{tpu_custom_call.1} parent=1 // pred_check_branch
      %120 = sbr.rel (0) target = $region53
    $region52: #{tpu_custom_call.1} parent=1 // pred_region
      %s122 = ssub.s32 8192, 8192
      %123 = vsyncadd [#allocation15], %s122
      %s124 = sshll.u32 [#allocation14], 4
      %s125 = int_to_ptr.vmem [resolvable:$true] %s124
      %130 = dma.hbm_to_vmem [thread:$0]  %s12, 8192, %s125, [#allocation15], 64, 64, 4
    $region53: #{tpu_custom_call.1} parent=1 // pred_fallthru
      _
    // Predicated region
    $region54: #{tpu_custom_call.1} parent=1 // pred_check
      _
    $region55: #{tpu_custom_call.1} parent=1 // pred_check_branch
      %132 = sbr.rel (0) target = $region57
    $region56: #{tpu_custom_call.1} parent=1 // pred_region
      _
    $region57: #{tpu_custom_call.1} parent=1 // pred_fallthru
      _
    // Predicated region
    $region58: #{tpu_custom_call.1} parent=1 // pred_check
      _
    $region59: #{tpu_custom_call.1} parent=1 // pred_check_branch
      %134 = sbr.rel (0) target = $region61
    $region60: #{tpu_custom_call.1} parent=1 // pred_region
      _
    $region61: #{tpu_custom_call.1} parent=1 // pred_fallthru
      _
    // Predicated region
    $region62: #{tpu_custom_call.1} parent=1 // pred_check
      _
    $region63: #{tpu_custom_call.1} parent=1 // pred_check_branch
      %136 = sbr.rel (0) target = $region65
    $region64: #{tpu_custom_call.1} parent=1 // pred_region
      _
    $region65: #{tpu_custom_call.1} parent=1 // pred_fallthru
      _
    // Predicated region
    $region66: #{tpu_custom_call.1} parent=1 // pred_check
      _
    $region67: #{tpu_custom_call.1} parent=1 // pred_check_branch
      %138 = sbr.rel (0) target = $region69
    $region68: #{tpu_custom_call.1} parent=1 // pred_region
      %s140 = ssub.s32 1024, 1024
      %141 = vsyncadd [#allocation15], %s140
      %s142 = sshll.u32 [#allocation16], 4
      %s143 = int_to_ptr.vmem [resolvable:$true] %s142
      %148 = dma.hbm_to_vmem [thread:$0]  %s16, 1024, %s143, [#allocation15], 64, 64, 4
    $region69: #{tpu_custom_call.1} parent=1 // pred_fallthru
      _
    // Predicated region
    $region70: #{tpu_custom_call.1} parent=1 // pred_check
      _
    $region71: #{tpu_custom_call.1} parent=1 // pred_check_branch
      %150 = sbr.rel (0) target = $region73
    $region72: #{tpu_custom_call.1} parent=1 // pred_region
      _
    $region73: #{tpu_custom_call.1} parent=1 // pred_fallthru
      _
    // Predicated region
    $region74: #{tpu_custom_call.1} parent=1 // pred_check
      _
    $region75: #{tpu_custom_call.1} parent=1 // pred_check_branch
      %152 = sbr.rel (0) target = $region77
    $region76: #{tpu_custom_call.1} parent=1 // pred_region
      %153 = dma.done [#allocation3], 256
    $region77: #{tpu_custom_call.1} parent=1 // pred_fallthru
      _
    // Predicated region
    $region78: #{tpu_custom_call.1} parent=1 // pred_check
      _
    $region79: #{tpu_custom_call.1} parent=1 // pred_check_branch
      %155 = sbr.rel (0) target = $region81
    $region80: #{tpu_custom_call.1} parent=1 // pred_region
      %156 = dma.done [#allocation6], 256
    $region81: #{tpu_custom_call.1} parent=1 // pred_fallthru
      _
    // Predicated region
    $region82: #{tpu_custom_call.1} parent=1 // pred_check
      _
    $region83: #{tpu_custom_call.1} parent=1 // pred_check_branch
      %158 = sbr.rel (0) target = $region85
    $region84: #{tpu_custom_call.1} parent=1 // pred_region
      %159 = dma.done [#allocation6], 16
    $region85: #{tpu_custom_call.1} parent=1 // pred_fallthru
      _
    // Predicated region
    $region86: #{tpu_custom_call.1} parent=1 // pred_check
      _
    $region87: #{tpu_custom_call.1} parent=1 // pred_check_branch
      %161 = sbr.rel (0) target = $region89
    $region88: #{tpu_custom_call.1} parent=1 // pred_region
      %162 = dma.done [#allocation9], 16
    $region89: #{tpu_custom_call.1} parent=1 // pred_fallthru
      _
    // Predicated region
    $region90: #{tpu_custom_call.1} parent=1 // pred_check
      _
    $region91: #{tpu_custom_call.1} parent=1 // pred_check_branch
      %164 = sbr.rel (0) target = $region93
    $region92: #{tpu_custom_call.1} parent=1 // pred_region
      %165 = dma.done [#allocation9], 6144
    $region93: #{tpu_custom_call.1} parent=1 // pred_fallthru
      _
    // Predicated region
    $region94: #{tpu_custom_call.1} parent=1 // pred_check
      _
    $region95: #{tpu_custom_call.1} parent=1 // pred_check_branch
      %167 = sbr.rel (0) target = $region97
    $region96: #{tpu_custom_call.1} parent=1 // pred_region
      %168 = dma.done [#allocation12], 2048
    $region97: #{tpu_custom_call.1} parent=1 // pred_fallthru
      _
    // Predicated region
    $region98: #{tpu_custom_call.1} parent=1 // pred_check
      _
    $region99: #{tpu_custom_call.1} parent=1 // pred_check_branch
      %170 = sbr.rel (0) target = $region101
    $region100: #{tpu_custom_call.1} parent=1 // pred_region
      %171 = dma.done [#allocation12], 8192
    $region101: #{tpu_custom_call.1} parent=1 // pred_fallthru
      _
    // Predicated region
    $region102: #{tpu_custom_call.1} parent=1 // pred_check
      _
    $region103: #{tpu_custom_call.1} parent=1 // pred_check_branch
      %173 = sbr.rel (0) target = $region105
    $region104: #{tpu_custom_call.1} parent=1 // pred_region
      %174 = dma.done [#allocation15], 8192
    $region105: #{tpu_custom_call.1} parent=1 // pred_fallthru
      _
    // Predicated region
    $region106: #{tpu_custom_call.1} parent=1 // pred_check
      _
    $region107: #{tpu_custom_call.1} parent=1 // pred_check_branch
      %176 = sbr.rel (0) target = $region109
    $region108: #{tpu_custom_call.1} parent=1 // pred_region
      %177 = dma.done [#allocation15], 1024
    $region109: #{tpu_custom_call.1} parent=1 // pred_fallthru
      _
    %v179 = vld [vmem:[#allocation5] sm:$0xff]
    %v180 = vld [vmem:[#allocation5 + $0x8] sm:$0xff]
    %v181 = vld [vmem:[#allocation2] sm:$0xff]
    %v182 = vld [vmem:[#allocation2 + $0x8] sm:$0xff]
    %v183 = vld [vmem:[#allocation7] sm:$0x1]
    %v184 = vld [vmem:[#allocation8] sm:$0x1]
    %185 = vadd.xlane.f32.xlu0 %v181
    %v186 = vpop.xlane.xlu0 %185
    %187 = vadd.xlane.f32.xlu0 %v182
    %v188 = vpop.xlane.xlu0 %187
    %v189 = vrcp.pop 128.0
    %v190 = vmul.f32 %v186, %v189
    %v191 = vmul.f32 %v188, %v189
    %v192 = vsub.f32 %v181, %v190
    %v193 = vsub.f32 %v182, %v191
    %v194 = vmul.f32 %v192, %v192
    %v195 = vmul.f32 %v193, %v193
    %196 = vadd.xlane.f32.xlu0 %v194
    %v197 = vpop.xlane.xlu0 %196
    %198 = vadd.xlane.f32.xlu0 %v195
    %v199 = vpop.xlane.xlu0 %198
    %v200 = vmul.f32 %v197, %v189
    %v201 = vmul.f32 %v199, %v189
    %v202 = vadd.f32 %v200, 1e-12
    %v203 = vadd.f32 %v201, 1e-12
    %v204 = vrsqrt.pop %v202
    %v205 = vrsqrt.pop %v203
    %v206 = vmul.f32 %v192, %v204
    %v207 = vmul.f32 %v193, %v205
    %v209 = vlaneseq
    %v210 = vshrl.u32 %v209, 7
    %v211 = vsub.s32 0, %v210
    %v212 = vrot.slane %v183, %v211
    %v214 = vmul.f32 %v206, %v212
    %v215 = vmul.f32 %v207, %v212
    %v217 = vlaneseq
    %v218 = vshrl.u32 %v217, 7
    %v219 = vsub.s32 0, %v218
    %v220 = vrot.slane %v184, %v219
    %v222 = vadd.f32 %v214, %v220
    %v223 = vadd.f32 %v215, %v220
    %v224 = vpack.c.bf16 %v223, %v222
    %v225 = vld [vmem:[#allocation10] sm:$0xff]
    %v226 = vld [vmem:[#allocation10 + $0x8] sm:$0xf]
    %v227 = vld [vmem:[#allocation10 + $0xc] sm:$0xff]
    %v228 = vld [vmem:[#allocation10 + $0x14] sm:$0xf]
    %v229 = vld [vmem:[#allocation10 + $0x18] sm:$0xff]
    %v230 = vld [vmem:[#allocation10 + $0x20] sm:$0xf]
    %v231 = vld [vmem:[#allocation10 + $0x24] sm:$0xff]
    %v232 = vld [vmem:[#allocation10 + $0x2c] sm:$0xf]
    %v233 = vld [vmem:[#allocation10 + $0x30] sm:$0xff]
    %v234 = vld [vmem:[#allocation10 + $0x38] sm:$0xf]
    %v235 = vld [vmem:[#allocation10 + $0x3c] sm:$0xff]
    %v236 = vld [vmem:[#allocation10 + $0x44] sm:$0xf]
    %v237 = vld [vmem:[#allocation10 + $0x48] sm:$0xff]
    %v238 = vld [vmem:[#allocation10 + $0x50] sm:$0xf]
    %v239 = vld [vmem:[#allocation10 + $0x54] sm:$0xff]
    %v240 = vld [vmem:[#allocation10 + $0x5c] sm:$0xf]
    %v241 = vld [vmem:[#allocation10 + $0x60] sm:$0xff]
    %v242 = vld [vmem:[#allocation10 + $0x68] sm:$0xf]
    %v243 = vld [vmem:[#allocation10 + $0x6c] sm:$0xff]
    %v244 = vld [vmem:[#allocation10 + $0x74] sm:$0xf]
    %v245 = vld [vmem:[#allocation10 + $0x78] sm:$0xff]
    %v246 = vld [vmem:[#allocation10 + $0x80] sm:$0xf]
    %v247 = vld [vmem:[#allocation10 + $0x84] sm:$0xff]
    %v248 = vld [vmem:[#allocation10 + $0x8c] sm:$0xf]
    %v249 = vld [vmem:[#allocation10 + $0x90] sm:$0xff]
    %v250 = vld [vmem:[#allocation10 + $0x98] sm:$0xf]
    %v251 = vld [vmem:[#allocation10 + $0x9c] sm:$0xff]
    %v252 = vld [vmem:[#allocation10 + $0xa4] sm:$0xf]
    %v253 = vld [vmem:[#allocation10 + $0xa8] sm:$0xff]
    %v254 = vld [vmem:[#allocation10 + $0xb0] sm:$0xf]
    %v255 = vld [vmem:[#allocation10 + $0xb4] sm:$0xff]
    %v256 = vld [vmem:[#allocation10 + $0xbc] sm:$0xf]
    %v257 = vld [vmem:[%s5] sm:$0x7]
    %v259 = vlaneseq
    %v260 = vshrl.u32 %v259, 7
    %v261 = vsub.s32 0, %v260
    %v262 = vrot.slane %v257, %v261
    %v263 = vlaneseq
    %v264 = vshrl.u32 %v263, 7
    %v265 = vsub.s32 1, %v264
    %v266 = vrot.slane %v257, %v265
    %v267 = vlaneseq
    %v268 = vshrl.u32 %v267, 7
    %v269 = vsub.s32 2, %v268
    %v270 = vrot.slane %v257, %v269
    %v306 = vunpack.c.l.b16 %v225
    %v307 = vunpack.c.h.b16 %v225
    %v308 = vunpack.c.l.b16 %v226
    %v309 = vunpack.c.l.b16 %v227
    %v310 = vunpack.c.h.b16 %v227
    %v311 = vunpack.c.l.b16 %v228
    %v312 = vunpack.c.l.b16 %v229
    %v313 = vunpack.c.h.b16 %v229
    %v314 = vunpack.c.l.b16 %v230
    %v315 = vunpack.c.l.b16 %v231
    %v316 = vunpack.c.h.b16 %v231
    %v317 = vunpack.c.l.b16 %v232
    %v318 = vunpack.c.l.b16 %v233
    %v319 = vunpack.c.h.b16 %v233
    %v320 = vunpack.c.l.b16 %v234
    %v321 = vunpack.c.l.b16 %v235
    %v322 = vunpack.c.h.b16 %v235
    %v323 = vunpack.c.l.b16 %v236
    %v324 = vunpack.c.l.b16 %v237
    %v325 = vunpack.c.h.b16 %v237
    %v326 = vunpack.c.l.b16 %v238
    %v327 = vunpack.c.l.b16 %v239
    %v328 = vunpack.c.h.b16 %v239
    %v329 = vunpack.c.l.b16 %v240
    %v330 = vunpack.c.l.b16 %v241
    %v331 = vunpack.c.h.b16 %v241
    %v332 = vunpack.c.l.b16 %v242
    %v333 = vunpack.c.l.b16 %v243
    %v334 = vunpack.c.h.b16 %v243
    %v335 = vunpack.c.l.b16 %v244
    %v336 = vunpack.c.l.b16 %v245
    %v337 = vunpack.c.h.b16 %v245
    %v338 = vunpack.c.l.b16 %v246
    %v339 = vunpack.c.l.b16 %v247
    %v340 = vunpack.c.h.b16 %v247
    %v341 = vunpack.c.l.b16 %v248
    %v342 = vunpack.c.l.b16 %v249
    %v343 = vunpack.c.h.b16 %v249
    %v344 = vunpack.c.l.b16 %v250
    %v345 = vunpack.c.l.b16 %v251
    %v346 = vunpack.c.h.b16 %v251
    %v347 = vunpack.c.l.b16 %v252
    %v348 = vunpack.c.l.b16 %v253
    %v349 = vunpack.c.h.b16 %v253
    %v350 = vunpack.c.l.b16 %v254
    %v351 = vunpack.c.l.b16 %v255
    %v352 = vunpack.c.h.b16 %v255
    %v353 = vunpack.c.l.b16 %v256
    %v354 = vpack.c.b16 %v309, %v306
    %v355 = vpack.c.b16 %v310, %v307
    %v356 = vpack.c.b16 %v311, %v308
    %v357 = vpack.c.b16 %v315, %v312
    %v358 = vpack.c.b16 %v316, %v313
    %v359 = vpack.c.b16 %v317, %v314
    %v360 = vpack.c.b16 %v321, %v318
    %v361 = vpack.c.b16 %v322, %v319
    %v362 = vpack.c.b16 %v323, %v320
    %v363 = vpack.c.b16 %v327, %v324
    %v364 = vpack.c.b16 %v328, %v325
    %v365 = vpack.c.b16 %v329, %v326
    %v366 = vpack.c.b16 %v333, %v330
    %v367 = vpack.c.b16 %v334, %v331
    %v368 = vpack.c.b16 %v335, %v332
    %v369 = vpack.c.b16 %v339, %v336
    %v370 = vpack.c.b16 %v340, %v337
    %v371 = vpack.c.b16 %v341, %v338
    %v372 = vpack.c.b16 %v345, %v342
    %v373 = vpack.c.b16 %v346, %v343
    %v374 = vpack.c.b16 %v347, %v344
    %v375 = vpack.c.b16 %v351, %v348
    %v376 = vpack.c.b16 %v352, %v349
    %v377 = vpack.c.b16 %v353, %v350
    %402 = vmatprep.subr.bf16.mxu0 %v355
    %403 = vmatpush1.bf16.msra.mxu0 %v354
    %404 = vmatprep.subr.bf16.mxu0 %v358
    %405 = vmatpush1.bf16.msra.mxu0 %v357
    %406 = vmatprep.subr.bf16.mxu0 %v361
    %407 = vmatpush1.bf16.msra.mxu0 %v360
    %408 = vmatprep.subr.bf16.mxu0 %v364
    %409 = vmatpush1.bf16.msra.mxu0 %v363
    %410 = vmatprep.subr.bf16.mxu0 %v367
    %411 = vmatpush1.bf16.msra.mxu0 %v366
    %412 = vmatprep.subr.bf16.mxu0 %v370
    %413 = vmatpush1.bf16.msra.mxu0 %v369
    %414 = vmatprep.subr.bf16.mxu0 %v373
    %415 = vmatpush1.bf16.msra.mxu0 %v372
    %416 = vmatprep.subr.bf16.mxu0 %v376
    %417 = vmatpush1.bf16.msra.mxu0 %v375
    %418 = vmatprep.subr.bf16.mxu0 0
    %419 = vmatpush1.bf16.msra.mxu0 0
    %420 = vmatprep.subr.bf16.mxu0 0
    %421 = vmatpush1.bf16.msra.mxu0 0
    %422 = vmatprep.subr.bf16.mxu0 0
    %423 = vmatpush1.bf16.msra.mxu0 0
    %424 = vmatprep.subr.bf16.mxu0 0
    %425 = vmatpush1.bf16.msra.mxu0 0
    %426 = vmatprep.subr.bf16.mxu0 0
    %427 = vmatpush1.bf16.msra.mxu0 0
    %428 = vmatprep.subr.bf16.mxu0 0
    %429 = vmatpush1.bf16.msra.mxu0 0
    %430 = vmatprep.subr.bf16.mxu0 0
    %431 = vmatpush1.bf16.msra.mxu0 0
    %432 = vmatprep.subr.bf16.mxu0 0
    %433 = vmatpush1.bf16.msra.mxu0 0
    %434 = vmatprep.mubr.bf16.mxu0 0
    %435 = vmatmul.mubr.bf16.gmra.mrb[0].mxu0 %v224
    %v436 = vpop.f32.mrb[0].mxu0
    %v437 = vadd.f32 %v262, %v436
    %v438 = vpop.f32.mrb[0].mxu0
    %v439 = vadd.f32 %v266, %v438
    %v440 = vpop.f32.mrb[0].mxu0
    %v441 = vadd.f32 %v262, %v440
    %v442 = vpop.f32.mrb[0].mxu0
    %v443 = vadd.f32 %v266, %v442
    %444 = vdwg.mxu0
    %445 = vmatprep.subr.bf16.mxu0 0
    %446 = vmatpush1.bf16.msra.mxu0 %v356
    %447 = vmatprep.subr.bf16.mxu0 0
    %448 = vmatpush1.bf16.msra.mxu0 %v359
    %449 = vmatprep.subr.bf16.mxu0 0
    %450 = vmatpush1.bf16.msra.mxu0 %v362
    %451 = vmatprep.subr.bf16.mxu0 0
    %452 = vmatpush1.bf16.msra.mxu0 %v365
    %453 = vmatprep.subr.bf16.mxu0 0
    %454 = vmatpush1.bf16.msra.mxu0 %v368
    %455 = vmatprep.subr.bf16.mxu0 0
    %456 = vmatpush1.bf16.msra.mxu0 %v371
    %457 = vmatprep.subr.bf16.mxu0 0
    %458 = vmatpush1.bf16.msra.mxu0 %v374
    %459 = vmatprep.subr.bf16.mxu0 0
    %460 = vmatpush1.bf16.msra.mxu0 %v377
    %461 = vmatprep.subr.bf16.mxu0 0
    %462 = vmatpush1.bf16.msra.mxu0 0
    %463 = vmatprep.subr.bf16.mxu0 0
    %464 = vmatpush1.bf16.msra.mxu0 0
    %465 = vmatprep.subr.bf16.mxu0 0
    %466 = vmatpush1.bf16.msra.mxu0 0
    %467 = vmatprep.subr.bf16.mxu0 0
    %468 = vmatpush1.bf16.msra.mxu0 0
    %469 = vmatprep.subr.bf16.mxu0 0
    %470 = vmatpush1.bf16.msra.mxu0 0
    %471 = vmatprep.subr.bf16.mxu0 0
    %472 = vmatpush1.bf16.msra.mxu0 0
    %473 = vmatprep.subr.bf16.mxu0 0
    %474 = vmatpush1.bf16.msra.mxu0 0
    %475 = vmatprep.subr.bf16.mxu0 0
    %476 = vmatpush1.bf16.msra.mxu0 0
    %477 = vmatprep.mubr.bf16.mxu0 0
    %478 = vmatmul.mubr.bf16.gmra.mrb[0].mxu0 %v224
    %v479 = vpop.f32.mrb[0].mxu0
    %v480 = vadd.f32 %v270, %v479
    %v481 = vpop.f32.mrb[0].mxu0
    %v482 = vpop.f32.mrb[0].mxu0
    %v483 = vadd.f32 %v270, %v482
    %v484 = vpop.f32.mrb[0].mxu0
    %485 = vdwg.mxu0
    %v486 = vpack.c.bf16 %v441, %v437
    %v487 = vpack.c.bf16 %v443, %v439
    %v488 = vpack.c.bf16 %v483, %v480
    %v489 = vld [vmem:[#allocation11] sm:$0xf]
    %v490 = vld [vmem:[#allocation11 + $0x4] sm:$0xf]
    %v491 = vld [vmem:[#allocation11 + $0x8] sm:$0xf]
    %v492 = vld [vmem:[#allocation11 + $0xc] sm:$0xf]
    %v493 = vld [vmem:[#allocation11 + $0x10] sm:$0xf]
    %v494 = vld [vmem:[#allocation11 + $0x14] sm:$0xf]
    %v495 = vld [vmem:[#allocation11 + $0x18] sm:$0xf]
    %v496 = vld [vmem:[#allocation11 + $0x1c] sm:$0xf]
    %v497 = vld [vmem:[#allocation11 + $0x20] sm:$0xf]
    %v498 = vld [vmem:[#allocation11 + $0x24] sm:$0xf]
    %v499 = vld [vmem:[#allocation11 + $0x28] sm:$0xf]
    %v500 = vld [vmem:[#allocation11 + $0x2c] sm:$0xf]
    %v501 = vld [vmem:[#allocation11 + $0x30] sm:$0xf]
    %v502 = vld [vmem:[#allocation11 + $0x34] sm:$0xf]
    %v503 = vld [vmem:[#allocation11 + $0x38] sm:$0xf]
    %v504 = vld [vmem:[#allocation11 + $0x3c] sm:$0xf]
    %vm505 = vcmask 261120
    %v507 = vsel %vm505, %v486, 0
    %v510 = vsel %vm505, %v487, 0
    %512 = vmatprep.subr.bf16.mxu0 0
    %513 = vmatpush1.bf16.xpose.msra.mxu0 %v510
    %514 = vmatprep.subr.bf16.mxu0 0
    %515 = vmatpush1.bf16.xpose.msra.mxu0 0
    %516 = vmatprep.subr.bf16.mxu0 0
    %517 = vmatpush1.bf16.xpose.msra.mxu0 0
    %518 = vmatprep.subr.bf16.mxu0 0
    %519 = vmatpush1.bf16.xpose.msra.mxu0 0
    %520 = vmatprep.subr.bf16.mxu0 0
    %521 = vmatpush1.bf16.xpose.msra.mxu0 0
    %522 = vmatprep.subr.bf16.mxu0 0
    %523 = vmatpush1.bf16.xpose.msra.mxu0 0
    %524 = vmatprep.subr.bf16.mxu0 0
    %525 = vmatpush1.bf16.xpose.msra.mxu0 0
    %526 = vmatprep.subr.bf16.mxu0 0
    %527 = vmatpush1.bf16.xpose.msra.mxu0 0
    %528 = vmatprep.subr.bf16.mxu0 0
    %529 = vmatpush1.bf16.xpose.msra.mxu0 0
    %530 = vmatprep.subr.bf16.mxu0 0
    %531 = vmatpush1.bf16.xpose.msra.mxu0 0
    %532 = vmatprep.subr.bf16.mxu0 0
    %533 = vmatpush1.bf16.xpose.msra.mxu0 0
    %534 = vmatprep.subr.bf16.mxu0 0
    %535 = vmatpush1.bf16.xpose.msra.mxu0 0
    %536 = vmatprep.subr.bf16.mxu0 0
    %537 = vmatpush1.bf16.xpose.msra.mxu0 0
    %538 = vmatprep.subr.bf16.mxu0 0
    %539 = vmatpush1.bf16.xpose.msra.mxu0 0
    %540 = vmatprep.subr.bf16.mxu0 0
    %541 = vmatpush1.bf16.xpose.msra.mxu0 0
    %542 = vmatprep.subr.bf16.mxu0 0
    %543 = vmatpush1.bf16.xpose.msra.mxu0 0
    %544 = vmatprep.mubr.bf16.mxu0 0
    %545 = vmatmul.mubr.bf16.gmra.mrb[0].mxu0 %v507
    %v546 = vpop.f32.mrb[0].mxu0
    %v547 = vadd.f32 %v179, %v546
    %v548 = vpop.f32.mrb[0].mxu0
    %v549 = vpop.f32.mrb[0].mxu0
    %v550 = vadd.f32 %v180, %v549
    %v551 = vpop.f32.mrb[0].mxu0
    %552 = vdwg.mxu0
    %vm553 = vcmask 130048
    %v554 = vsel %vm553, %v547, -inf
    %555 = vmax.xlane.f32.xlu0 %v554
    %v556 = vpop.xlane.xlu0 %555
    %v557 = vsel %vm553, %v550, -inf
    %558 = vmax.xlane.f32.xlu0 %v557
    %v559 = vpop.xlane.xlu0 %558
    %v560 = vsub.f32 %v547, %v556
    %v561 = vsub.f32 %v550, %v559
    %v562 = vmul.f32 %v560, 1.442695
    %v563 = vpow.pop %v562
    %v564 = vmul.f32 %v561, 1.442695
    %v565 = vpow.pop %v564
    %v566 = vsel %vm553, %v563, 0.0
    %567 = vadd.xlane.f32.xlu0 %v566
    %v568 = vpop.xlane.xlu0 %567
    %v569 = vsel %vm553, %v565, 0.0
    %570 = vadd.xlane.f32.xlu0 %v569
    %v571 = vpop.xlane.xlu0 %570
    %v572 = vrcp.pop %v568
    %v573 = vrcp.pop %v571
    %v574 = vmul.f32 %v563, %v572
    %v575 = vmul.f32 %v565, %v573
    %v576 = vpack.c.bf16 %v575, %v574
    %v578 = vsel %vm553, %v576, 0
    %580 = vmatprep.subr.bf16.mxu0 0
    %581 = vmatpush1.bf16.msra.mxu0 %v488
    %582 = vmatprep.subr.bf16.mxu0 0
    %583 = vmatpush1.bf16.msra.mxu0 0
    %584 = vmatprep.subr.bf16.mxu0 0
    %585 = vmatpush1.bf16.msra.mxu0 0
    %586 = vmatprep.subr.bf16.mxu0 0
    %587 = vmatpush1.bf16.msra.mxu0 0
    %588 = vmatprep.subr.bf16.mxu0 0
    %589 = vmatpush1.bf16.msra.mxu0 0
    %590 = vmatprep.subr.bf16.mxu0 0
    %591 = vmatpush1.bf16.msra.mxu0 0
    %592 = vmatprep.subr.bf16.mxu0 0
    %593 = vmatpush1.bf16.msra.mxu0 0
    %594 = vmatprep.subr.bf16.mxu0 0
    %595 = vmatpush1.bf16.msra.mxu0 0
    %596 = vmatprep.subr.bf16.mxu0 0
    %597 = vmatpush1.bf16.msra.mxu0 0
    %598 = vmatprep.subr.bf16.mxu0 0
    %599 = vmatpush1.bf16.msra.mxu0 0
    %600 = vmatprep.subr.bf16.mxu0 0
    %601 = vmatpush1.bf16.msra.mxu0 0
    %602 = vmatprep.subr.bf16.mxu0 0
    %603 = vmatpush1.bf16.msra.mxu0 0
    %604 = vmatprep.subr.bf16.mxu0 0
    %605 = vmatpush1.bf16.msra.mxu0 0
    %606 = vmatprep.subr.bf16.mxu0 0
    %607 = vmatpush1.bf16.msra.mxu0 0
    %608 = vmatprep.subr.bf16.mxu0 0
    %609 = vmatpush1.bf16.msra.mxu0 0
    %610 = vmatprep.subr.bf16.mxu0 0
    %611 = vmatpush1.bf16.msra.mxu0 0
    %612 = vmatprep.mubr.bf16.mxu0 0
    %613 = vmatmul.mubr.bf16.gmra.mrb[0].mxu0 %v578
    %v614 = vpop.f32.mrb[0].mxu0
    %v615 = vadd.f32 0.0, %v614
    %v616 = vpop.f32.mrb[0].mxu0
    %v617 = vpop.f32.mrb[0].mxu0
    %v618 = vadd.f32 0.0, %v617
    %v619 = vpop.f32.mrb[0].mxu0
    %620 = vdwg.mxu0
    %v621 = vpack.c.bf16 %v618, %v615
    %623 = vrot.lane.b32.xlu0 %v486, 96
    %v624 = vpop.permute.xlu0 %623
    %626 = vrot.lane.b32.xlu0 %v487, 96
    %v627 = vpop.permute.xlu0 %626
    %v629 = vsel %vm505, %v624, 0
    %v632 = vsel %vm505, %v627, 0
    %634 = vmatprep.subr.bf16.mxu0 0
    %635 = vmatpush1.bf16.xpose.msra.mxu0 %v632
    %636 = vmatprep.subr.bf16.mxu0 0
    %637 = vmatpush1.bf16.xpose.msra.mxu0 0
    %638 = vmatprep.subr.bf16.mxu0 0
    %639 = vmatpush1.bf16.xpose.msra.mxu0 0
    %640 = vmatprep.subr.bf16.mxu0 0
    %641 = vmatpush1.bf16.xpose.msra.mxu0 0
    %642 = vmatprep.subr.bf16.mxu0 0
    %643 = vmatpush1.bf16.xpose.msra.mxu0 0
    %644 = vmatprep.subr.bf16.mxu0 0
    %645 = vmatpush1.bf16.xpose.msra.mxu0 0
    %646 = vmatprep.subr.bf16.mxu0 0
    %647 = vmatpush1.bf16.xpose.msra.mxu0 0
    %648 = vmatprep.subr.bf16.mxu0 0
    %649 = vmatpush1.bf16.xpose.msra.mxu0 0
    %650 = vmatprep.subr.bf16.mxu0 0
    %651 = vmatpush1.bf16.xpose.msra.mxu0 0
    %652 = vmatprep.subr.bf16.mxu0 0
    %653 = vmatpush1.bf16.xpose.msra.mxu0 0
    %654 = vmatprep.subr.bf16.mxu0 0
    %655 = vmatpush1.bf16.xpose.msra.mxu0 0
    %656 = vmatprep.subr.bf16.mxu0 0
    %657 = vmatpush1.bf16.xpose.msra.mxu0 0
    %658 = vmatprep.subr.bf16.mxu0 0
    %659 = vmatpush1.bf16.xpose.msra.mxu0 0
    %660 = vmatprep.subr.bf16.mxu0 0
    %661 = vmatpush1.bf16.xpose.msra.mxu0 0
    %662 = vmatprep.subr.bf16.mxu0 0
    %663 = vmatpush1.bf16.xpose.msra.mxu0 0
    %664 = vmatprep.subr.bf16.mxu0 0
    %665 = vmatpush1.bf16.xpose.msra.mxu0 0
    %666 = vmatprep.mubr.bf16.mxu0 0
    %667 = vmatmul.mubr.bf16.gmra.mrb[0].mxu0 %v629
    %v668 = vpop.f32.mrb[0].mxu0
    %v669 = vadd.f32 %v179, %v668
    %v670 = vpop.f32.mrb[0].mxu0
    %v671 = vpop.f32.mrb[0].mxu0
    %v672 = vadd.f32 %v180, %v671
    %v673 = vpop.f32.mrb[0].mxu0
    %674 = vdwg.mxu0
    %v675 = vsel %vm553, %v669, -inf
    %676 = vmax.xlane.f32.xlu0 %v675
    %v677 = vpop.xlane.xlu0 %676
    %v678 = vsel %vm553, %v672, -inf
    %679 = vmax.xlane.f32.xlu0 %v678
    %v680 = vpop.xlane.xlu0 %679
    %v681 = vsub.f32 %v669, %v677
    %v682 = vsub.f32 %v672, %v680
    %v683 = vmul.f32 %v681, 1.442695
    %v684 = vpow.pop %v683
    %v685 = vmul.f32 %v682, 1.442695
    %v686 = vpow.pop %v685
    %v687 = vsel %vm553, %v684, 0.0
    %688 = vadd.xlane.f32.xlu0 %v687
    %v689 = vpop.xlane.xlu0 %688
    %v690 = vsel %vm553, %v686, 0.0
    %691 = vadd.xlane.f32.xlu0 %v690
    %v692 = vpop.xlane.xlu0 %691
    %v693 = vrcp.pop %v689
    %v694 = vrcp.pop %v692
    %v695 = vmul.f32 %v684, %v693
    %v696 = vmul.f32 %v686, %v694
    %v697 = vpack.c.bf16 %v696, %v695
    %699 = vrot.lane.b32.xlu0 %v488, 96
    %v700 = vpop.permute.xlu0 %699
    %v703 = vsel %vm553, %v697, 0
    %705 = vmatprep.subr.bf16.mxu0 0
    %706 = vmatpush1.bf16.msra.mxu0 %v700
    %707 = vmatprep.subr.bf16.mxu0 0
    %708 = vmatpush1.bf16.msra.mxu0 0
    %709 = vmatprep.subr.bf16.mxu0 0
    %710 = vmatpush1.bf16.msra.mxu0 0
    %711 = vmatprep.subr.bf16.mxu0 0
    %712 = vmatpush1.bf16.msra.mxu0 0
    %713 = vmatprep.subr.bf16.mxu0 0
    %714 = vmatpush1.bf16.msra.mxu0 0
    %715 = vmatprep.subr.bf16.mxu0 0
    %716 = vmatpush1.bf16.msra.mxu0 0
    %717 = vmatprep.subr.bf16.mxu0 0
    %718 = vmatpush1.bf16.msra.mxu0 0
    %719 = vmatprep.subr.bf16.mxu0 0
    %720 = vmatpush1.bf16.msra.mxu0 0
    %721 = vmatprep.subr.bf16.mxu0 0
    %722 = vmatpush1.bf16.msra.mxu0 0
    %723 = vmatprep.subr.bf16.mxu0 0
    %724 = vmatpush1.bf16.msra.mxu0 0
    %725 = vmatprep.subr.bf16.mxu0 0
    %726 = vmatpush1.bf16.msra.mxu0 0
    %727 = vmatprep.subr.bf16.mxu0 0
    %728 = vmatpush1.bf16.msra.mxu0 0
    %729 = vmatprep.subr.bf16.mxu0 0
    %730 = vmatpush1.bf16.msra.mxu0 0
    %731 = vmatprep.subr.bf16.mxu0 0
    %732 = vmatpush1.bf16.msra.mxu0 0
    %733 = vmatprep.subr.bf16.mxu0 0
    %734 = vmatpush1.bf16.msra.mxu0 0
    %735 = vmatprep.subr.bf16.mxu0 0
    %736 = vmatpush1.bf16.msra.mxu0 0
    %737 = vmatprep.mubr.bf16.mxu0 0
    %738 = vmatmul.mubr.bf16.gmra.mrb[0].mxu0 %v703
    %v739 = vpop.f32.mrb[0].mxu0
    %v740 = vadd.f32 0.0, %v739
    %v741 = vpop.f32.mrb[0].mxu0
    %v742 = vpop.f32.mrb[0].mxu0
    %v743 = vadd.f32 0.0, %v742
    %v744 = vpop.f32.mrb[0].mxu0
    %745 = vdwg.mxu0
    %v746 = vpack.c.bf16 %v743, %v740
    %v751 = vunpack.c.l.b16 %v493
    %v752 = vunpack.c.l.b16 %v494
    %v753 = vunpack.c.l.b16 %v495
    %v754 = vunpack.c.l.b16 %v496
    %v755 = vpack.c.b16 %v752, %v751
    %v756 = vpack.c.b16 %v754, %v753
    %v760 = vsel %vm505, %v746, 0
    %762 = vmatprep.subr.bf16.mxu0 0
    %763 = vmatpush1.bf16.msra.mxu0 %v755
    %764 = vmatprep.subr.bf16.mxu0 0
    %765 = vmatpush1.bf16.msra.mxu0 %v756
    %766 = vmatprep.subr.bf16.mxu0 0
    %767 = vmatpush1.bf16.msra.mxu0 0
    %768 = vmatprep.subr.bf16.mxu0 0
    %769 = vmatpush1.bf16.msra.mxu0 0
    %770 = vmatprep.subr.bf16.mxu0 0
    %771 = vmatpush1.bf16.msra.mxu0 0
    %772 = vmatprep.subr.bf16.mxu0 0
    %773 = vmatpush1.bf16.msra.mxu0 0
    %774 = vmatprep.subr.bf16.mxu0 0
    %775 = vmatpush1.bf16.msra.mxu0 0
    %776 = vmatprep.subr.bf16.mxu0 0
    %777 = vmatpush1.bf16.msra.mxu0 0
    %778 = vmatprep.subr.bf16.mxu0 0
    %779 = vmatpush1.bf16.msra.mxu0 0
    %780 = vmatprep.subr.bf16.mxu0 0
    %781 = vmatpush1.bf16.msra.mxu0 0
    %782 = vmatprep.subr.bf16.mxu0 0
    %783 = vmatpush1.bf16.msra.mxu0 0
    %784 = vmatprep.subr.bf16.mxu0 0
    %785 = vmatpush1.bf16.msra.mxu0 0
    %786 = vmatprep.subr.bf16.mxu0 0
    %787 = vmatpush1.bf16.msra.mxu0 0
    %788 = vmatprep.subr.bf16.mxu0 0
    %789 = vmatpush1.bf16.msra.mxu0 0
    %790 = vmatprep.subr.bf16.mxu0 0
    %791 = vmatpush1.bf16.msra.mxu0 0
    %792 = vmatprep.subr.bf16.mxu0 0
    %793 = vmatpush1.bf16.msra.mxu0 0
    %794 = vmatprep.mubr.bf16.mxu0 0
    %795 = vmatmul.mubr.bf16.gmra.mrb[0].mxu0 %v760
    %v796 = vpop.f32.mrb[0].mxu0
    %v797 = vadd.f32 0.0, %v796
    %v798 = vpop.f32.mrb[0].mxu0
    %v799 = vpop.f32.mrb[0].mxu0
    %v800 = vadd.f32 0.0, %v799
    %v801 = vpop.f32.mrb[0].mxu0
    %802 = vdwg.mxu0
    %v807 = vunpack.c.l.b16 %v489
    %v808 = vunpack.c.l.b16 %v490
    %v809 = vunpack.c.l.b16 %v491
    %v810 = vunpack.c.l.b16 %v492
    %v811 = vpack.c.b16 %v808, %v807
    %v812 = vpack.c.b16 %v810, %v809
    %v816 = vsel %vm505, %v621, 0
    %818 = vmatprep.subr.bf16.mxu0 0
    %819 = vmatpush1.bf16.msra.mxu0 %v811
    %820 = vmatprep.subr.bf16.mxu0 0
    %821 = vmatpush1.bf16.msra.mxu0 %v812
    %822 = vmatprep.subr.bf16.mxu0 0
    %823 = vmatpush1.bf16.msra.mxu0 0
    %824 = vmatprep.subr.bf16.mxu0 0
    %825 = vmatpush1.bf16.msra.mxu0 0
    %826 = vmatprep.subr.bf16.mxu0 0
    %827 = vmatpush1.bf16.msra.mxu0 0
    %828 = vmatprep.subr.bf16.mxu0 0
    %829 = vmatpush1.bf16.msra.mxu0 0
    %830 = vmatprep.subr.bf16.mxu0 0
    %831 = vmatpush1.bf16.msra.mxu0 0
    %832 = vmatprep.subr.bf16.mxu0 0
    %833 = vmatpush1.bf16.msra.mxu0 0
    %834 = vmatprep.subr.bf16.mxu0 0
    %835 = vmatpush1.bf16.msra.mxu0 0
    %836 = vmatprep.subr.bf16.mxu0 0
    %837 = vmatpush1.bf16.msra.mxu0 0
    %838 = vmatprep.subr.bf16.mxu0 0
    %839 = vmatpush1.bf16.msra.mxu0 0
    %840 = vmatprep.subr.bf16.mxu0 0
    %841 = vmatpush1.bf16.msra.mxu0 0
    %842 = vmatprep.subr.bf16.mxu0 0
    %843 = vmatpush1.bf16.msra.mxu0 0
    %844 = vmatprep.subr.bf16.mxu0 0
    %845 = vmatpush1.bf16.msra.mxu0 0
    %846 = vmatprep.subr.bf16.mxu0 0
    %847 = vmatpush1.bf16.msra.mxu0 0
    %848 = vmatprep.subr.bf16.mxu0 0
    %849 = vmatpush1.bf16.msra.mxu0 0
    %850 = vmatprep.mubr.bf16.mxu0 0
    %851 = vmatmul.mubr.bf16.gmra.mrb[0].mxu0 %v816
    %v852 = vpop.f32.mrb[0].mxu0
    %v853 = vadd.f32 %v797, %v852
    %v854 = vpop.f32.mrb[0].mxu0
    %v855 = vpop.f32.mrb[0].mxu0
    %v856 = vadd.f32 %v800, %v855
    %v857 = vpop.f32.mrb[0].mxu0
    %858 = vdwg.mxu0
    %859 = vrot.lane.b32.xlu0 %v486, 64
    %v860 = vpop.permute.xlu0 %859
    %861 = vrot.lane.b32.xlu0 %v487, 64
    %v862 = vpop.permute.xlu0 %861
    %v864 = vsel %vm505, %v860, 0
    %v867 = vsel %vm505, %v862, 0
    %869 = vmatprep.subr.bf16.mxu0 0
    %870 = vmatpush1.bf16.xpose.msra.mxu0 %v867
    %871 = vmatprep.subr.bf16.mxu0 0
    %872 = vmatpush1.bf16.xpose.msra.mxu0 0
    %873 = vmatprep.subr.bf16.mxu0 0
    %874 = vmatpush1.bf16.xpose.msra.mxu0 0
    %875 = vmatprep.subr.bf16.mxu0 0
    %876 = vmatpush1.bf16.xpose.msra.mxu0 0
    %877 = vmatprep.subr.bf16.mxu0 0
    %878 = vmatpush1.bf16.xpose.msra.mxu0 0
    %879 = vmatprep.subr.bf16.mxu0 0
    %880 = vmatpush1.bf16.xpose.msra.mxu0 0
    %881 = vmatprep.subr.bf16.mxu0 0
    %882 = vmatpush1.bf16.xpose.msra.mxu0 0
    %883 = vmatprep.subr.bf16.mxu0 0
    %884 = vmatpush1.bf16.xpose.msra.mxu0 0
    %885 = vmatprep.subr.bf16.mxu0 0
    %886 = vmatpush1.bf16.xpose.msra.mxu0 0
    %887 = vmatprep.subr.bf16.mxu0 0
    %888 = vmatpush1.bf16.xpose.msra.mxu0 0
    %889 = vmatprep.subr.bf16.mxu0 0
    %890 = vmatpush1.bf16.xpose.msra.mxu0 0
    %891 = vmatprep.subr.bf16.mxu0 0
    %892 = vmatpush1.bf16.xpose.msra.mxu0 0
    %893 = vmatprep.subr.bf16.mxu0 0
    %894 = vmatpush1.bf16.xpose.msra.mxu0 0
    %895 = vmatprep.subr.bf16.mxu0 0
    %896 = vmatpush1.bf16.xpose.msra.mxu0 0
    %897 = vmatprep.subr.bf16.mxu0 0
    %898 = vmatpush1.bf16.xpose.msra.mxu0 0
    %899 = vmatprep.subr.bf16.mxu0 0
    %900 = vmatpush1.bf16.xpose.msra.mxu0 0
    %901 = vmatprep.mubr.bf16.mxu0 0
    %902 = vmatmul.mubr.bf16.gmra.mrb[0].mxu0 %v864
    %v903 = vpop.f32.mrb[0].mxu0
    %v904 = vadd.f32 %v179, %v903
    %v905 = vpop.f32.mrb[0].mxu0
    %v906 = vpop.f32.mrb[0].mxu0
    %v907 = vadd.f32 %v180, %v906
    %v908 = vpop.f32.mrb[0].mxu0
    %909 = vdwg.mxu0
    %v910 = vsel %vm553, %v904, -inf
    %911 = vmax.xlane.f32.xlu0 %v910
    %v912 = vpop.xlane.xlu0 %911
    %v913 = vsel %vm553, %v907, -inf
    %914 = vmax.xlane.f32.xlu0 %v913
    %v915 = vpop.xlane.xlu0 %914
    %v916 = vsub.f32 %v904, %v912
    %v917 = vsub.f32 %v907, %v915
    %v918 = vmul.f32 %v916, 1.442695
    %v919 = vpow.pop %v918
    %v920 = vmul.f32 %v917, 1.442695
    %v921 = vpow.pop %v920
    %v922 = vsel %vm553, %v919, 0.0
    %923 = vadd.xlane.f32.xlu0 %v922
    %v924 = vpop.xlane.xlu0 %923
    %v925 = vsel %vm553, %v921, 0.0
    %926 = vadd.xlane.f32.xlu0 %v925
    %v927 = vpop.xlane.xlu0 %926
    %v928 = vrcp.pop %v924
    %v929 = vrcp.pop %v927
    %v930 = vmul.f32 %v919, %v928
    %v931 = vmul.f32 %v921, %v929
    %v932 = vpack.c.bf16 %v931, %v930
    %933 = vrot.lane.b32.xlu0 %v488, 64
    %v934 = vpop.permute.xlu0 %933
    %v937 = vsel %vm553, %v932, 0
    %939 = vmatprep.subr.bf16.mxu0 0
    %940 = vmatpush1.bf16.msra.mxu0 %v934
    %941 = vmatprep.subr.bf16.mxu0 0
    %942 = vmatpush1.bf16.msra.mxu0 0
    %943 = vmatprep.subr.bf16.mxu0 0
    %944 = vmatpush1.bf16.msra.mxu0 0
    %945 = vmatprep.subr.bf16.mxu0 0
    %946 = vmatpush1.bf16.msra.mxu0 0
    %947 = vmatprep.subr.bf16.mxu0 0
    %948 = vmatpush1.bf16.msra.mxu0 0
    %949 = vmatprep.subr.bf16.mxu0 0
    %950 = vmatpush1.bf16.msra.mxu0 0
    %951 = vmatprep.subr.bf16.mxu0 0
    %952 = vmatpush1.bf16.msra.mxu0 0
    %953 = vmatprep.subr.bf16.mxu0 0
    %954 = vmatpush1.bf16.msra.mxu0 0
    %955 = vmatprep.subr.bf16.mxu0 0
    %956 = vmatpush1.bf16.msra.mxu0 0
    %957 = vmatprep.subr.bf16.mxu0 0
    %958 = vmatpush1.bf16.msra.mxu0 0
    %959 = vmatprep.subr.bf16.mxu0 0
    %960 = vmatpush1.bf16.msra.mxu0 0
    %961 = vmatprep.subr.bf16.mxu0 0
    %962 = vmatpush1.bf16.msra.mxu0 0
    %963 = vmatprep.subr.bf16.mxu0 0
    %964 = vmatpush1.bf16.msra.mxu0 0
    %965 = vmatprep.subr.bf16.mxu0 0
    %966 = vmatpush1.bf16.msra.mxu0 0
    %967 = vmatprep.subr.bf16.mxu0 0
    %968 = vmatpush1.bf16.msra.mxu0 0
    %969 = vmatprep.subr.bf16.mxu0 0
    %970 = vmatpush1.bf16.msra.mxu0 0
    %971 = vmatprep.mubr.bf16.mxu0 0
    %972 = vmatmul.mubr.bf16.gmra.mrb[0].mxu0 %v937
    %v973 = vpop.f32.mrb[0].mxu0
    %v974 = vadd.f32 0.0, %v973
    %v975 = vpop.f32.mrb[0].mxu0
    %v976 = vpop.f32.mrb[0].mxu0
    %v977 = vadd.f32 0.0, %v976
    %v978 = vpop.f32.mrb[0].mxu0
    %979 = vdwg.mxu0
    %v980 = vpack.c.bf16 %v977, %v974
    %v985 = vunpack.c.l.b16 %v497
    %v986 = vunpack.c.l.b16 %v498
    %v987 = vunpack.c.l.b16 %v499
    %v988 = vunpack.c.l.b16 %v500
    %v989 = vpack.c.b16 %v986, %v985
    %v990 = vpack.c.b16 %v988, %v987
    %v994 = vsel %vm505, %v980, 0
    %996 = vmatprep.subr.bf16.mxu0 0
    %997 = vmatpush1.bf16.msra.mxu0 %v989
    %998 = vmatprep.subr.bf16.mxu0 0
    %999 = vmatpush1.bf16.msra.mxu0 %v990
    %1000 = vmatprep.subr.bf16.mxu0 0
    %1001 = vmatpush1.bf16.msra.mxu0 0
    %1002 = vmatprep.subr.bf16.mxu0 0
    %1003 = vmatpush1.bf16.msra.mxu0 0
    %1004 = vmatprep.subr.bf16.mxu0 0
    %1005 = vmatpush1.bf16.msra.mxu0 0
    %1006 = vmatprep.subr.bf16.mxu0 0
    %1007 = vmatpush1.bf16.msra.mxu0 0
    %1008 = vmatprep.subr.bf16.mxu0 0
    %1009 = vmatpush1.bf16.msra.mxu0 0
    %1010 = vmatprep.subr.bf16.mxu0 0
    %1011 = vmatpush1.bf16.msra.mxu0 0
    %1012 = vmatprep.subr.bf16.mxu0 0
    %1013 = vmatpush1.bf16.msra.mxu0 0
    %1014 = vmatprep.subr.bf16.mxu0 0
    %1015 = vmatpush1.bf16.msra.mxu0 0
    %1016 = vmatprep.subr.bf16.mxu0 0
    %1017 = vmatpush1.bf16.msra.mxu0 0
    %1018 = vmatprep.subr.bf16.mxu0 0
    %1019 = vmatpush1.bf16.msra.mxu0 0
    %1020 = vmatprep.subr.bf16.mxu0 0
    %1021 = vmatpush1.bf16.msra.mxu0 0
    %1022 = vmatprep.subr.bf16.mxu0 0
    %1023 = vmatpush1.bf16.msra.mxu0 0
    %1024 = vmatprep.subr.bf16.mxu0 0
    %1025 = vmatpush1.bf16.msra.mxu0 0
    %1026 = vmatprep.subr.bf16.mxu0 0
    %1027 = vmatpush1.bf16.msra.mxu0 0
    %1028 = vmatprep.mubr.bf16.mxu0 0
    %1029 = vmatmul.mubr.bf16.gmra.mrb[0].mxu0 %v994
    %v1030 = vpop.f32.mrb[0].mxu0
    %v1031 = vadd.f32 0.0, %v1030
    %v1032 = vpop.f32.mrb[0].mxu0
    %v1033 = vpop.f32.mrb[0].mxu0
    %v1034 = vadd.f32 0.0, %v1033
    %v1035 = vpop.f32.mrb[0].mxu0
    %1036 = vdwg.mxu0
    %v1037 = vadd.f32 %v853, %v1031
    %v1038 = vadd.f32 %v856, %v1034
    %1039 = vrot.lane.b32.xlu0 %v486, 32
    %v1040 = vpop.permute.xlu0 %1039
    %1041 = vrot.lane.b32.xlu0 %v487, 32
    %v1042 = vpop.permute.xlu0 %1041
    %v1044 = vsel %vm505, %v1040, 0
    %v1047 = vsel %vm505, %v1042, 0
    %1049 = vmatprep.subr.bf16.mxu0 0
    %1050 = vmatpush1.bf16.xpose.msra.mxu0 %v1047
    %1051 = vmatprep.subr.bf16.mxu0 0
    %1052 = vmatpush1.bf16.xpose.msra.mxu0 0
    %1053 = vmatprep.subr.bf16.mxu0 0
    %1054 = vmatpush1.bf16.xpose.msra.mxu0 0
    %1055 = vmatprep.subr.bf16.mxu0 0
    %1056 = vmatpush1.bf16.xpose.msra.mxu0 0
    %1057 = vmatprep.subr.bf16.mxu0 0
    %1058 = vmatpush1.bf16.xpose.msra.mxu0 0
    %1059 = vmatprep.subr.bf16.mxu0 0
    %1060 = vmatpush1.bf16.xpose.msra.mxu0 0
    %1061 = vmatprep.subr.bf16.mxu0 0
    %1062 = vmatpush1.bf16.xpose.msra.mxu0 0
    %1063 = vmatprep.subr.bf16.mxu0 0
    %1064 = vmatpush1.bf16.xpose.msra.mxu0 0
    %1065 = vmatprep.subr.bf16.mxu0 0
    %1066 = vmatpush1.bf16.xpose.msra.mxu0 0
    %1067 = vmatprep.subr.bf16.mxu0 0
    %1068 = vmatpush1.bf16.xpose.msra.mxu0 0
    %1069 = vmatprep.subr.bf16.mxu0 0
    %1070 = vmatpush1.bf16.xpose.msra.mxu0 0
    %1071 = vmatprep.subr.bf16.mxu0 0
    %1072 = vmatpush1.bf16.xpose.msra.mxu0 0
    %1073 = vmatprep.subr.bf16.mxu0 0
    %1074 = vmatpush1.bf16.xpose.msra.mxu0 0
    %1075 = vmatprep.subr.bf16.mxu0 0
    %1076 = vmatpush1.bf16.xpose.msra.mxu0 0
    %1077 = vmatprep.subr.bf16.mxu0 0
    %1078 = vmatpush1.bf16.xpose.msra.mxu0 0
    %1079 = vmatprep.subr.bf16.mxu0 0
    %1080 = vmatpush1.bf16.xpose.msra.mxu0 0
    %1081 = vmatprep.mubr.bf16.mxu0 0
    %1082 = vmatmul.mubr.bf16.gmra.mrb[0].mxu0 %v1044
    %v1083 = vpop.f32.mrb[0].mxu0
    %v1084 = vadd.f32 %v179, %v1083
    %v1085 = vpop.f32.mrb[0].mxu0
    %v1086 = vpop.f32.mrb[0].mxu0
    %v1087 = vadd.f32 %v180, %v1086
    %v1088 = vpop.f32.mrb[0].mxu0
    %1089 = vdwg.mxu0
    %v1090 = vsel %vm553, %v1084, -inf
    %1091 = vmax.xlane.f32.xlu0 %v1090
    %v1092 = vpop.xlane.xlu0 %1091
    %v1093 = vsel %vm553, %v1087, -inf
    %1094 = vmax.xlane.f32.xlu0 %v1093
    %v1095 = vpop.xlane.xlu0 %1094
    %v1096 = vsub.f32 %v1084, %v1092
    %v1097 = vsub.f32 %v1087, %v1095
    %v1098 = vmul.f32 %v1096, 1.442695
    %v1099 = vpow.pop %v1098
    %v1100 = vmul.f32 %v1097, 1.442695
    %v1101 = vpow.pop %v1100
    %v1102 = vsel %vm553, %v1099, 0.0
    %1103 = vadd.xlane.f32.xlu0 %v1102
    %v1104 = vpop.xlane.xlu0 %1103
    %v1105 = vsel %vm553, %v1101, 0.0
    %1106 = vadd.xlane.f32.xlu0 %v1105
    %v1107 = vpop.xlane.xlu0 %1106
    %v1108 = vrcp.pop %v1104
    %v1109 = vrcp.pop %v1107
    %v1110 = vmul.f32 %v1099, %v1108
    %v1111 = vmul.f32 %v1101, %v1109
    %v1112 = vpack.c.bf16 %v1111, %v1110
    %1113 = vrot.lane.b32.xlu0 %v488, 32
    %v1114 = vpop.permute.xlu0 %1113
    %v1117 = vsel %vm553, %v1112, 0
    %1119 = vmatprep.subr.bf16.mxu0 0
    %1120 = vmatpush1.bf16.msra.mxu0 %v1114
    %1121 = vmatprep.subr.bf16.mxu0 0
    %1122 = vmatpush1.bf16.msra.mxu0 0
    %1123 = vmatprep.subr.bf16.mxu0 0
    %1124 = vmatpush1.bf16.msra.mxu0 0
    %1125 = vmatprep.subr.bf16.mxu0 0
    %1126 = vmatpush1.bf16.msra.mxu0 0
    %1127 = vmatprep.subr.bf16.mxu0 0
    %1128 = vmatpush1.bf16.msra.mxu0 0
    %1129 = vmatprep.subr.bf16.mxu0 0
    %1130 = vmatpush1.bf16.msra.mxu0 0
    %1131 = vmatprep.subr.bf16.mxu0 0
    %1132 = vmatpush1.bf16.msra.mxu0 0
    %1133 = vmatprep.subr.bf16.mxu0 0
    %1134 = vmatpush1.bf16.msra.mxu0 0
    %1135 = vmatprep.subr.bf16.mxu0 0
    %1136 = vmatpush1.bf16.msra.mxu0 0
    %1137 = vmatprep.subr.bf16.mxu0 0
    %1138 = vmatpush1.bf16.msra.mxu0 0
    %1139 = vmatprep.subr.bf16.mxu0 0
    %1140 = vmatpush1.bf16.msra.mxu0 0
    %1141 = vmatprep.subr.bf16.mxu0 0
    %1142 = vmatpush1.bf16.msra.mxu0 0
    %1143 = vmatprep.subr.bf16.mxu0 0
    %1144 = vmatpush1.bf16.msra.mxu0 0
    %1145 = vmatprep.subr.bf16.mxu0 0
    %1146 = vmatpush1.bf16.msra.mxu0 0
    %1147 = vmatprep.subr.bf16.mxu0 0
    %1148 = vmatpush1.bf16.msra.mxu0 0
    %1149 = vmatprep.subr.bf16.mxu0 0
    %1150 = vmatpush1.bf16.msra.mxu0 0
    %1151 = vmatprep.mubr.bf16.mxu0 0
    %1152 = vmatmul.mubr.bf16.gmra.mrb[0].mxu0 %v1117
    %v1153 = vpop.f32.mrb[0].mxu0
    %v1154 = vadd.f32 0.0, %v1153
    %v1155 = vpop.f32.mrb[0].mxu0
    %v1156 = vpop.f32.mrb[0].mxu0
    %v1157 = vadd.f32 0.0, %v1156
    %v1158 = vpop.f32.mrb[0].mxu0
    %1159 = vdwg.mxu0
    %v1160 = vpack.c.bf16 %v1157, %v1154
    %v1165 = vunpack.c.l.b16 %v501
    %v1166 = vunpack.c.l.b16 %v502
    %v1167 = vunpack.c.l.b16 %v503
    %v1168 = vunpack.c.l.b16 %v504
    %v1169 = vpack.c.b16 %v1166, %v1165
    %v1170 = vpack.c.b16 %v1168, %v1167
    %v1174 = vsel %vm505, %v1160, 0
    %1176 = vmatprep.subr.bf16.mxu0 0
    %1177 = vmatpush1.bf16.msra.mxu0 %v1169
    %1178 = vmatprep.subr.bf16.mxu0 0
    %1179 = vmatpush1.bf16.msra.mxu0 %v1170
    %1180 = vmatprep.subr.bf16.mxu0 0
    %1181 = vmatpush1.bf16.msra.mxu0 0
    %1182 = vmatprep.subr.bf16.mxu0 0
    %1183 = vmatpush1.bf16.msra.mxu0 0
    %1184 = vmatprep.subr.bf16.mxu0 0
    %1185 = vmatpush1.bf16.msra.mxu0 0
    %1186 = vmatprep.subr.bf16.mxu0 0
    %1187 = vmatpush1.bf16.msra.mxu0 0
    %1188 = vmatprep.subr.bf16.mxu0 0
    %1189 = vmatpush1.bf16.msra.mxu0 0
    %1190 = vmatprep.subr.bf16.mxu0 0
    %1191 = vmatpush1.bf16.msra.mxu0 0
    %1192 = vmatprep.subr.bf16.mxu0 0
    %1193 = vmatpush1.bf16.msra.mxu0 0
    %1194 = vmatprep.subr.bf16.mxu0 0
    %1195 = vmatpush1.bf16.msra.mxu0 0
    %1196 = vmatprep.subr.bf16.mxu0 0
    %1197 = vmatpush1.bf16.msra.mxu0 0
    %1198 = vmatprep.subr.bf16.mxu0 0
    %1199 = vmatpush1.bf16.msra.mxu0 0
    %1200 = vmatprep.subr.bf16.mxu0 0
    %1201 = vmatpush1.bf16.msra.mxu0 0
    %1202 = vmatprep.subr.bf16.mxu0 0
    %1203 = vmatpush1.bf16.msra.mxu0 0
    %1204 = vmatprep.subr.bf16.mxu0 0
    %1205 = vmatpush1.bf16.msra.mxu0 0
    %1206 = vmatprep.subr.bf16.mxu0 0
    %1207 = vmatpush1.bf16.msra.mxu0 0
    %1208 = vmatprep.mubr.bf16.mxu0 0
    %1209 = vmatmul.mubr.bf16.gmra.mrb[0].mxu0 %v1174
    %v1210 = vpop.f32.mrb[0].mxu0
    %v1211 = vadd.f32 0.0, %v1210
    %v1212 = vpop.f32.mrb[0].mxu0
    %v1213 = vpop.f32.mrb[0].mxu0
    %v1214 = vadd.f32 0.0, %v1213
    %v1215 = vpop.f32.mrb[0].mxu0
    %1216 = vdwg.mxu0
    %v1217 = vadd.f32 %v1037, %v1211
    %v1218 = vadd.f32 %v1038, %v1214
    %v1219 = vld [vmem:[%s7] sm:$0x1]
    %v1221 = vlaneseq
    %v1222 = vshrl.u32 %v1221, 7
    %v1223 = vsub.s32 0, %v1222
    %v1224 = vrot.slane %v1219, %v1223
    %v1226 = vadd.f32 %v1217, %v1224
    %v1227 = vadd.f32 %v1218, %v1224
    %v1228 = vadd.f32 %v1226, %v222
    %v1229 = vadd.f32 %v1227, %v223
    %v1230 = vld [vmem:[%s8] sm:$0x1]
    %v1231 = vld [vmem:[%s9] sm:$0x1]
    %1232 = vadd.xlane.f32.xlu0 %v1228
    %v1233 = vpop.xlane.xlu0 %1232
    %1234 = vadd.xlane.f32.xlu0 %v1229
    %v1235 = vpop.xlane.xlu0 %1234
    %v1236 = vmul.f32 %v1233, %v189
    %v1237 = vmul.f32 %v1235, %v189
    %v1238 = vsub.f32 %v1228, %v1236
    %v1239 = vsub.f32 %v1229, %v1237
    %v1240 = vmul.f32 %v1238, %v1238
    %v1241 = vmul.f32 %v1239, %v1239
    %1242 = vadd.xlane.f32.xlu0 %v1240
    %v1243 = vpop.xlane.xlu0 %1242
    %1244 = vadd.xlane.f32.xlu0 %v1241
    %v1245 = vpop.xlane.xlu0 %1244
    %v1246 = vmul.f32 %v1243, %v189
    %v1247 = vmul.f32 %v1245, %v189
    %v1248 = vadd.f32 %v1246, 1e-12
    %v1249 = vadd.f32 %v1247, 1e-12
    %v1250 = vrsqrt.pop %v1248
    %v1251 = vrsqrt.pop %v1249
    %v1252 = vmul.f32 %v1238, %v1250
    %v1253 = vmul.f32 %v1239, %v1251
    %v1255 = vlaneseq
    %v1256 = vshrl.u32 %v1255, 7
    %v1257 = vsub.s32 0, %v1256
    %v1258 = vrot.slane %v1230, %v1257
    %v1260 = vmul.f32 %v1252, %v1258
    %v1261 = vmul.f32 %v1253, %v1258
    %v1263 = vlaneseq
    %v1264 = vshrl.u32 %v1263, 7
    %v1265 = vsub.s32 0, %v1264
    %v1266 = vrot.slane %v1231, %v1265
    %v1268 = vadd.f32 %v1260, %v1266
    %v1269 = vadd.f32 %v1261, %v1266
    %v1270 = vpack.c.bf16 %v1269, %v1268
    %v1271 = vld [vmem:[#allocation13] sm:$0xff]
    %v1272 = vld [vmem:[#allocation13 + $0x8] sm:$0xff]
    %v1273 = vld [vmem:[#allocation13 + $0x10] sm:$0xff]
    %v1274 = vld [vmem:[#allocation13 + $0x18] sm:$0xff]
    %v1275 = vld [vmem:[#allocation13 + $0x20] sm:$0xff]
    %v1276 = vld [vmem:[#allocation13 + $0x28] sm:$0xff]
    %v1277 = vld [vmem:[#allocation13 + $0x30] sm:$0xff]
    %v1278 = vld [vmem:[#allocation13 + $0x38] sm:$0xff]
    %v1279 = vld [vmem:[#allocation13 + $0x40] sm:$0xff]
    %v1280 = vld [vmem:[#allocation13 + $0x48] sm:$0xff]
    %v1281 = vld [vmem:[#allocation13 + $0x50] sm:$0xff]
    %v1282 = vld [vmem:[#allocation13 + $0x58] sm:$0xff]
    %v1283 = vld [vmem:[#allocation13 + $0x60] sm:$0xff]
    %v1284 = vld [vmem:[#allocation13 + $0x68] sm:$0xff]
    %v1285 = vld [vmem:[#allocation13 + $0x70] sm:$0xff]
    %v1286 = vld [vmem:[#allocation13 + $0x78] sm:$0xff]
    %v1287 = vld [vmem:[#allocation13 + $0x80] sm:$0xff]
    %v1288 = vld [vmem:[#allocation13 + $0x88] sm:$0xff]
    %v1289 = vld [vmem:[#allocation13 + $0x90] sm:$0xff]
    %v1290 = vld [vmem:[#allocation13 + $0x98] sm:$0xff]
    %v1291 = vld [vmem:[#allocation13 + $0xa0] sm:$0xff]
    %v1292 = vld [vmem:[#allocation13 + $0xa8] sm:$0xff]
    %v1293 = vld [vmem:[#allocation13 + $0xb0] sm:$0xff]
    %v1294 = vld [vmem:[#allocation13 + $0xb8] sm:$0xff]
    %v1295 = vld [vmem:[#allocation13 + $0xc0] sm:$0xff]
    %v1296 = vld [vmem:[#allocation13 + $0xc8] sm:$0xff]
    %v1297 = vld [vmem:[#allocation13 + $0xd0] sm:$0xff]
    %v1298 = vld [vmem:[#allocation13 + $0xd8] sm:$0xff]
    %v1299 = vld [vmem:[#allocation13 + $0xe0] sm:$0xff]
    %v1300 = vld [vmem:[#allocation13 + $0xe8] sm:$0xff]
    %v1301 = vld [vmem:[#allocation13 + $0xf0] sm:$0xff]
    %v1302 = vld [vmem:[#allocation13 + $0xf8] sm:$0xff]
    %v1303 = vld [vmem:[%s11] sm:$0xf]
    %v1305 = vlaneseq
    %v1306 = vshrl.u32 %v1305, 7
    %v1307 = vsub.s32 0, %v1306
    %v1308 = vrot.slane %v1303, %v1307
    %v1309 = vlaneseq
    %v1310 = vshrl.u32 %v1309, 7
    %v1311 = vsub.s32 1, %v1310
    %v1312 = vrot.slane %v1303, %v1311
    %v1313 = vlaneseq
    %v1314 = vshrl.u32 %v1313, 7
    %v1315 = vsub.s32 2, %v1314
    %v1316 = vrot.slane %v1303, %v1315
    %v1317 = vlaneseq
    %v1318 = vshrl.u32 %v1317, 7
    %v1319 = vsub.s32 3, %v1318
    %v1320 = vrot.slane %v1303, %v1319
    %v1357 = vunpack.c.l.b16 %v1271
    %v1358 = vunpack.c.h.b16 %v1271
    %v1359 = vunpack.c.l.b16 %v1272
    %v1360 = vunpack.c.h.b16 %v1272
    %v1361 = vunpack.c.l.b16 %v1273
    %v1362 = vunpack.c.h.b16 %v1273
    %v1363 = vunpack.c.l.b16 %v1274
    %v1364 = vunpack.c.h.b16 %v1274
    %v1365 = vunpack.c.l.b16 %v1275
    %v1366 = vunpack.c.h.b16 %v1275
    %v1367 = vunpack.c.l.b16 %v1276
    %v1368 = vunpack.c.h.b16 %v1276
    %v1369 = vunpack.c.l.b16 %v1277
    %v1370 = vunpack.c.h.b16 %v1277
    %v1371 = vunpack.c.l.b16 %v1278
    %v1372 = vunpack.c.h.b16 %v1278
    %v1373 = vunpack.c.l.b16 %v1279
    %v1374 = vunpack.c.h.b16 %v1279
    %v1375 = vunpack.c.l.b16 %v1280
    %v1376 = vunpack.c.h.b16 %v1280
    %v1377 = vunpack.c.l.b16 %v1281
    %v1378 = vunpack.c.h.b16 %v1281
    %v1379 = vunpack.c.l.b16 %v1282
    %v1380 = vunpack.c.h.b16 %v1282
    %v1381 = vunpack.c.l.b16 %v1283
    %v1382 = vunpack.c.h.b16 %v1283
    %v1383 = vunpack.c.l.b16 %v1284
    %v1384 = vunpack.c.h.b16 %v1284
    %v1385 = vunpack.c.l.b16 %v1285
    %v1386 = vunpack.c.h.b16 %v1285
    %v1387 = vunpack.c.l.b16 %v1286
    %v1388 = vunpack.c.h.b16 %v1286
    %v1389 = vunpack.c.l.b16 %v1287
    %v1390 = vunpack.c.h.b16 %v1287
    %v1391 = vunpack.c.l.b16 %v1288
    %v1392 = vunpack.c.h.b16 %v1288
    %v1393 = vunpack.c.l.b16 %v1289
    %v1394 = vunpack.c.h.b16 %v1289
    %v1395 = vunpack.c.l.b16 %v1290
    %v1396 = vunpack.c.h.b16 %v1290
    %v1397 = vunpack.c.l.b16 %v1291
    %v1398 = vunpack.c.h.b16 %v1291
    %v1399 = vunpack.c.l.b16 %v1292
    %v1400 = vunpack.c.h.b16 %v1292
    %v1401 = vunpack.c.l.b16 %v1293
    %v1402 = vunpack.c.h.b16 %v1293
    %v1403 = vunpack.c.l.b16 %v1294
    %v1404 = vunpack.c.h.b16 %v1294
    %v1405 = vunpack.c.l.b16 %v1295
    %v1406 = vunpack.c.h.b16 %v1295
    %v1407 = vunpack.c.l.b16 %v1296
    %v1408 = vunpack.c.h.b16 %v1296
    %v1409 = vunpack.c.l.b16 %v1297
    %v1410 = vunpack.c.h.b16 %v1297
    %v1411 = vunpack.c.l.b16 %v1298
    %v1412 = vunpack.c.h.b16 %v1298
    %v1413 = vunpack.c.l.b16 %v1299
    %v1414 = vunpack.c.h.b16 %v1299
    %v1415 = vunpack.c.l.b16 %v1300
    %v1416 = vunpack.c.h.b16 %v1300
    %v1417 = vunpack.c.l.b16 %v1301
    %v1418 = vunpack.c.h.b16 %v1301
    %v1419 = vunpack.c.l.b16 %v1302
    %v1420 = vunpack.c.h.b16 %v1302
    %v1421 = vpack.c.b16 %v1361, %v1357
    %v1422 = vpack.c.b16 %v1362, %v1358
    %v1423 = vpack.c.b16 %v1363, %v1359
    %v1424 = vpack.c.b16 %v1364, %v1360
    %v1425 = vpack.c.b16 %v1369, %v1365
    %v1426 = vpack.c.b16 %v1370, %v1366
    %v1427 = vpack.c.b16 %v1371, %v1367
    %v1428 = vpack.c.b16 %v1372, %v1368
    %v1429 = vpack.c.b16 %v1377, %v1373
    %v1430 = vpack.c.b16 %v1378, %v1374
    %v1431 = vpack.c.b16 %v1379, %v1375
    %v1432 = vpack.c.b16 %v1380, %v1376
    %v1433 = vpack.c.b16 %v1385, %v1381
    %v1434 = vpack.c.b16 %v1386, %v1382
    %v1435 = vpack.c.b16 %v1387, %v1383
    %v1436 = vpack.c.b16 %v1388, %v1384
    %v1437 = vpack.c.b16 %v1393, %v1389
    %v1438 = vpack.c.b16 %v1394, %v1390
    %v1439 = vpack.c.b16 %v1395, %v1391
    %v1440 = vpack.c.b16 %v1396, %v1392
    %v1441 = vpack.c.b16 %v1401, %v1397
    %v1442 = vpack.c.b16 %v1402, %v1398
    %v1443 = vpack.c.b16 %v1403, %v1399
    %v1444 = vpack.c.b16 %v1404, %v1400
    %v1445 = vpack.c.b16 %v1409, %v1405
    %v1446 = vpack.c.b16 %v1410, %v1406
    %v1447 = vpack.c.b16 %v1411, %v1407
    %v1448 = vpack.c.b16 %v1412, %v1408
    %v1449 = vpack.c.b16 %v1417, %v1413
    %v1450 = vpack.c.b16 %v1418, %v1414
    %v1451 = vpack.c.b16 %v1419, %v1415
    %v1452 = vpack.c.b16 %v1420, %v1416
    %1485 = vmatprep.subr.bf16.mxu0 %v1422
    %1486 = vmatpush1.bf16.msra.mxu0 %v1421
    %1487 = vmatprep.subr.bf16.mxu0 %v1426
    %1488 = vmatpush1.bf16.msra.mxu0 %v1425
    %1489 = vmatprep.subr.bf16.mxu0 %v1430
    %1490 = vmatpush1.bf16.msra.mxu0 %v1429
    %1491 = vmatprep.subr.bf16.mxu0 %v1434
    %1492 = vmatpush1.bf16.msra.mxu0 %v1433
    %1493 = vmatprep.subr.bf16.mxu0 %v1438
    %1494 = vmatpush1.bf16.msra.mxu0 %v1437
    %1495 = vmatprep.subr.bf16.mxu0 %v1442
    %1496 = vmatpush1.bf16.msra.mxu0 %v1441
    %1497 = vmatprep.subr.bf16.mxu0 %v1446
    %1498 = vmatpush1.bf16.msra.mxu0 %v1445
    %1499 = vmatprep.subr.bf16.mxu0 %v1450
    %1500 = vmatpush1.bf16.msra.mxu0 %v1449
    %1501 = vmatprep.subr.bf16.mxu0 0
    %1502 = vmatpush1.bf16.msra.mxu0 0
    %1503 = vmatprep.subr.bf16.mxu0 0
    %1504 = vmatpush1.bf16.msra.mxu0 0
    %1505 = vmatprep.subr.bf16.mxu0 0
    %1506 = vmatpush1.bf16.msra.mxu0 0
    %1507 = vmatprep.subr.bf16.mxu0 0
    %1508 = vmatpush1.bf16.msra.mxu0 0
    %1509 = vmatprep.subr.bf16.mxu0 0
    %1510 = vmatpush1.bf16.msra.mxu0 0
    %1511 = vmatprep.subr.bf16.mxu0 0
    %1512 = vmatpush1.bf16.msra.mxu0 0
    %1513 = vmatprep.subr.bf16.mxu0 0
    %1514 = vmatpush1.bf16.msra.mxu0 0
    %1515 = vmatprep.subr.bf16.mxu0 0
    %1516 = vmatpush1.bf16.msra.mxu0 0
    %1517 = vmatprep.mubr.bf16.mxu0 0
    %1518 = vmatmul.mubr.bf16.gmra.mrb[0].mxu0 %v1270
    %v1519 = vpop.f32.mrb[0].mxu0
    %v1520 = vadd.f32 %v1308, %v1519
    %v1521 = vpop.f32.mrb[0].mxu0
    %v1522 = vadd.f32 %v1312, %v1521
    %v1523 = vpop.f32.mrb[0].mxu0
    %v1524 = vadd.f32 %v1308, %v1523
    %v1525 = vpop.f32.mrb[0].mxu0
    %v1526 = vadd.f32 %v1312, %v1525
    %1527 = vdwg.mxu0
    %1528 = vmatprep.subr.bf16.mxu0 %v1424
    %1529 = vmatpush1.bf16.msra.mxu0 %v1423
    %1530 = vmatprep.subr.bf16.mxu0 %v1428
    %1531 = vmatpush1.bf16.msra.mxu0 %v1427
    %1532 = vmatprep.subr.bf16.mxu0 %v1432
    %1533 = vmatpush1.bf16.msra.mxu0 %v1431
    %1534 = vmatprep.subr.bf16.mxu0 %v1436
    %1535 = vmatpush1.bf16.msra.mxu0 %v1435
    %1536 = vmatprep.subr.bf16.mxu0 %v1440
    %1537 = vmatpush1.bf16.msra.mxu0 %v1439
    %1538 = vmatprep.subr.bf16.mxu0 %v1444
    %1539 = vmatpush1.bf16.msra.mxu0 %v1443
    %1540 = vmatprep.subr.bf16.mxu0 %v1448
    %1541 = vmatpush1.bf16.msra.mxu0 %v1447
    %1542 = vmatprep.subr.bf16.mxu0 %v1452
    %1543 = vmatpush1.bf16.msra.mxu0 %v1451
    %1544 = vmatprep.subr.bf16.mxu0 0
    %1545 = vmatpush1.bf16.msra.mxu0 0
    %1546 = vmatprep.subr.bf16.mxu0 0
    %1547 = vmatpush1.bf16.msra.mxu0 0
    %1548 = vmatprep.subr.bf16.mxu0 0
    %1549 = vmatpush1.bf16.msra.mxu0 0
    %1550 = vmatprep.subr.bf16.mxu0 0
    %1551 = vmatpush1.bf16.msra.mxu0 0
    %1552 = vmatprep.subr.bf16.mxu0 0
    %1553 = vmatpush1.bf16.msra.mxu0 0
    %1554 = vmatprep.subr.bf16.mxu0 0
    %1555 = vmatpush1.bf16.msra.mxu0 0
    %1556 = vmatprep.subr.bf16.mxu0 0
    %1557 = vmatpush1.bf16.msra.mxu0 0
    %1558 = vmatprep.subr.bf16.mxu0 0
    %1559 = vmatpush1.bf16.msra.mxu0 0
    %1560 = vmatprep.mubr.bf16.mxu0 0
    %1561 = vmatmul.mubr.bf16.gmra.mrb[0].mxu0 %v1270
    %v1562 = vpop.f32.mrb[0].mxu0
    %v1563 = vadd.f32 %v1316, %v1562
    %v1564 = vpop.f32.mrb[0].mxu0
    %v1565 = vadd.f32 %v1320, %v1564
    %v1566 = vpop.f32.mrb[0].mxu0
    %v1567 = vadd.f32 %v1316, %v1566
    %v1568 = vpop.f32.mrb[0].mxu0
    %v1569 = vadd.f32 %v1320, %v1568
    %1570 = vdwg.mxu0
    %v1571 = vmul.f32 %v1520, 0.5
    %v1572 = vmul.f32 %v1522, 0.5
    %v1573 = vmul.f32 %v1563, 0.5
    %v1574 = vmul.f32 %v1565, 0.5
    %v1575 = vmul.f32 %v1524, 0.5
    %v1576 = vmul.f32 %v1526, 0.5
    %v1577 = vmul.f32 %v1567, 0.5
    %v1578 = vmul.f32 %v1569, 0.5
    %v1579 = vmul.f32 %v1520, 0.044715
    %v1580 = vmul.f32 %v1522, 0.044715
    %v1581 = vmul.f32 %v1563, 0.044715
    %v1582 = vmul.f32 %v1565, 0.044715
    %v1583 = vmul.f32 %v1524, 0.044715
    %v1584 = vmul.f32 %v1526, 0.044715
    %v1585 = vmul.f32 %v1567, 0.044715
    %v1586 = vmul.f32 %v1569, 0.044715
    %v1587 = vmul.f32 %v1579, %v1520
    %v1588 = vmul.f32 %v1580, %v1522
    %v1589 = vmul.f32 %v1581, %v1563
    %v1590 = vmul.f32 %v1582, %v1565
    %v1591 = vmul.f32 %v1583, %v1524
    %v1592 = vmul.f32 %v1584, %v1526
    %v1593 = vmul.f32 %v1585, %v1567
    %v1594 = vmul.f32 %v1586, %v1569
    %v1595 = vmul.f32 %v1587, %v1520
    %v1596 = vmul.f32 %v1588, %v1522
    %v1597 = vmul.f32 %v1589, %v1563
    %v1598 = vmul.f32 %v1590, %v1565
    %v1599 = vmul.f32 %v1591, %v1524
    %v1600 = vmul.f32 %v1592, %v1526
    %v1601 = vmul.f32 %v1593, %v1567
    %v1602 = vmul.f32 %v1594, %v1569
    %v1603 = vadd.f32 %v1520, %v1595
    %v1604 = vadd.f32 %v1522, %v1596
    %v1605 = vadd.f32 %v1563, %v1597
    %v1606 = vadd.f32 %v1565, %v1598
    %v1607 = vadd.f32 %v1524, %v1599
    %v1608 = vadd.f32 %v1526, %v1600
    %v1609 = vadd.f32 %v1567, %v1601
    %v1610 = vadd.f32 %v1569, %v1602
    %v1611 = vmul.f32 %v1603, 0.7978846
    %v1612 = vmul.f32 %v1604, 0.7978846
    %v1613 = vmul.f32 %v1605, 0.7978846
    %v1614 = vmul.f32 %v1606, 0.7978846
    %v1615 = vmul.f32 %v1607, 0.7978846
    %v1616 = vmul.f32 %v1608, 0.7978846
    %v1617 = vmul.f32 %v1609, 0.7978846
    %v1618 = vmul.f32 %v1610, 0.7978846
    %v1619 = vtanh.pop %v1611
    %v1620 = vtanh.pop %v1612
    %v1621 = vtanh.pop %v1613
    %v1622 = vtanh.pop %v1614
    %v1623 = vtanh.pop %v1615
    %v1624 = vtanh.pop %v1616
    %v1625 = vtanh.pop %v1617
    %v1626 = vtanh.pop %v1618
    %v1627 = vadd.f32 %v1619, 1.0
    %v1628 = vadd.f32 %v1620, 1.0
    %v1629 = vadd.f32 %v1621, 1.0
    %v1630 = vadd.f32 %v1622, 1.0
    %v1631 = vadd.f32 %v1623, 1.0
    %v1632 = vadd.f32 %v1624, 1.0
    %v1633 = vadd.f32 %v1625, 1.0
    %v1634 = vadd.f32 %v1626, 1.0
    %v1635 = vmul.f32 %v1571, %v1627
    %v1636 = vmul.f32 %v1572, %v1628
    %v1637 = vmul.f32 %v1573, %v1629
    %v1638 = vmul.f32 %v1574, %v1630
    %v1639 = vmul.f32 %v1575, %v1631
    %v1640 = vmul.f32 %v1576, %v1632
    %v1641 = vmul.f32 %v1577, %v1633
    %v1642 = vmul.f32 %v1578, %v1634
    %v1643 = vpack.c.bf16 %v1639, %v1635
    %v1644 = vpack.c.bf16 %v1640, %v1636
    %v1645 = vpack.c.bf16 %v1641, %v1637
    %v1646 = vpack.c.bf16 %v1642, %v1638
    %v1647 = vld [vmem:[#allocation14] sm:$0xf]
    %v1648 = vld [vmem:[#allocation14 + $0x4] sm:$0xf]
    %v1649 = vld [vmem:[#allocation14 + $0x8] sm:$0xf]
    %v1650 = vld [vmem:[#allocation14 + $0xc] sm:$0xf]
    %v1651 = vld [vmem:[#allocation14 + $0x10] sm:$0xf]
    %v1652 = vld [vmem:[#allocation14 + $0x14] sm:$0xf]
    %v1653 = vld [vmem:[#allocation14 + $0x18] sm:$0xf]
    %v1654 = vld [vmem:[#allocation14 + $0x1c] sm:$0xf]
    %v1655 = vld [vmem:[#allocation14 + $0x20] sm:$0xf]
    %v1656 = vld [vmem:[#allocation14 + $0x24] sm:$0xf]
    %v1657 = vld [vmem:[#allocation14 + $0x28] sm:$0xf]
    %v1658 = vld [vmem:[#allocation14 + $0x2c] sm:$0xf]
    %v1659 = vld [vmem:[#allocation14 + $0x30] sm:$0xf]
    %v1660 = vld [vmem:[#allocation14 + $0x34] sm:$0xf]
    %v1661 = vld [vmem:[#allocation14 + $0x38] sm:$0xf]
    %v1662 = vld [vmem:[#allocation14 + $0x3c] sm:$0xf]
    %v1663 = vld [vmem:[#allocation14 + $0x40] sm:$0xf]
    %v1664 = vld [vmem:[#allocation14 + $0x44] sm:$0xf]
    %v1665 = vld [vmem:[#allocation14 + $0x48] sm:$0xf]
    %v1666 = vld [vmem:[#allocation14 + $0x4c] sm:$0xf]
    %v1667 = vld [vmem:[#allocation14 + $0x50] sm:$0xf]
    %v1668 = vld [vmem:[#allocation14 + $0x54] sm:$0xf]
    %v1669 = vld [vmem:[#allocation14 + $0x58] sm:$0xf]
    %v1670 = vld [vmem:[#allocation14 + $0x5c] sm:$0xf]
    %v1671 = vld [vmem:[#allocation14 + $0x60] sm:$0xf]
    %v1672 = vld [vmem:[#allocation14 + $0x64] sm:$0xf]
    %v1673 = vld [vmem:[#allocation14 + $0x68] sm:$0xf]
    %v1674 = vld [vmem:[#allocation14 + $0x6c] sm:$0xf]
    %v1675 = vld [vmem:[#allocation14 + $0x70] sm:$0xf]
    %v1676 = vld [vmem:[#allocation14 + $0x74] sm:$0xf]
    %v1677 = vld [vmem:[#allocation14 + $0x78] sm:$0xf]
    %v1678 = vld [vmem:[#allocation14 + $0x7c] sm:$0xf]
    %v1679 = vld [vmem:[#allocation14 + $0x80] sm:$0xf]
    %v1680 = vld [vmem:[#allocation14 + $0x84] sm:$0xf]
    %v1681 = vld [vmem:[#allocation14 + $0x88] sm:$0xf]
    %v1682 = vld [vmem:[#allocation14 + $0x8c] sm:$0xf]
    %v1683 = vld [vmem:[#allocation14 + $0x90] sm:$0xf]
    %v1684 = vld [vmem:[#allocation14 + $0x94] sm:$0xf]
    %v1685 = vld [vmem:[#allocation14 + $0x98] sm:$0xf]
    %v1686 = vld [vmem:[#allocation14 + $0x9c] sm:$0xf]
    %v1687 = vld [vmem:[#allocation14 + $0xa0] sm:$0xf]
    %v1688 = vld [vmem:[#allocation14 + $0xa4] sm:$0xf]
    %v1689 = vld [vmem:[#allocation14 + $0xa8] sm:$0xf]
    %v1690 = vld [vmem:[#allocation14 + $0xac] sm:$0xf]
    %v1691 = vld [vmem:[#allocation14 + $0xb0] sm:$0xf]
    %v1692 = vld [vmem:[#allocation14 + $0xb4] sm:$0xf]
    %v1693 = vld [vmem:[#allocation14 + $0xb8] sm:$0xf]
    %v1694 = vld [vmem:[#allocation14 + $0xbc] sm:$0xf]
    %v1695 = vld [vmem:[#allocation14 + $0xc0] sm:$0xf]
    %v1696 = vld [vmem:[#allocation14 + $0xc4] sm:$0xf]
    %v1697 = vld [vmem:[#allocation14 + $0xc8] sm:$0xf]
    %v1698 = vld [vmem:[#allocation14 + $0xcc] sm:$0xf]
    %v1699 = vld [vmem:[#allocation14 + $0xd0] sm:$0xf]
    %v1700 = vld [vmem:[#allocation14 + $0xd4] sm:$0xf]
    %v1701 = vld [vmem:[#allocation14 + $0xd8] sm:$0xf]
    %v1702 = vld [vmem:[#allocation14 + $0xdc] sm:$0xf]
    %v1703 = vld [vmem:[#allocation14 + $0xe0] sm:$0xf]
    %v1704 = vld [vmem:[#allocation14 + $0xe4] sm:$0xf]
    %v1705 = vld [vmem:[#allocation14 + $0xe8] sm:$0xf]
    %v1706 = vld [vmem:[#allocation14 + $0xec] sm:$0xf]
    %v1707 = vld [vmem:[#allocation14 + $0xf0] sm:$0xf]
    %v1708 = vld [vmem:[#allocation14 + $0xf4] sm:$0xf]
    %v1709 = vld [vmem:[#allocation14 + $0xf8] sm:$0xf]
    %v1710 = vld [vmem:[#allocation14 + $0xfc] sm:$0xf]
    %v1711 = vld [vmem:[%s13] sm:$0x1]
    %v1713 = vlaneseq
    %v1714 = vshrl.u32 %v1713, 7
    %v1715 = vsub.s32 0, %v1714
    %v1716 = vrot.slane %v1711, %v1715
    %v1782 = vunpack.c.l.b16 %v1647
    %v1783 = vunpack.c.l.b16 %v1648
    %v1784 = vunpack.c.l.b16 %v1649
    %v1785 = vunpack.c.l.b16 %v1650
    %v1786 = vunpack.c.l.b16 %v1651
    %v1787 = vunpack.c.l.b16 %v1652
    %v1788 = vunpack.c.l.b16 %v1653
    %v1789 = vunpack.c.l.b16 %v1654
    %v1790 = vunpack.c.l.b16 %v1655
    %v1791 = vunpack.c.l.b16 %v1656
    %v1792 = vunpack.c.l.b16 %v1657
    %v1793 = vunpack.c.l.b16 %v1658
    %v1794 = vunpack.c.l.b16 %v1659
    %v1795 = vunpack.c.l.b16 %v1660
    %v1796 = vunpack.c.l.b16 %v1661
    %v1797 = vunpack.c.l.b16 %v1662
    %v1798 = vunpack.c.l.b16 %v1663
    %v1799 = vunpack.c.l.b16 %v1664
    %v1800 = vunpack.c.l.b16 %v1665
    %v1801 = vunpack.c.l.b16 %v1666
    %v1802 = vunpack.c.l.b16 %v1667
    %v1803 = vunpack.c.l.b16 %v1668
    %v1804 = vunpack.c.l.b16 %v1669
    %v1805 = vunpack.c.l.b16 %v1670
    %v1806 = vunpack.c.l.b16 %v1671
    %v1807 = vunpack.c.l.b16 %v1672
    %v1808 = vunpack.c.l.b16 %v1673
    %v1809 = vunpack.c.l.b16 %v1674
    %v1810 = vunpack.c.l.b16 %v1675
    %v1811 = vunpack.c.l.b16 %v1676
    %v1812 = vunpack.c.l.b16 %v1677
    %v1813 = vunpack.c.l.b16 %v1678
    %v1814 = vunpack.c.l.b16 %v1679
    %v1815 = vunpack.c.l.b16 %v1680
    %v1816 = vunpack.c.l.b16 %v1681
    %v1817 = vunpack.c.l.b16 %v1682
    %v1818 = vunpack.c.l.b16 %v1683
    %v1819 = vunpack.c.l.b16 %v1684
    %v1820 = vunpack.c.l.b16 %v1685
    %v1821 = vunpack.c.l.b16 %v1686
    %v1822 = vunpack.c.l.b16 %v1687
    %v1823 = vunpack.c.l.b16 %v1688
    %v1824 = vunpack.c.l.b16 %v1689
    %v1825 = vunpack.c.l.b16 %v1690
    %v1826 = vunpack.c.l.b16 %v1691
    %v1827 = vunpack.c.l.b16 %v1692
    %v1828 = vunpack.c.l.b16 %v1693
    %v1829 = vunpack.c.l.b16 %v1694
    %v1830 = vunpack.c.l.b16 %v1695
    %v1831 = vunpack.c.l.b16 %v1696
    %v1832 = vunpack.c.l.b16 %v1697
    %v1833 = vunpack.c.l.b16 %v1698
    %v1834 = vunpack.c.l.b16 %v1699
    %v1835 = vunpack.c.l.b16 %v1700
    %v1836 = vunpack.c.l.b16 %v1701
    %v1837 = vunpack.c.l.b16 %v1702
    %v1838 = vunpack.c.l.b16 %v1703
    %v1839 = vunpack.c.l.b16 %v1704
    %v1840 = vunpack.c.l.b16 %v1705
    %v1841 = vunpack.c.l.b16 %v1706
    %v1842 = vunpack.c.l.b16 %v1707
    %v1843 = vunpack.c.l.b16 %v1708
    %v1844 = vunpack.c.l.b16 %v1709
    %v1845 = vunpack.c.l.b16 %v1710
    %v1846 = vpack.c.b16 %v1783, %v1782
    %v1847 = vpack.c.b16 %v1785, %v1784
    %v1848 = vpack.c.b16 %v1787, %v1786
    %v1849 = vpack.c.b16 %v1789, %v1788
    %v1850 = vpack.c.b16 %v1791, %v1790
    %v1851 = vpack.c.b16 %v1793, %v1792
    %v1852 = vpack.c.b16 %v1795, %v1794
    %v1853 = vpack.c.b16 %v1797, %v1796
    %v1854 = vpack.c.b16 %v1799, %v1798
    %v1855 = vpack.c.b16 %v1801, %v1800
    %v1856 = vpack.c.b16 %v1803, %v1802
    %v1857 = vpack.c.b16 %v1805, %v1804
    %v1858 = vpack.c.b16 %v1807, %v1806
    %v1859 = vpack.c.b16 %v1809, %v1808
    %v1860 = vpack.c.b16 %v1811, %v1810
    %v1861 = vpack.c.b16 %v1813, %v1812
    %v1862 = vpack.c.b16 %v1815, %v1814
    %v1863 = vpack.c.b16 %v1817, %v1816
    %v1864 = vpack.c.b16 %v1819, %v1818
    %v1865 = vpack.c.b16 %v1821, %v1820
    %v1866 = vpack.c.b16 %v1823, %v1822
    %v1867 = vpack.c.b16 %v1825, %v1824
    %v1868 = vpack.c.b16 %v1827, %v1826
    %v1869 = vpack.c.b16 %v1829, %v1828
    %v1870 = vpack.c.b16 %v1831, %v1830
    %v1871 = vpack.c.b16 %v1833, %v1832
    %v1872 = vpack.c.b16 %v1835, %v1834
    %v1873 = vpack.c.b16 %v1837, %v1836
    %v1874 = vpack.c.b16 %v1839, %v1838
    %v1875 = vpack.c.b16 %v1841, %v1840
    %v1876 = vpack.c.b16 %v1843, %v1842
    %v1877 = vpack.c.b16 %v1845, %v1844
    %1910 = vmatprep.subr.bf16.mxu0 0
    %1911 = vmatpush1.bf16.msra.mxu0 %v1846
    %1912 = vmatprep.subr.bf16.mxu0 0
    %1913 = vmatpush1.bf16.msra.mxu0 %v1847
    %1914 = vmatprep.subr.bf16.mxu0 0
    %1915 = vmatpush1.bf16.msra.mxu0 %v1848
    %1916 = vmatprep.subr.bf16.mxu0 0
    %1917 = vmatpush1.bf16.msra.mxu0 %v1849
    %1918 = vmatprep.subr.bf16.mxu0 0
    %1919 = vmatpush1.bf16.msra.mxu0 %v1850
    %1920 = vmatprep.subr.bf16.mxu0 0
    %1921 = vmatpush1.bf16.msra.mxu0 %v1851
    %1922 = vmatprep.subr.bf16.mxu0 0
    %1923 = vmatpush1.bf16.msra.mxu0 %v1852
    %1924 = vmatprep.subr.bf16.mxu0 0
    %1925 = vmatpush1.bf16.msra.mxu0 %v1853
    %1926 = vmatprep.subr.bf16.mxu0 0
    %1927 = vmatpush1.bf16.msra.mxu0 %v1854
    %1928 = vmatprep.subr.bf16.mxu0 0
    %1929 = vmatpush1.bf16.msra.mxu0 %v1855
    %1930 = vmatprep.subr.bf16.mxu0 0
    %1931 = vmatpush1.bf16.msra.mxu0 %v1856
    %1932 = vmatprep.subr.bf16.mxu0 0
    %1933 = vmatpush1.bf16.msra.mxu0 %v1857
    %1934 = vmatprep.subr.bf16.mxu0 0
    %1935 = vmatpush1.bf16.msra.mxu0 %v1858
    %1936 = vmatprep.subr.bf16.mxu0 0
    %1937 = vmatpush1.bf16.msra.mxu0 %v1859
    %1938 = vmatprep.subr.bf16.mxu0 0
    %1939 = vmatpush1.bf16.msra.mxu0 %v1860
    %1940 = vmatprep.subr.bf16.mxu0 0
    %1941 = vmatpush1.bf16.msra.mxu0 %v1861
    %1942 = vmatprep.mubr.bf16.mxu0 %v1644
    %1943 = vmatmul.mubr.bf16.gmra.mrb[0].mxu0 %v1643
    %v1944 = vpop.f32.mrb[0].mxu0
    %v1945 = vadd.f32 %v1716, %v1944
    %v1946 = vpop.f32.mrb[0].mxu0
    %v1947 = vpop.f32.mrb[0].mxu0
    %v1948 = vadd.f32 %v1716, %v1947
    %v1949 = vpop.f32.mrb[0].mxu0
    %1950 = vdwg.mxu0
    %1951 = vmatprep.subr.bf16.mxu0 0
    %1952 = vmatpush1.bf16.msra.mxu0 %v1862
    %1953 = vmatprep.subr.bf16.mxu0 0
    %1954 = vmatpush1.bf16.msra.mxu0 %v1863
    %1955 = vmatprep.subr.bf16.mxu0 0
    %1956 = vmatpush1.bf16.msra.mxu0 %v1864
    %1957 = vmatprep.subr.bf16.mxu0 0
    %1958 = vmatpush1.bf16.msra.mxu0 %v1865
    %1959 = vmatprep.subr.bf16.mxu0 0
    %1960 = vmatpush1.bf16.msra.mxu0 %v1866
    %1961 = vmatprep.subr.bf16.mxu0 0
    %1962 = vmatpush1.bf16.msra.mxu0 %v1867
    %1963 = vmatprep.subr.bf16.mxu0 0
    %1964 = vmatpush1.bf16.msra.mxu0 %v1868
    %1965 = vmatprep.subr.bf16.mxu0 0
    %1966 = vmatpush1.bf16.msra.mxu0 %v1869
    %1967 = vmatprep.subr.bf16.mxu0 0
    %1968 = vmatpush1.bf16.msra.mxu0 %v1870
    %1969 = vmatprep.subr.bf16.mxu0 0
    %1970 = vmatpush1.bf16.msra.mxu0 %v1871
    %1971 = vmatprep.subr.bf16.mxu0 0
    %1972 = vmatpush1.bf16.msra.mxu0 %v1872
    %1973 = vmatprep.subr.bf16.mxu0 0
    %1974 = vmatpush1.bf16.msra.mxu0 %v1873
    %1975 = vmatprep.subr.bf16.mxu0 0
    %1976 = vmatpush1.bf16.msra.mxu0 %v1874
    %1977 = vmatprep.subr.bf16.mxu0 0
    %1978 = vmatpush1.bf16.msra.mxu0 %v1875
    %1979 = vmatprep.subr.bf16.mxu0 0
    %1980 = vmatpush1.bf16.msra.mxu0 %v1876
    %1981 = vmatprep.subr.bf16.mxu0 0
    %1982 = vmatpush1.bf16.msra.mxu0 %v1877
    %1983 = vmatprep.mubr.bf16.mxu0 %v1646
    %1984 = vmatmul.mubr.bf16.gmra.mrb[0].mxu0 %v1645
    %v1985 = vpop.f32.mrb[0].mxu0
    %v1986 = vadd.f32 %v1945, %v1985
    %v1987 = vpop.f32.mrb[0].mxu0
    %v1988 = vpop.f32.mrb[0].mxu0
    %v1989 = vadd.f32 %v1948, %v1988
    %v1990 = vpop.f32.mrb[0].mxu0
    %1991 = vdwg.mxu0
    %v1992 = vadd.f32 %v1986, %v1268
    %v1993 = vadd.f32 %v1989, %v1269
    %v1994 = vld [vmem:[%s14] sm:$0x1]
    %v1995 = vld [vmem:[%s15] sm:$0x1]
    %1996 = vadd.xlane.f32.xlu0 %v1992
    %v1997 = vpop.xlane.xlu0 %1996
    %1998 = vadd.xlane.f32.xlu0 %v1993
    %v1999 = vpop.xlane.xlu0 %1998
    %v2000 = vmul.f32 %v1997, %v189
    %v2001 = vmul.f32 %v1999, %v189
    %v2002 = vsub.f32 %v1992, %v2000
    %v2003 = vsub.f32 %v1993, %v2001
    %v2004 = vmul.f32 %v2002, %v2002
    %v2005 = vmul.f32 %v2003, %v2003
    %2006 = vadd.xlane.f32.xlu0 %v2004
    %v2007 = vpop.xlane.xlu0 %2006
    %2008 = vadd.xlane.f32.xlu0 %v2005
    %v2009 = vpop.xlane.xlu0 %2008
    %v2010 = vmul.f32 %v2007, %v189
    %v2011 = vmul.f32 %v2009, %v189
    %v2012 = vadd.f32 %v2010, 1e-12
    %v2013 = vadd.f32 %v2011, 1e-12
    %v2014 = vrsqrt.pop %v2012
    %v2015 = vrsqrt.pop %v2013
    %v2016 = vmul.f32 %v2002, %v2014
    %v2017 = vmul.f32 %v2003, %v2015
    %v2019 = vlaneseq
    %v2020 = vshrl.u32 %v2019, 7
    %v2021 = vsub.s32 0, %v2020
    %v2022 = vrot.slane %v1994, %v2021
    %v2024 = vmul.f32 %v2016, %v2022
    %v2025 = vmul.f32 %v2017, %v2022
    %v2027 = vlaneseq
    %v2028 = vshrl.u32 %v2027, 7
    %v2029 = vsub.s32 0, %v2028
    %v2030 = vrot.slane %v1995, %v2029
    %v2032 = vadd.f32 %v2024, %v2030
    %v2033 = vadd.f32 %v2025, %v2030
    %v2034 = vpack.c.bf16 %v2033, %v2032
    %s2035 = scalar_lea.vmem [#allocation10], 192
    %v2036 = vld [vmem:[%s2035] sm:$0xff]
    %v2037 = vld [vmem:[%s2035 + $0x8] sm:$0xf]
    %v2038 = vld [vmem:[%s2035 + $0xc] sm:$0xff]
    %v2039 = vld [vmem:[%s2035 + $0x14] sm:$0xf]
    %v2040 = vld [vmem:[%s2035 + $0x18] sm:$0xff]
    %v2041 = vld [vmem:[%s2035 + $0x20] sm:$0xf]
    %v2042 = vld [vmem:[%s2035 + $0x24] sm:$0xff]
    %v2043 = vld [vmem:[%s2035 + $0x2c] sm:$0xf]
    %v2044 = vld [vmem:[%s2035 + $0x30] sm:$0xff]
    %v2045 = vld [vmem:[%s2035 + $0x38] sm:$0xf]
    %v2046 = vld [vmem:[%s2035 + $0x3c] sm:$0xff]
    %v2047 = vld [vmem:[%s2035 + $0x44] sm:$0xf]
    %v2048 = vld [vmem:[%s2035 + $0x48] sm:$0xff]
    %v2049 = vld [vmem:[%s2035 + $0x50] sm:$0xf]
    %v2050 = vld [vmem:[%s2035 + $0x54] sm:$0xff]
    %v2051 = vld [vmem:[%s2035 + $0x5c] sm:$0xf]
    %v2052 = vld [vmem:[%s2035 + $0x60] sm:$0xff]
    %v2053 = vld [vmem:[%s2035 + $0x68] sm:$0xf]
    %v2054 = vld [vmem:[%s2035 + $0x6c] sm:$0xff]
    %v2055 = vld [vmem:[%s2035 + $0x74] sm:$0xf]
    %v2056 = vld [vmem:[%s2035 + $0x78] sm:$0xff]
    %v2057 = vld [vmem:[%s2035 + $0x80] sm:$0xf]
    %v2058 = vld [vmem:[%s2035 + $0x84] sm:$0xff]
    %v2059 = vld [vmem:[%s2035 + $0x8c] sm:$0xf]
    %v2060 = vld [vmem:[%s2035 + $0x90] sm:$0xff]
    %v2061 = vld [vmem:[%s2035 + $0x98] sm:$0xf]
    %v2062 = vld [vmem:[%s2035 + $0x9c] sm:$0xff]
    %v2063 = vld [vmem:[%s2035 + $0xa4] sm:$0xf]
    %v2064 = vld [vmem:[%s2035 + $0xa8] sm:$0xff]
    %v2065 = vld [vmem:[%s2035 + $0xb0] sm:$0xf]
    %v2066 = vld [vmem:[%s2035 + $0xb4] sm:$0xff]
    %v2067 = vld [vmem:[%s2035 + $0xbc] sm:$0xf]
    %s2068 = scalar_lea.vmem %s5, 3
    %v2069 = vld [vmem:[%s2068] sm:$0x7]
    %v2071 = vlaneseq
    %v2072 = vshrl.u32 %v2071, 7
    %v2073 = vsub.s32 0, %v2072
    %v2074 = vrot.slane %v2069, %v2073
    %v2075 = vlaneseq
    %v2076 = vshrl.u32 %v2075, 7
    %v2077 = vsub.s32 1, %v2076
    %v2078 = vrot.slane %v2069, %v2077
    %v2079 = vlaneseq
    %v2080 = vshrl.u32 %v2079, 7
    %v2081 = vsub.s32 2, %v2080
    %v2082 = vrot.slane %v2069, %v2081
    %v2118 = vunpack.c.l.b16 %v2036
    %v2119 = vunpack.c.h.b16 %v2036
    %v2120 = vunpack.c.l.b16 %v2037
    %v2121 = vunpack.c.l.b16 %v2038
    %v2122 = vunpack.c.h.b16 %v2038
    %v2123 = vunpack.c.l.b16 %v2039
    %v2124 = vunpack.c.l.b16 %v2040
    %v2125 = vunpack.c.h.b16 %v2040
    %v2126 = vunpack.c.l.b16 %v2041
    %v2127 = vunpack.c.l.b16 %v2042
    %v2128 = vunpack.c.h.b16 %v2042
    %v2129 = vunpack.c.l.b16 %v2043
    %v2130 = vunpack.c.l.b16 %v2044
    %v2131 = vunpack.c.h.b16 %v2044
    %v2132 = vunpack.c.l.b16 %v2045
    %v2133 = vunpack.c.l.b16 %v2046
    %v2134 = vunpack.c.h.b16 %v2046
    %v2135 = vunpack.c.l.b16 %v2047
    %v2136 = vunpack.c.l.b16 %v2048
    %v2137 = vunpack.c.h.b16 %v2048
    %v2138 = vunpack.c.l.b16 %v2049
    %v2139 = vunpack.c.l.b16 %v2050
    %v2140 = vunpack.c.h.b16 %v2050
    %v2141 = vunpack.c.l.b16 %v2051
    %v2142 = vunpack.c.l.b16 %v2052
    %v2143 = vunpack.c.h.b16 %v2052
    %v2144 = vunpack.c.l.b16 %v2053
    %v2145 = vunpack.c.l.b16 %v2054
    %v2146 = vunpack.c.h.b16 %v2054
    %v2147 = vunpack.c.l.b16 %v2055
    %v2148 = vunpack.c.l.b16 %v2056
    %v2149 = vunpack.c.h.b16 %v2056
    %v2150 = vunpack.c.l.b16 %v2057
    %v2151 = vunpack.c.l.b16 %v2058
    %v2152 = vunpack.c.h.b16 %v2058
    %v2153 = vunpack.c.l.b16 %v2059
    %v2154 = vunpack.c.l.b16 %v2060
    %v2155 = vunpack.c.h.b16 %v2060
    %v2156 = vunpack.c.l.b16 %v2061
    %v2157 = vunpack.c.l.b16 %v2062
    %v2158 = vunpack.c.h.b16 %v2062
    %v2159 = vunpack.c.l.b16 %v2063
    %v2160 = vunpack.c.l.b16 %v2064
    %v2161 = vunpack.c.h.b16 %v2064
    %v2162 = vunpack.c.l.b16 %v2065
    %v2163 = vunpack.c.l.b16 %v2066
    %v2164 = vunpack.c.h.b16 %v2066
    %v2165 = vunpack.c.l.b16 %v2067
    %v2166 = vpack.c.b16 %v2121, %v2118
    %v2167 = vpack.c.b16 %v2122, %v2119
    %v2168 = vpack.c.b16 %v2123, %v2120
    %v2169 = vpack.c.b16 %v2127, %v2124
    %v2170 = vpack.c.b16 %v2128, %v2125
    %v2171 = vpack.c.b16 %v2129, %v2126
    %v2172 = vpack.c.b16 %v2133, %v2130
    %v2173 = vpack.c.b16 %v2134, %v2131
    %v2174 = vpack.c.b16 %v2135, %v2132
    %v2175 = vpack.c.b16 %v2139, %v2136
    %v2176 = vpack.c.b16 %v2140, %v2137
    %v2177 = vpack.c.b16 %v2141, %v2138
    %v2178 = vpack.c.b16 %v2145, %v2142
    %v2179 = vpack.c.b16 %v2146, %v2143
    %v2180 = vpack.c.b16 %v2147, %v2144
    %v2181 = vpack.c.b16 %v2151, %v2148
    %v2182 = vpack.c.b16 %v2152, %v2149
    %v2183 = vpack.c.b16 %v2153, %v2150
    %v2184 = vpack.c.b16 %v2157, %v2154
    %v2185 = vpack.c.b16 %v2158, %v2155
    %v2186 = vpack.c.b16 %v2159, %v2156
    %v2187 = vpack.c.b16 %v2163, %v2160
    %v2188 = vpack.c.b16 %v2164, %v2161
    %v2189 = vpack.c.b16 %v2165, %v2162
    %2214 = vmatprep.subr.bf16.mxu0 %v2167
    %2215 = vmatpush1.bf16.msra.mxu0 %v2166
    %2216 = vmatprep.subr.bf16.mxu0 %v2170
    %2217 = vmatpush1.bf16.msra.mxu0 %v2169
    %2218 = vmatprep.subr.bf16.mxu0 %v2173
    %2219 = vmatpush1.bf16.msra.mxu0 %v2172
    %2220 = vmatprep.subr.bf16.mxu0 %v2176
    %2221 = vmatpush1.bf16.msra.mxu0 %v2175
    %2222 = vmatprep.subr.bf16.mxu0 %v2179
    %2223 = vmatpush1.bf16.msra.mxu0 %v2178
    %2224 = vmatprep.subr.bf16.mxu0 %v2182
    %2225 = vmatpush1.bf16.msra.mxu0 %v2181
    %2226 = vmatprep.subr.bf16.mxu0 %v2185
    %2227 = vmatpush1.bf16.msra.mxu0 %v2184
    %2228 = vmatprep.subr.bf16.mxu0 %v2188
    %2229 = vmatpush1.bf16.msra.mxu0 %v2187
    %2230 = vmatprep.subr.bf16.mxu0 0
    %2231 = vmatpush1.bf16.msra.mxu0 0
    %2232 = vmatprep.subr.bf16.mxu0 0
    %2233 = vmatpush1.bf16.msra.mxu0 0
    %2234 = vmatprep.subr.bf16.mxu0 0
    %2235 = vmatpush1.bf16.msra.mxu0 0
    %2236 = vmatprep.subr.bf16.mxu0 0
    %2237 = vmatpush1.bf16.msra.mxu0 0
    %2238 = vmatprep.subr.bf16.mxu0 0
    %2239 = vmatpush1.bf16.msra.mxu0 0
    %2240 = vmatprep.subr.bf16.mxu0 0
    %2241 = vmatpush1.bf16.msra.mxu0 0
    %2242 = vmatprep.subr.bf16.mxu0 0
    %2243 = vmatpush1.bf16.msra.mxu0 0
    %2244 = vmatprep.subr.bf16.mxu0 0
    %2245 = vmatpush1.bf16.msra.mxu0 0
    %2246 = vmatprep.mubr.bf16.mxu0 0
    %2247 = vmatmul.mubr.bf16.gmra.mrb[0].mxu0 %v2034
    %v2248 = vpop.f32.mrb[0].mxu0
    %v2249 = vadd.f32 %v2074, %v2248
    %v2250 = vpop.f32.mrb[0].mxu0
    %v2251 = vadd.f32 %v2078, %v2250
    %v2252 = vpop.f32.mrb[0].mxu0
    %v2253 = vadd.f32 %v2074, %v2252
    %v2254 = vpop.f32.mrb[0].mxu0
    %v2255 = vadd.f32 %v2078, %v2254
    %2256 = vdwg.mxu0
    %2257 = vmatprep.subr.bf16.mxu0 0
    %2258 = vmatpush1.bf16.msra.mxu0 %v2168
    %2259 = vmatprep.subr.bf16.mxu0 0
    %2260 = vmatpush1.bf16.msra.mxu0 %v2171
    %2261 = vmatprep.subr.bf16.mxu0 0
    %2262 = vmatpush1.bf16.msra.mxu0 %v2174
    %2263 = vmatprep.subr.bf16.mxu0 0
    %2264 = vmatpush1.bf16.msra.mxu0 %v2177
    %2265 = vmatprep.subr.bf16.mxu0 0
    %2266 = vmatpush1.bf16.msra.mxu0 %v2180
    %2267 = vmatprep.subr.bf16.mxu0 0
    %2268 = vmatpush1.bf16.msra.mxu0 %v2183
    %2269 = vmatprep.subr.bf16.mxu0 0
    %2270 = vmatpush1.bf16.msra.mxu0 %v2186
    %2271 = vmatprep.subr.bf16.mxu0 0
    %2272 = vmatpush1.bf16.msra.mxu0 %v2189
    %2273 = vmatprep.subr.bf16.mxu0 0
    %2274 = vmatpush1.bf16.msra.mxu0 0
    %2275 = vmatprep.subr.bf16.mxu0 0
    %2276 = vmatpush1.bf16.msra.mxu0 0
    %2277 = vmatprep.subr.bf16.mxu0 0
    %2278 = vmatpush1.bf16.msra.mxu0 0
    %2279 = vmatprep.subr.bf16.mxu0 0
    %2280 = vmatpush1.bf16.msra.mxu0 0
    %2281 = vmatprep.subr.bf16.mxu0 0
    %2282 = vmatpush1.bf16.msra.mxu0 0
    %2283 = vmatprep.subr.bf16.mxu0 0
    %2284 = vmatpush1.bf16.msra.mxu0 0
    %2285 = vmatprep.subr.bf16.mxu0 0
    %2286 = vmatpush1.bf16.msra.mxu0 0
    %2287 = vmatprep.subr.bf16.mxu0 0
    %2288 = vmatpush1.bf16.msra.mxu0 0
    %2289 = vmatprep.mubr.bf16.mxu0 0
    %2290 = vmatmul.mubr.bf16.gmra.mrb[0].mxu0 %v2034
    %v2291 = vpop.f32.mrb[0].mxu0
    %v2292 = vadd.f32 %v2082, %v2291
    %v2293 = vpop.f32.mrb[0].mxu0
    %v2294 = vpop.f32.mrb[0].mxu0
    %v2295 = vadd.f32 %v2082, %v2294
    %v2296 = vpop.f32.mrb[0].mxu0
    %2297 = vdwg.mxu0
    %v2298 = vpack.c.bf16 %v2253, %v2249
    %v2299 = vpack.c.bf16 %v2255, %v2251
    %v2300 = vpack.c.bf16 %v2295, %v2292
    %s2301 = scalar_lea.vmem [#allocation11], 64
    %v2302 = vld [vmem:[%s2301] sm:$0xf]
    %v2303 = vld [vmem:[%s2301 + $0x4] sm:$0xf]
    %v2304 = vld [vmem:[%s2301 + $0x8] sm:$0xf]
    %v2305 = vld [vmem:[%s2301 + $0xc] sm:$0xf]
    %v2306 = vld [vmem:[%s2301 + $0x10] sm:$0xf]
    %v2307 = vld [vmem:[%s2301 + $0x14] sm:$0xf]
    %v2308 = vld [vmem:[%s2301 + $0x18] sm:$0xf]
    %v2309 = vld [vmem:[%s2301 + $0x1c] sm:$0xf]
    %v2310 = vld [vmem:[%s2301 + $0x20] sm:$0xf]
    %v2311 = vld [vmem:[%s2301 + $0x24] sm:$0xf]
    %v2312 = vld [vmem:[%s2301 + $0x28] sm:$0xf]
    %v2313 = vld [vmem:[%s2301 + $0x2c] sm:$0xf]
    %v2314 = vld [vmem:[%s2301 + $0x30] sm:$0xf]
    %v2315 = vld [vmem:[%s2301 + $0x34] sm:$0xf]
    %v2316 = vld [vmem:[%s2301 + $0x38] sm:$0xf]
    %v2317 = vld [vmem:[%s2301 + $0x3c] sm:$0xf]
    %v2319 = vsel %vm505, %v2298, 0
    %v2322 = vsel %vm505, %v2299, 0
    %2324 = vmatprep.subr.bf16.mxu0 0
    %2325 = vmatpush1.bf16.xpose.msra.mxu0 %v2322
    %2326 = vmatprep.subr.bf16.mxu0 0
    %2327 = vmatpush1.bf16.xpose.msra.mxu0 0
    %2328 = vmatprep.subr.bf16.mxu0 0
    %2329 = vmatpush1.bf16.xpose.msra.mxu0 0
    %2330 = vmatprep.subr.bf16.mxu0 0
    %2331 = vmatpush1.bf16.xpose.msra.mxu0 0
    %2332 = vmatprep.subr.bf16.mxu0 0
    %2333 = vmatpush1.bf16.xpose.msra.mxu0 0
    %2334 = vmatprep.subr.bf16.mxu0 0
    %2335 = vmatpush1.bf16.xpose.msra.mxu0 0
    %2336 = vmatprep.subr.bf16.mxu0 0
    %2337 = vmatpush1.bf16.xpose.msra.mxu0 0
    %2338 = vmatprep.subr.bf16.mxu0 0
    %2339 = vmatpush1.bf16.xpose.msra.mxu0 0
    %2340 = vmatprep.subr.bf16.mxu0 0
    %2341 = vmatpush1.bf16.xpose.msra.mxu0 0
    %2342 = vmatprep.subr.bf16.mxu0 0
    %2343 = vmatpush1.bf16.xpose.msra.mxu0 0
    %2344 = vmatprep.subr.bf16.mxu0 0
    %2345 = vmatpush1.bf16.xpose.msra.mxu0 0
    %2346 = vmatprep.subr.bf16.mxu0 0
    %2347 = vmatpush1.bf16.xpose.msra.mxu0 0
    %2348 = vmatprep.subr.bf16.mxu0 0
    %2349 = vmatpush1.bf16.xpose.msra.mxu0 0
    %2350 = vmatprep.subr.bf16.mxu0 0
    %2351 = vmatpush1.bf16.xpose.msra.mxu0 0
    %2352 = vmatprep.subr.bf16.mxu0 0
    %2353 = vmatpush1.bf16.xpose.msra.mxu0 0
    %2354 = vmatprep.subr.bf16.mxu0 0
    %2355 = vmatpush1.bf16.xpose.msra.mxu0 0
    %2356 = vmatprep.mubr.bf16.mxu0 0
    %2357 = vmatmul.mubr.bf16.gmra.mrb[0].mxu0 %v2319
    %v2358 = vpop.f32.mrb[0].mxu0
    %v2359 = vadd.f32 %v179, %v2358
    %v2360 = vpop.f32.mrb[0].mxu0
    %v2361 = vpop.f32.mrb[0].mxu0
    %v2362 = vadd.f32 %v180, %v2361
    %v2363 = vpop.f32.mrb[0].mxu0
    %2364 = vdwg.mxu0
    %v2365 = vsel %vm553, %v2359, -inf
    %2366 = vmax.xlane.f32.xlu0 %v2365
    %v2367 = vpop.xlane.xlu0 %2366
    %v2368 = vsel %vm553, %v2362, -inf
    %2369 = vmax.xlane.f32.xlu0 %v2368
    %v2370 = vpop.xlane.xlu0 %2369
    %v2371 = vsub.f32 %v2359, %v2367
    %v2372 = vsub.f32 %v2362, %v2370
    %v2373 = vmul.f32 %v2371, 1.442695
    %v2374 = vpow.pop %v2373
    %v2375 = vmul.f32 %v2372, 1.442695
    %v2376 = vpow.pop %v2375
    %v2377 = vsel %vm553, %v2374, 0.0
    %2378 = vadd.xlane.f32.xlu0 %v2377
    %v2379 = vpop.xlane.xlu0 %2378
    %v2380 = vsel %vm553, %v2376, 0.0
    %2381 = vadd.xlane.f32.xlu0 %v2380
    %v2382 = vpop.xlane.xlu0 %2381
    %v2383 = vrcp.pop %v2379
    %v2384 = vrcp.pop %v2382
    %v2385 = vmul.f32 %v2374, %v2383
    %v2386 = vmul.f32 %v2376, %v2384
    %v2387 = vpack.c.bf16 %v2386, %v2385
    %v2389 = vsel %vm553, %v2387, 0
    %2391 = vmatprep.subr.bf16.mxu0 0
    %2392 = vmatpush1.bf16.msra.mxu0 %v2300
    %2393 = vmatprep.subr.bf16.mxu0 0
    %2394 = vmatpush1.bf16.msra.mxu0 0
    %2395 = vmatprep.subr.bf16.mxu0 0
    %2396 = vmatpush1.bf16.msra.mxu0 0
    %2397 = vmatprep.subr.bf16.mxu0 0
    %2398 = vmatpush1.bf16.msra.mxu0 0
    %2399 = vmatprep.subr.bf16.mxu0 0
    %2400 = vmatpush1.bf16.msra.mxu0 0
    %2401 = vmatprep.subr.bf16.mxu0 0
    %2402 = vmatpush1.bf16.msra.mxu0 0
    %2403 = vmatprep.subr.bf16.mxu0 0
    %2404 = vmatpush1.bf16.msra.mxu0 0
    %2405 = vmatprep.subr.bf16.mxu0 0
    %2406 = vmatpush1.bf16.msra.mxu0 0
    %2407 = vmatprep.subr.bf16.mxu0 0
    %2408 = vmatpush1.bf16.msra.mxu0 0
    %2409 = vmatprep.subr.bf16.mxu0 0
    %2410 = vmatpush1.bf16.msra.mxu0 0
    %2411 = vmatprep.subr.bf16.mxu0 0
    %2412 = vmatpush1.bf16.msra.mxu0 0
    %2413 = vmatprep.subr.bf16.mxu0 0
    %2414 = vmatpush1.bf16.msra.mxu0 0
    %2415 = vmatprep.subr.bf16.mxu0 0
    %2416 = vmatpush1.bf16.msra.mxu0 0
    %2417 = vmatprep.subr.bf16.mxu0 0
    %2418 = vmatpush1.bf16.msra.mxu0 0
    %2419 = vmatprep.subr.bf16.mxu0 0
    %2420 = vmatpush1.bf16.msra.mxu0 0
    %2421 = vmatprep.subr.bf16.mxu0 0
    %2422 = vmatpush1.bf16.msra.mxu0 0
    %2423 = vmatprep.mubr.bf16.mxu0 0
    %2424 = vmatmul.mubr.bf16.gmra.mrb[0].mxu0 %v2389
    %v2425 = vpop.f32.mrb[0].mxu0
    %v2426 = vadd.f32 0.0, %v2425
    %v2427 = vpop.f32.mrb[0].mxu0
    %v2428 = vpop.f32.mrb[0].mxu0
    %v2429 = vadd.f32 0.0, %v2428
    %v2430 = vpop.f32.mrb[0].mxu0
    %2431 = vdwg.mxu0
    %v2432 = vpack.c.bf16 %v2429, %v2426
    %2434 = vrot.lane.b32.xlu0 %v2298, 96
    %v2435 = vpop.permute.xlu0 %2434
    %2437 = vrot.lane.b32.xlu0 %v2299, 96
    %v2438 = vpop.permute.xlu0 %2437
    %v2440 = vsel %vm505, %v2435, 0
    %v2443 = vsel %vm505, %v2438, 0
    %2445 = vmatprep.subr.bf16.mxu0 0
    %2446 = vmatpush1.bf16.xpose.msra.mxu0 %v2443
    %2447 = vmatprep.subr.bf16.mxu0 0
    %2448 = vmatpush1.bf16.xpose.msra.mxu0 0
    %2449 = vmatprep.subr.bf16.mxu0 0
    %2450 = vmatpush1.bf16.xpose.msra.mxu0 0
    %2451 = vmatprep.subr.bf16.mxu0 0
    %2452 = vmatpush1.bf16.xpose.msra.mxu0 0
    %2453 = vmatprep.subr.bf16.mxu0 0
    %2454 = vmatpush1.bf16.xpose.msra.mxu0 0
    %2455 = vmatprep.subr.bf16.mxu0 0
    %2456 = vmatpush1.bf16.xpose.msra.mxu0 0
    %2457 = vmatprep.subr.bf16.mxu0 0
    %2458 = vmatpush1.bf16.xpose.msra.mxu0 0
    %2459 = vmatprep.subr.bf16.mxu0 0
    %2460 = vmatpush1.bf16.xpose.msra.mxu0 0
    %2461 = vmatprep.subr.bf16.mxu0 0
    %2462 = vmatpush1.bf16.xpose.msra.mxu0 0
    %2463 = vmatprep.subr.bf16.mxu0 0
    %2464 = vmatpush1.bf16.xpose.msra.mxu0 0
    %2465 = vmatprep.subr.bf16.mxu0 0
    %2466 = vmatpush1.bf16.xpose.msra.mxu0 0
    %2467 = vmatprep.subr.bf16.mxu0 0
    %2468 = vmatpush1.bf16.xpose.msra.mxu0 0
    %2469 = vmatprep.subr.bf16.mxu0 0
    %2470 = vmatpush1.bf16.xpose.msra.mxu0 0
    %2471 = vmatprep.subr.bf16.mxu0 0
    %2472 = vmatpush1.bf16.xpose.msra.mxu0 0
    %2473 = vmatprep.subr.bf16.mxu0 0
    %2474 = vmatpush1.bf16.xpose.msra.mxu0 0
    %2475 = vmatprep.subr.bf16.mxu0 0
    %2476 = vmatpush1.bf16.xpose.msra.mxu0 0
    %2477 = vmatprep.mubr.bf16.mxu0 0
    %2478 = vmatmul.mubr.bf16.gmra.mrb[0].mxu0 %v2440
    %v2479 = vpop.f32.mrb[0].mxu0
    %v2480 = vadd.f32 %v179, %v2479
    %v2481 = vpop.f32.mrb[0].mxu0
    %v2482 = vpop.f32.mrb[0].mxu0
    %v2483 = vadd.f32 %v180, %v2482
    %v2484 = vpop.f32.mrb[0].mxu0
    %2485 = vdwg.mxu0
    %v2486 = vsel %vm553, %v2480, -inf
    %2487 = vmax.xlane.f32.xlu0 %v2486
    %v2488 = vpop.xlane.xlu0 %2487
    %v2489 = vsel %vm553, %v2483, -inf
    %2490 = vmax.xlane.f32.xlu0 %v2489
    %v2491 = vpop.xlane.xlu0 %2490
    %v2492 = vsub.f32 %v2480, %v2488
    %v2493 = vsub.f32 %v2483, %v2491
    %v2494 = vmul.f32 %v2492, 1.442695
    %v2495 = vpow.pop %v2494
    %v2496 = vmul.f32 %v2493, 1.442695
    %v2497 = vpow.pop %v2496
    %v2498 = vsel %vm553, %v2495, 0.0
    %2499 = vadd.xlane.f32.xlu0 %v2498
    %v2500 = vpop.xlane.xlu0 %2499
    %v2501 = vsel %vm553, %v2497, 0.0
    %2502 = vadd.xlane.f32.xlu0 %v2501
    %v2503 = vpop.xlane.xlu0 %2502
    %v2504 = vrcp.pop %v2500
    %v2505 = vrcp.pop %v2503
    %v2506 = vmul.f32 %v2495, %v2504
    %v2507 = vmul.f32 %v2497, %v2505
    %v2508 = vpack.c.bf16 %v2507, %v2506
    %2510 = vrot.lane.b32.xlu0 %v2300, 96
    %v2511 = vpop.permute.xlu0 %2510
    %v2514 = vsel %vm553, %v2508, 0
    %2516 = vmatprep.subr.bf16.mxu0 0
    %2517 = vmatpush1.bf16.msra.mxu0 %v2511
    %2518 = vmatprep.subr.bf16.mxu0 0
    %2519 = vmatpush1.bf16.msra.mxu0 0
    %2520 = vmatprep.subr.bf16.mxu0 0
    %2521 = vmatpush1.bf16.msra.mxu0 0
    %2522 = vmatprep.subr.bf16.mxu0 0
    %2523 = vmatpush1.bf16.msra.mxu0 0
    %2524 = vmatprep.subr.bf16.mxu0 0
    %2525 = vmatpush1.bf16.msra.mxu0 0
    %2526 = vmatprep.subr.bf16.mxu0 0
    %2527 = vmatpush1.bf16.msra.mxu0 0
    %2528 = vmatprep.subr.bf16.mxu0 0
    %2529 = vmatpush1.bf16.msra.mxu0 0
    %2530 = vmatprep.subr.bf16.mxu0 0
    %2531 = vmatpush1.bf16.msra.mxu0 0
    %2532 = vmatprep.subr.bf16.mxu0 0
    %2533 = vmatpush1.bf16.msra.mxu0 0
    %2534 = vmatprep.subr.bf16.mxu0 0
    %2535 = vmatpush1.bf16.msra.mxu0 0
    %2536 = vmatprep.subr.bf16.mxu0 0
    %2537 = vmatpush1.bf16.msra.mxu0 0
    %2538 = vmatprep.subr.bf16.mxu0 0
    %2539 = vmatpush1.bf16.msra.mxu0 0
    %2540 = vmatprep.subr.bf16.mxu0 0
    %2541 = vmatpush1.bf16.msra.mxu0 0
    %2542 = vmatprep.subr.bf16.mxu0 0
    %2543 = vmatpush1.bf16.msra.mxu0 0
    %2544 = vmatprep.subr.bf16.mxu0 0
    %2545 = vmatpush1.bf16.msra.mxu0 0
    %2546 = vmatprep.subr.bf16.mxu0 0
    %2547 = vmatpush1.bf16.msra.mxu0 0
    %2548 = vmatprep.mubr.bf16.mxu0 0
    %2549 = vmatmul.mubr.bf16.gmra.mrb[0].mxu0 %v2514
    %v2550 = vpop.f32.mrb[0].mxu0
    %v2551 = vadd.f32 0.0, %v2550
    %v2552 = vpop.f32.mrb[0].mxu0
    %v2553 = vpop.f32.mrb[0].mxu0
    %v2554 = vadd.f32 0.0, %v2553
    %v2555 = vpop.f32.mrb[0].mxu0
    %2556 = vdwg.mxu0
    %v2557 = vpack.c.bf16 %v2554, %v2551
    %v2562 = vunpack.c.l.b16 %v2306
    %v2563 = vunpack.c.l.b16 %v2307
    %v2564 = vunpack.c.l.b16 %v2308
    %v2565 = vunpack.c.l.b16 %v2309
    %v2566 = vpack.c.b16 %v2563, %v2562
    %v2567 = vpack.c.b16 %v2565, %v2564
    %v2571 = vsel %vm505, %v2557, 0
    %2573 = vmatprep.subr.bf16.mxu0 0
    %2574 = vmatpush1.bf16.msra.mxu0 %v2566
    %2575 = vmatprep.subr.bf16.mxu0 0
    %2576 = vmatpush1.bf16.msra.mxu0 %v2567
    %2577 = vmatprep.subr.bf16.mxu0 0
    %2578 = vmatpush1.bf16.msra.mxu0 0
    %2579 = vmatprep.subr.bf16.mxu0 0
    %2580 = vmatpush1.bf16.msra.mxu0 0
    %2581 = vmatprep.subr.bf16.mxu0 0
    %2582 = vmatpush1.bf16.msra.mxu0 0
    %2583 = vmatprep.subr.bf16.mxu0 0
    %2584 = vmatpush1.bf16.msra.mxu0 0
    %2585 = vmatprep.subr.bf16.mxu0 0
    %2586 = vmatpush1.bf16.msra.mxu0 0
    %2587 = vmatprep.subr.bf16.mxu0 0
    %2588 = vmatpush1.bf16.msra.mxu0 0
    %2589 = vmatprep.subr.bf16.mxu0 0
    %2590 = vmatpush1.bf16.msra.mxu0 0
    %2591 = vmatprep.subr.bf16.mxu0 0
    %2592 = vmatpush1.bf16.msra.mxu0 0
    %2593 = vmatprep.subr.bf16.mxu0 0
    %2594 = vmatpush1.bf16.msra.mxu0 0
    %2595 = vmatprep.subr.bf16.mxu0 0
    %2596 = vmatpush1.bf16.msra.mxu0 0
    %2597 = vmatprep.subr.bf16.mxu0 0
    %2598 = vmatpush1.bf16.msra.mxu0 0
    %2599 = vmatprep.subr.bf16.mxu0 0
    %2600 = vmatpush1.bf16.msra.mxu0 0
    %2601 = vmatprep.subr.bf16.mxu0 0
    %2602 = vmatpush1.bf16.msra.mxu0 0
    %2603 = vmatprep.subr.bf16.mxu0 0
    %2604 = vmatpush1.bf16.msra.mxu0 0
    %2605 = vmatprep.mubr.bf16.mxu0 0
    %2606 = vmatmul.mubr.bf16.gmra.mrb[0].mxu0 %v2571
    %v2607 = vpop.f32.mrb[0].mxu0
    %v2608 = vadd.f32 0.0, %v2607
    %v2609 = vpop.f32.mrb[0].mxu0
    %v2610 = vpop.f32.mrb[0].mxu0
    %v2611 = vadd.f32 0.0, %v2610
    %v2612 = vpop.f32.mrb[0].mxu0
    %2613 = vdwg.mxu0
    %v2618 = vunpack.c.l.b16 %v2302
    %v2619 = vunpack.c.l.b16 %v2303
    %v2620 = vunpack.c.l.b16 %v2304
    %v2621 = vunpack.c.l.b16 %v2305
    %v2622 = vpack.c.b16 %v2619, %v2618
    %v2623 = vpack.c.b16 %v2621, %v2620
    %v2627 = vsel %vm505, %v2432, 0
    %2629 = vmatprep.subr.bf16.mxu0 0
    %2630 = vmatpush1.bf16.msra.mxu0 %v2622
    %2631 = vmatprep.subr.bf16.mxu0 0
    %2632 = vmatpush1.bf16.msra.mxu0 %v2623
    %2633 = vmatprep.subr.bf16.mxu0 0
    %2634 = vmatpush1.bf16.msra.mxu0 0
    %2635 = vmatprep.subr.bf16.mxu0 0
    %2636 = vmatpush1.bf16.msra.mxu0 0
    %2637 = vmatprep.subr.bf16.mxu0 0
    %2638 = vmatpush1.bf16.msra.mxu0 0
    %2639 = vmatprep.subr.bf16.mxu0 0
    %2640 = vmatpush1.bf16.msra.mxu0 0
    %2641 = vmatprep.subr.bf16.mxu0 0
    %2642 = vmatpush1.bf16.msra.mxu0 0
    %2643 = vmatprep.subr.bf16.mxu0 0
    %2644 = vmatpush1.bf16.msra.mxu0 0
    %2645 = vmatprep.subr.bf16.mxu0 0
    %2646 = vmatpush1.bf16.msra.mxu0 0
    %2647 = vmatprep.subr.bf16.mxu0 0
    %2648 = vmatpush1.bf16.msra.mxu0 0
    %2649 = vmatprep.subr.bf16.mxu0 0
    %2650 = vmatpush1.bf16.msra.mxu0 0
    %2651 = vmatprep.subr.bf16.mxu0 0
    %2652 = vmatpush1.bf16.msra.mxu0 0
    %2653 = vmatprep.subr.bf16.mxu0 0
    %2654 = vmatpush1.bf16.msra.mxu0 0
    %2655 = vmatprep.subr.bf16.mxu0 0
    %2656 = vmatpush1.bf16.msra.mxu0 0
    %2657 = vmatprep.subr.bf16.mxu0 0
    %2658 = vmatpush1.bf16.msra.mxu0 0
    %2659 = vmatprep.subr.bf16.mxu0 0
    %2660 = vmatpush1.bf16.msra.mxu0 0
    %2661 = vmatprep.mubr.bf16.mxu0 0
    %2662 = vmatmul.mubr.bf16.gmra.mrb[0].mxu0 %v2627
    %v2663 = vpop.f32.mrb[0].mxu0
    %v2664 = vadd.f32 %v2608, %v2663
    %v2665 = vpop.f32.mrb[0].mxu0
    %v2666 = vpop.f32.mrb[0].mxu0
    %v2667 = vadd.f32 %v2611, %v2666
    %v2668 = vpop.f32.mrb[0].mxu0
    %2669 = vdwg.mxu0
    %2670 = vrot.lane.b32.xlu0 %v2298, 64
    %v2671 = vpop.permute.xlu0 %2670
    %2672 = vrot.lane.b32.xlu0 %v2299, 64
    %v2673 = vpop.permute.xlu0 %2672
    %v2675 = vsel %vm505, %v2671, 0
    %v2678 = vsel %vm505, %v2673, 0
    %2680 = vmatprep.subr.bf16.mxu0 0
    %2681 = vmatpush1.bf16.xpose.msra.mxu0 %v2678
    %2682 = vmatprep.subr.bf16.mxu0 0
    %2683 = vmatpush1.bf16.xpose.msra.mxu0 0
    %2684 = vmatprep.subr.bf16.mxu0 0
    %2685 = vmatpush1.bf16.xpose.msra.mxu0 0
    %2686 = vmatprep.subr.bf16.mxu0 0
    %2687 = vmatpush1.bf16.xpose.msra.mxu0 0
    %2688 = vmatprep.subr.bf16.mxu0 0
    %2689 = vmatpush1.bf16.xpose.msra.mxu0 0
    %2690 = vmatprep.subr.bf16.mxu0 0
    %2691 = vmatpush1.bf16.xpose.msra.mxu0 0
    %2692 = vmatprep.subr.bf16.mxu0 0
    %2693 = vmatpush1.bf16.xpose.msra.mxu0 0
    %2694 = vmatprep.subr.bf16.mxu0 0
    %2695 = vmatpush1.bf16.xpose.msra.mxu0 0
    %2696 = vmatprep.subr.bf16.mxu0 0
    %2697 = vmatpush1.bf16.xpose.msra.mxu0 0
    %2698 = vmatprep.subr.bf16.mxu0 0
    %2699 = vmatpush1.bf16.xpose.msra.mxu0 0
    %2700 = vmatprep.subr.bf16.mxu0 0
    %2701 = vmatpush1.bf16.xpose.msra.mxu0 0
    %2702 = vmatprep.subr.bf16.mxu0 0
    %2703 = vmatpush1.bf16.xpose.msra.mxu0 0
    %2704 = vmatprep.subr.bf16.mxu0 0
    %2705 = vmatpush1.bf16.xpose.msra.mxu0 0
    %2706 = vmatprep.subr.bf16.mxu0 0
    %2707 = vmatpush1.bf16.xpose.msra.mxu0 0
    %2708 = vmatprep.subr.bf16.mxu0 0
    %2709 = vmatpush1.bf16.xpose.msra.mxu0 0
    %2710 = vmatprep.subr.bf16.mxu0 0
    %2711 = vmatpush1.bf16.xpose.msra.mxu0 0
    %2712 = vmatprep.mubr.bf16.mxu0 0
    %2713 = vmatmul.mubr.bf16.gmra.mrb[0].mxu0 %v2675
    %v2714 = vpop.f32.mrb[0].mxu0
    %v2715 = vadd.f32 %v179, %v2714
    %v2716 = vpop.f32.mrb[0].mxu0
    %v2717 = vpop.f32.mrb[0].mxu0
    %v2718 = vadd.f32 %v180, %v2717
    %v2719 = vpop.f32.mrb[0].mxu0
    %2720 = vdwg.mxu0
    %v2721 = vsel %vm553, %v2715, -inf
    %2722 = vmax.xlane.f32.xlu0 %v2721
    %v2723 = vpop.xlane.xlu0 %2722
    %v2724 = vsel %vm553, %v2718, -inf
    %2725 = vmax.xlane.f32.xlu0 %v2724
    %v2726 = vpop.xlane.xlu0 %2725
    %v2727 = vsub.f32 %v2715, %v2723
    %v2728 = vsub.f32 %v2718, %v2726
    %v2729 = vmul.f32 %v2727, 1.442695
    %v2730 = vpow.pop %v2729
    %v2731 = vmul.f32 %v2728, 1.442695
    %v2732 = vpow.pop %v2731
    %v2733 = vsel %vm553, %v2730, 0.0
    %2734 = vadd.xlane.f32.xlu0 %v2733
    %v2735 = vpop.xlane.xlu0 %2734
    %v2736 = vsel %vm553, %v2732, 0.0
    %2737 = vadd.xlane.f32.xlu0 %v2736
    %v2738 = vpop.xlane.xlu0 %2737
    %v2739 = vrcp.pop %v2735
    %v2740 = vrcp.pop %v2738
    %v2741 = vmul.f32 %v2730, %v2739
    %v2742 = vmul.f32 %v2732, %v2740
    %v2743 = vpack.c.bf16 %v2742, %v2741
    %2744 = vrot.lane.b32.xlu0 %v2300, 64
    %v2745 = vpop.permute.xlu0 %2744
    %v2748 = vsel %vm553, %v2743, 0
    %2750 = vmatprep.subr.bf16.mxu0 0
    %2751 = vmatpush1.bf16.msra.mxu0 %v2745
    %2752 = vmatprep.subr.bf16.mxu0 0
    %2753 = vmatpush1.bf16.msra.mxu0 0
    %2754 = vmatprep.subr.bf16.mxu0 0
    %2755 = vmatpush1.bf16.msra.mxu0 0
    %2756 = vmatprep.subr.bf16.mxu0 0
    %2757 = vmatpush1.bf16.msra.mxu0 0
    %2758 = vmatprep.subr.bf16.mxu0 0
    %2759 = vmatpush1.bf16.msra.mxu0 0
    %2760 = vmatprep.subr.bf16.mxu0 0
    %2761 = vmatpush1.bf16.msra.mxu0 0
    %2762 = vmatprep.subr.bf16.mxu0 0
    %2763 = vmatpush1.bf16.msra.mxu0 0
    %2764 = vmatprep.subr.bf16.mxu0 0
    %2765 = vmatpush1.bf16.msra.mxu0 0
    %2766 = vmatprep.subr.bf16.mxu0 0
    %2767 = vmatpush1.bf16.msra.mxu0 0
    %2768 = vmatprep.subr.bf16.mxu0 0
    %2769 = vmatpush1.bf16.msra.mxu0 0
    %2770 = vmatprep.subr.bf16.mxu0 0
    %2771 = vmatpush1.bf16.msra.mxu0 0
    %2772 = vmatprep.subr.bf16.mxu0 0
    %2773 = vmatpush1.bf16.msra.mxu0 0
    %2774 = vmatprep.subr.bf16.mxu0 0
    %2775 = vmatpush1.bf16.msra.mxu0 0
    %2776 = vmatprep.subr.bf16.mxu0 0
    %2777 = vmatpush1.bf16.msra.mxu0 0
    %2778 = vmatprep.subr.bf16.mxu0 0
    %2779 = vmatpush1.bf16.msra.mxu0 0
    %2780 = vmatprep.subr.bf16.mxu0 0
    %2781 = vmatpush1.bf16.msra.mxu0 0
    %2782 = vmatprep.mubr.bf16.mxu0 0
    %2783 = vmatmul.mubr.bf16.gmra.mrb[0].mxu0 %v2748
    %v2784 = vpop.f32.mrb[0].mxu0
    %v2785 = vadd.f32 0.0, %v2784
    %v2786 = vpop.f32.mrb[0].mxu0
    %v2787 = vpop.f32.mrb[0].mxu0
    %v2788 = vadd.f32 0.0, %v2787
    %v2789 = vpop.f32.mrb[0].mxu0
    %2790 = vdwg.mxu0
    %v2791 = vpack.c.bf16 %v2788, %v2785
    %v2796 = vunpack.c.l.b16 %v2310
    %v2797 = vunpack.c.l.b16 %v2311
    %v2798 = vunpack.c.l.b16 %v2312
    %v2799 = vunpack.c.l.b16 %v2313
    %v2800 = vpack.c.b16 %v2797, %v2796
    %v2801 = vpack.c.b16 %v2799, %v2798
    %v2805 = vsel %vm505, %v2791, 0
    %2807 = vmatprep.subr.bf16.mxu0 0
    %2808 = vmatpush1.bf16.msra.mxu0 %v2800
    %2809 = vmatprep.subr.bf16.mxu0 0
    %2810 = vmatpush1.bf16.msra.mxu0 %v2801
    %2811 = vmatprep.subr.bf16.mxu0 0
    %2812 = vmatpush1.bf16.msra.mxu0 0
    %2813 = vmatprep.subr.bf16.mxu0 0
    %2814 = vmatpush1.bf16.msra.mxu0 0
    %2815 = vmatprep.subr.bf16.mxu0 0
    %2816 = vmatpush1.bf16.msra.mxu0 0
    %2817 = vmatprep.subr.bf16.mxu0 0
    %2818 = vmatpush1.bf16.msra.mxu0 0
    %2819 = vmatprep.subr.bf16.mxu0 0
    %2820 = vmatpush1.bf16.msra.mxu0 0
    %2821 = vmatprep.subr.bf16.mxu0 0
    %2822 = vmatpush1.bf16.msra.mxu0 0
    %2823 = vmatprep.subr.bf16.mxu0 0
    %2824 = vmatpush1.bf16.msra.mxu0 0
    %2825 = vmatprep.subr.bf16.mxu0 0
    %2826 = vmatpush1.bf16.msra.mxu0 0
    %2827 = vmatprep.subr.bf16.mxu0 0
    %2828 = vmatpush1.bf16.msra.mxu0 0
    %2829 = vmatprep.subr.bf16.mxu0 0
    %2830 = vmatpush1.bf16.msra.mxu0 0
    %2831 = vmatprep.subr.bf16.mxu0 0
    %2832 = vmatpush1.bf16.msra.mxu0 0
    %2833 = vmatprep.subr.bf16.mxu0 0
    %2834 = vmatpush1.bf16.msra.mxu0 0
    %2835 = vmatprep.subr.bf16.mxu0 0
    %2836 = vmatpush1.bf16.msra.mxu0 0
    %2837 = vmatprep.subr.bf16.mxu0 0
    %2838 = vmatpush1.bf16.msra.mxu0 0
    %2839 = vmatprep.mubr.bf16.mxu0 0
    %2840 = vmatmul.mubr.bf16.gmra.mrb[0].mxu0 %v2805
    %v2841 = vpop.f32.mrb[0].mxu0
    %v2842 = vadd.f32 0.0, %v2841
    %v2843 = vpop.f32.mrb[0].mxu0
    %v2844 = vpop.f32.mrb[0].mxu0
    %v2845 = vadd.f32 0.0, %v2844
    %v2846 = vpop.f32.mrb[0].mxu0
    %2847 = vdwg.mxu0
    %v2848 = vadd.f32 %v2664, %v2842
    %v2849 = vadd.f32 %v2667, %v2845
    %2850 = vrot.lane.b32.xlu0 %v2298, 32
    %v2851 = vpop.permute.xlu0 %2850
    %2852 = vrot.lane.b32.xlu0 %v2299, 32
    %v2853 = vpop.permute.xlu0 %2852
    %v2855 = vsel %vm505, %v2851, 0
    %v2858 = vsel %vm505, %v2853, 0
    %2860 = vmatprep.subr.bf16.mxu0 0
    %2861 = vmatpush1.bf16.xpose.msra.mxu0 %v2858
    %2862 = vmatprep.subr.bf16.mxu0 0
    %2863 = vmatpush1.bf16.xpose.msra.mxu0 0
    %2864 = vmatprep.subr.bf16.mxu0 0
    %2865 = vmatpush1.bf16.xpose.msra.mxu0 0
    %2866 = vmatprep.subr.bf16.mxu0 0
    %2867 = vmatpush1.bf16.xpose.msra.mxu0 0
    %2868 = vmatprep.subr.bf16.mxu0 0
    %2869 = vmatpush1.bf16.xpose.msra.mxu0 0
    %2870 = vmatprep.subr.bf16.mxu0 0
    %2871 = vmatpush1.bf16.xpose.msra.mxu0 0
    %2872 = vmatprep.subr.bf16.mxu0 0
    %2873 = vmatpush1.bf16.xpose.msra.mxu0 0
    %2874 = vmatprep.subr.bf16.mxu0 0
    %2875 = vmatpush1.bf16.xpose.msra.mxu0 0
    %2876 = vmatprep.subr.bf16.mxu0 0
    %2877 = vmatpush1.bf16.xpose.msra.mxu0 0
    %2878 = vmatprep.subr.bf16.mxu0 0
    %2879 = vmatpush1.bf16.xpose.msra.mxu0 0
    %2880 = vmatprep.subr.bf16.mxu0 0
    %2881 = vmatpush1.bf16.xpose.msra.mxu0 0
    %2882 = vmatprep.subr.bf16.mxu0 0
    %2883 = vmatpush1.bf16.xpose.msra.mxu0 0
    %2884 = vmatprep.subr.bf16.mxu0 0
    %2885 = vmatpush1.bf16.xpose.msra.mxu0 0
    %2886 = vmatprep.subr.bf16.mxu0 0
    %2887 = vmatpush1.bf16.xpose.msra.mxu0 0
    %2888 = vmatprep.subr.bf16.mxu0 0
    %2889 = vmatpush1.bf16.xpose.msra.mxu0 0
    %2890 = vmatprep.subr.bf16.mxu0 0
    %2891 = vmatpush1.bf16.xpose.msra.mxu0 0
    %2892 = vmatprep.mubr.bf16.mxu0 0
    %2893 = vmatmul.mubr.bf16.gmra.mrb[0].mxu0 %v2855
    %v2894 = vpop.f32.mrb[0].mxu0
    %v2895 = vadd.f32 %v179, %v2894
    %v2896 = vpop.f32.mrb[0].mxu0
    %v2897 = vpop.f32.mrb[0].mxu0
    %v2898 = vadd.f32 %v180, %v2897
    %v2899 = vpop.f32.mrb[0].mxu0
    %2900 = vdwg.mxu0
    %v2901 = vsel %vm553, %v2895, -inf
    %2902 = vmax.xlane.f32.xlu0 %v2901
    %v2903 = vpop.xlane.xlu0 %2902
    %v2904 = vsel %vm553, %v2898, -inf
    %2905 = vmax.xlane.f32.xlu0 %v2904
    %v2906 = vpop.xlane.xlu0 %2905
    %v2907 = vsub.f32 %v2895, %v2903
    %v2908 = vsub.f32 %v2898, %v2906
    %v2909 = vmul.f32 %v2907, 1.442695
    %v2910 = vpow.pop %v2909
    %v2911 = vmul.f32 %v2908, 1.442695
    %v2912 = vpow.pop %v2911
    %v2913 = vsel %vm553, %v2910, 0.0
    %2914 = vadd.xlane.f32.xlu0 %v2913
    %v2915 = vpop.xlane.xlu0 %2914
    %v2916 = vsel %vm553, %v2912, 0.0
    %2917 = vadd.xlane.f32.xlu0 %v2916
    %v2918 = vpop.xlane.xlu0 %2917
    %v2919 = vrcp.pop %v2915
    %v2920 = vrcp.pop %v2918
    %v2921 = vmul.f32 %v2910, %v2919
    %v2922 = vmul.f32 %v2912, %v2920
    %v2923 = vpack.c.bf16 %v2922, %v2921
    %2924 = vrot.lane.b32.xlu0 %v2300, 32
    %v2925 = vpop.permute.xlu0 %2924
    %v2928 = vsel %vm553, %v2923, 0
    %2930 = vmatprep.subr.bf16.mxu0 0
    %2931 = vmatpush1.bf16.msra.mxu0 %v2925
    %2932 = vmatprep.subr.bf16.mxu0 0
    %2933 = vmatpush1.bf16.msra.mxu0 0
    %2934 = vmatprep.subr.bf16.mxu0 0
    %2935 = vmatpush1.bf16.msra.mxu0 0
    %2936 = vmatprep.subr.bf16.mxu0 0
    %2937 = vmatpush1.bf16.msra.mxu0 0
    %2938 = vmatprep.subr.bf16.mxu0 0
    %2939 = vmatpush1.bf16.msra.mxu0 0
    %2940 = vmatprep.subr.bf16.mxu0 0
    %2941 = vmatpush1.bf16.msra.mxu0 0
    %2942 = vmatprep.subr.bf16.mxu0 0
    %2943 = vmatpush1.bf16.msra.mxu0 0
    %2944 = vmatprep.subr.bf16.mxu0 0
    %2945 = vmatpush1.bf16.msra.mxu0 0
    %2946 = vmatprep.subr.bf16.mxu0 0
    %2947 = vmatpush1.bf16.msra.mxu0 0
    %2948 = vmatprep.subr.bf16.mxu0 0
    %2949 = vmatpush1.bf16.msra.mxu0 0
    %2950 = vmatprep.subr.bf16.mxu0 0
    %2951 = vmatpush1.bf16.msra.mxu0 0
    %2952 = vmatprep.subr.bf16.mxu0 0
    %2953 = vmatpush1.bf16.msra.mxu0 0
    %2954 = vmatprep.subr.bf16.mxu0 0
    %2955 = vmatpush1.bf16.msra.mxu0 0
    %2956 = vmatprep.subr.bf16.mxu0 0
    %2957 = vmatpush1.bf16.msra.mxu0 0
    %2958 = vmatprep.subr.bf16.mxu0 0
    %2959 = vmatpush1.bf16.msra.mxu0 0
    %2960 = vmatprep.subr.bf16.mxu0 0
    %2961 = vmatpush1.bf16.msra.mxu0 0
    %2962 = vmatprep.mubr.bf16.mxu0 0
    %2963 = vmatmul.mubr.bf16.gmra.mrb[0].mxu0 %v2928
    %v2964 = vpop.f32.mrb[0].mxu0
    %v2965 = vadd.f32 0.0, %v2964
    %v2966 = vpop.f32.mrb[0].mxu0
    %v2967 = vpop.f32.mrb[0].mxu0
    %v2968 = vadd.f32 0.0, %v2967
    %v2969 = vpop.f32.mrb[0].mxu0
    %2970 = vdwg.mxu0
    %v2971 = vpack.c.bf16 %v2968, %v2965
    %v2976 = vunpack.c.l.b16 %v2314
    %v2977 = vunpack.c.l.b16 %v2315
    %v2978 = vunpack.c.l.b16 %v2316
    %v2979 = vunpack.c.l.b16 %v2317
    %v2980 = vpack.c.b16 %v2977, %v2976
    %v2981 = vpack.c.b16 %v2979, %v2978
    %v2985 = vsel %vm505, %v2971, 0
    %2987 = vmatprep.subr.bf16.mxu0 0
    %2988 = vmatpush1.bf16.msra.mxu0 %v2980
    %2989 = vmatprep.subr.bf16.mxu0 0
    %2990 = vmatpush1.bf16.msra.mxu0 %v2981
    %2991 = vmatprep.subr.bf16.mxu0 0
    %2992 = vmatpush1.bf16.msra.mxu0 0
    %2993 = vmatprep.subr.bf16.mxu0 0
    %2994 = vmatpush1.bf16.msra.mxu0 0
    %2995 = vmatprep.subr.bf16.mxu0 0
    %2996 = vmatpush1.bf16.msra.mxu0 0
    %2997 = vmatprep.subr.bf16.mxu0 0
    %2998 = vmatpush1.bf16.msra.mxu0 0
    %2999 = vmatprep.subr.bf16.mxu0 0
    %3000 = vmatpush1.bf16.msra.mxu0 0
    %3001 = vmatprep.subr.bf16.mxu0 0
    %3002 = vmatpush1.bf16.msra.mxu0 0
    %3003 = vmatprep.subr.bf16.mxu0 0
    %3004 = vmatpush1.bf16.msra.mxu0 0
    %3005 = vmatprep.subr.bf16.mxu0 0
    %3006 = vmatpush1.bf16.msra.mxu0 0
    %3007 = vmatprep.subr.bf16.mxu0 0
    %3008 = vmatpush1.bf16.msra.mxu0 0
    %3009 = vmatprep.subr.bf16.mxu0 0
    %3010 = vmatpush1.bf16.msra.mxu0 0
    %3011 = vmatprep.subr.bf16.mxu0 0
    %3012 = vmatpush1.bf16.msra.mxu0 0
    %3013 = vmatprep.subr.bf16.mxu0 0
    %3014 = vmatpush1.bf16.msra.mxu0 0
    %3015 = vmatprep.subr.bf16.mxu0 0
    %3016 = vmatpush1.bf16.msra.mxu0 0
    %3017 = vmatprep.subr.bf16.mxu0 0
    %3018 = vmatpush1.bf16.msra.mxu0 0
    %3019 = vmatprep.mubr.bf16.mxu0 0
    %3020 = vmatmul.mubr.bf16.gmra.mrb[0].mxu0 %v2985
    %v3021 = vpop.f32.mrb[0].mxu0
    %v3022 = vadd.f32 0.0, %v3021
    %v3023 = vpop.f32.mrb[0].mxu0
    %v3024 = vpop.f32.mrb[0].mxu0
    %v3025 = vadd.f32 0.0, %v3024
    %v3026 = vpop.f32.mrb[0].mxu0
    %3027 = vdwg.mxu0
    %v3028 = vadd.f32 %v2848, %v3022
    %v3029 = vadd.f32 %v2849, %v3025
    %s3030 = scalar_lea.vmem %s7, 1
    %v3031 = vld [vmem:[%s3030] sm:$0x1]
    %v3033 = vlaneseq
    %v3034 = vshrl.u32 %v3033, 7
    %v3035 = vsub.s32 0, %v3034
    %v3036 = vrot.slane %v3031, %v3035
    %v3038 = vadd.f32 %v3028, %v3036
    %v3039 = vadd.f32 %v3029, %v3036
    %v3040 = vadd.f32 %v3038, %v2032
    %v3041 = vadd.f32 %v3039, %v2033
    %s3042 = scalar_lea.vmem %s8, 1
    %v3043 = vld [vmem:[%s3042] sm:$0x1]
    %s3044 = scalar_lea.vmem %s9, 1
    %v3045 = vld [vmem:[%s3044] sm:$0x1]
    %3046 = vadd.xlane.f32.xlu0 %v3040
    %v3047 = vpop.xlane.xlu0 %3046
    %3048 = vadd.xlane.f32.xlu0 %v3041
    %v3049 = vpop.xlane.xlu0 %3048
    %v3050 = vmul.f32 %v3047, %v189
    %v3051 = vmul.f32 %v3049, %v189
    %v3052 = vsub.f32 %v3040, %v3050
    %v3053 = vsub.f32 %v3041, %v3051
    %v3054 = vmul.f32 %v3052, %v3052
    %v3055 = vmul.f32 %v3053, %v3053
    %3056 = vadd.xlane.f32.xlu0 %v3054
    %v3057 = vpop.xlane.xlu0 %3056
    %3058 = vadd.xlane.f32.xlu0 %v3055
    %v3059 = vpop.xlane.xlu0 %3058
    %v3060 = vmul.f32 %v3057, %v189
    %v3061 = vmul.f32 %v3059, %v189
    %v3062 = vadd.f32 %v3060, 1e-12
    %v3063 = vadd.f32 %v3061, 1e-12
    %v3064 = vrsqrt.pop %v3062
    %v3065 = vrsqrt.pop %v3063
    %v3066 = vmul.f32 %v3052, %v3064
    %v3067 = vmul.f32 %v3053, %v3065
    %v3069 = vlaneseq
    %v3070 = vshrl.u32 %v3069, 7
    %v3071 = vsub.s32 0, %v3070
    %v3072 = vrot.slane %v3043, %v3071
    %v3074 = vmul.f32 %v3066, %v3072
    %v3075 = vmul.f32 %v3067, %v3072
    %v3077 = vlaneseq
    %v3078 = vshrl.u32 %v3077, 7
    %v3079 = vsub.s32 0, %v3078
    %v3080 = vrot.slane %v3045, %v3079
    %v3082 = vadd.f32 %v3074, %v3080
    %v3083 = vadd.f32 %v3075, %v3080
    %v3084 = vpack.c.bf16 %v3083, %v3082
    %s3085 = scalar_lea.vmem [#allocation13], 256
    %v3086 = vld [vmem:[%s3085] sm:$0xff]
    %v3087 = vld [vmem:[%s3085 + $0x8] sm:$0xff]
    %v3088 = vld [vmem:[%s3085 + $0x10] sm:$0xff]
    %v3089 = vld [vmem:[%s3085 + $0x18] sm:$0xff]
    %v3090 = vld [vmem:[%s3085 + $0x20] sm:$0xff]
    %v3091 = vld [vmem:[%s3085 + $0x28] sm:$0xff]
    %v3092 = vld [vmem:[%s3085 + $0x30] sm:$0xff]
    %v3093 = vld [vmem:[%s3085 + $0x38] sm:$0xff]
    %v3094 = vld [vmem:[%s3085 + $0x40] sm:$0xff]
    %v3095 = vld [vmem:[%s3085 + $0x48] sm:$0xff]
    %v3096 = vld [vmem:[%s3085 + $0x50] sm:$0xff]
    %v3097 = vld [vmem:[%s3085 + $0x58] sm:$0xff]
    %v3098 = vld [vmem:[%s3085 + $0x60] sm:$0xff]
    %v3099 = vld [vmem:[%s3085 + $0x68] sm:$0xff]
    %v3100 = vld [vmem:[%s3085 + $0x70] sm:$0xff]
    %v3101 = vld [vmem:[%s3085 + $0x78] sm:$0xff]
    %v3102 = vld [vmem:[%s3085 + $0x80] sm:$0xff]
    %v3103 = vld [vmem:[%s3085 + $0x88] sm:$0xff]
    %v3104 = vld [vmem:[%s3085 + $0x90] sm:$0xff]
    %v3105 = vld [vmem:[%s3085 + $0x98] sm:$0xff]
    %v3106 = vld [vmem:[%s3085 + $0xa0] sm:$0xff]
    %v3107 = vld [vmem:[%s3085 + $0xa8] sm:$0xff]
    %v3108 = vld [vmem:[%s3085 + $0xb0] sm:$0xff]
    %v3109 = vld [vmem:[%s3085 + $0xb8] sm:$0xff]
    %v3110 = vld [vmem:[%s3085 + $0xc0] sm:$0xff]
    %v3111 = vld [vmem:[%s3085 + $0xc8] sm:$0xff]
    %v3112 = vld [vmem:[%s3085 + $0xd0] sm:$0xff]
    %v3113 = vld [vmem:[%s3085 + $0xd8] sm:$0xff]
    %v3114 = vld [vmem:[%s3085 + $0xe0] sm:$0xff]
    %v3115 = vld [vmem:[%s3085 + $0xe8] sm:$0xff]
    %v3116 = vld [vmem:[%s3085 + $0xf0] sm:$0xff]
    %v3117 = vld [vmem:[%s3085 + $0xf8] sm:$0xff]
    %s3118 = scalar_lea.vmem %s11, 4
    %v3119 = vld [vmem:[%s3118] sm:$0xf]
    %v3121 = vlaneseq
    %v3122 = vshrl.u32 %v3121, 7
    %v3123 = vsub.s32 0, %v3122
    %v3124 = vrot.slane %v3119, %v3123
    %v3125 = vlaneseq
    %v3126 = vshrl.u32 %v3125, 7
    %v3127 = vsub.s32 1, %v3126
    %v3128 = vrot.slane %v3119, %v3127
    %v3129 = vlaneseq
    %v3130 = vshrl.u32 %v3129, 7
    %v3131 = vsub.s32 2, %v3130
    %v3132 = vrot.slane %v3119, %v3131
    %v3133 = vlaneseq
    %v3134 = vshrl.u32 %v3133, 7
    %v3135 = vsub.s32 3, %v3134
    %v3136 = vrot.slane %v3119, %v3135
    %v3173 = vunpack.c.l.b16 %v3086
    %v3174 = vunpack.c.h.b16 %v3086
    %v3175 = vunpack.c.l.b16 %v3087
    %v3176 = vunpack.c.h.b16 %v3087
    %v3177 = vunpack.c.l.b16 %v3088
    %v3178 = vunpack.c.h.b16 %v3088
    %v3179 = vunpack.c.l.b16 %v3089
    %v3180 = vunpack.c.h.b16 %v3089
    %v3181 = vunpack.c.l.b16 %v3090
    %v3182 = vunpack.c.h.b16 %v3090
    %v3183 = vunpack.c.l.b16 %v3091
    %v3184 = vunpack.c.h.b16 %v3091
    %v3185 = vunpack.c.l.b16 %v3092
    %v3186 = vunpack.c.h.b16 %v3092
    %v3187 = vunpack.c.l.b16 %v3093
    %v3188 = vunpack.c.h.b16 %v3093
    %v3189 = vunpack.c.l.b16 %v3094
    %v3190 = vunpack.c.h.b16 %v3094
    %v3191 = vunpack.c.l.b16 %v3095
    %v3192 = vunpack.c.h.b16 %v3095
    %v3193 = vunpack.c.l.b16 %v3096
    %v3194 = vunpack.c.h.b16 %v3096
    %v3195 = vunpack.c.l.b16 %v3097
    %v3196 = vunpack.c.h.b16 %v3097
    %v3197 = vunpack.c.l.b16 %v3098
    %v3198 = vunpack.c.h.b16 %v3098
    %v3199 = vunpack.c.l.b16 %v3099
    %v3200 = vunpack.c.h.b16 %v3099
    %v3201 = vunpack.c.l.b16 %v3100
    %v3202 = vunpack.c.h.b16 %v3100
    %v3203 = vunpack.c.l.b16 %v3101
    %v3204 = vunpack.c.h.b16 %v3101
    %v3205 = vunpack.c.l.b16 %v3102
    %v3206 = vunpack.c.h.b16 %v3102
    %v3207 = vunpack.c.l.b16 %v3103
    %v3208 = vunpack.c.h.b16 %v3103
    %v3209 = vunpack.c.l.b16 %v3104
    %v3210 = vunpack.c.h.b16 %v3104
    %v3211 = vunpack.c.l.b16 %v3105
    %v3212 = vunpack.c.h.b16 %v3105
    %v3213 = vunpack.c.l.b16 %v3106
    %v3214 = vunpack.c.h.b16 %v3106
    %v3215 = vunpack.c.l.b16 %v3107
    %v3216 = vunpack.c.h.b16 %v3107
    %v3217 = vunpack.c.l.b16 %v3108
    %v3218 = vunpack.c.h.b16 %v3108
    %v3219 = vunpack.c.l.b16 %v3109
    %v3220 = vunpack.c.h.b16 %v3109
    %v3221 = vunpack.c.l.b16 %v3110
    %v3222 = vunpack.c.h.b16 %v3110
    %v3223 = vunpack.c.l.b16 %v3111
    %v3224 = vunpack.c.h.b16 %v3111
    %v3225 = vunpack.c.l.b16 %v3112
    %v3226 = vunpack.c.h.b16 %v3112
    %v3227 = vunpack.c.l.b16 %v3113
    %v3228 = vunpack.c.h.b16 %v3113
    %v3229 = vunpack.c.l.b16 %v3114
    %v3230 = vunpack.c.h.b16 %v3114
    %v3231 = vunpack.c.l.b16 %v3115
    %v3232 = vunpack.c.h.b16 %v3115
    %v3233 = vunpack.c.l.b16 %v3116
    %v3234 = vunpack.c.h.b16 %v3116
    %v3235 = vunpack.c.l.b16 %v3117
    %v3236 = vunpack.c.h.b16 %v3117
    %v3237 = vpack.c.b16 %v3177, %v3173
    %v3238 = vpack.c.b16 %v3178, %v3174
    %v3239 = vpack.c.b16 %v3179, %v3175
    %v3240 = vpack.c.b16 %v3180, %v3176
    %v3241 = vpack.c.b16 %v3185, %v3181
    %v3242 = vpack.c.b16 %v3186, %v3182
    %v3243 = vpack.c.b16 %v3187, %v3183
    %v3244 = vpack.c.b16 %v3188, %v3184
    %v3245 = vpack.c.b16 %v3193, %v3189
    %v3246 = vpack.c.b16 %v3194, %v3190
    %v3247 = vpack.c.b16 %v3195, %v3191
    %v3248 = vpack.c.b16 %v3196, %v3192
    %v3249 = vpack.c.b16 %v3201, %v3197
    %v3250 = vpack.c.b16 %v3202, %v3198
    %v3251 = vpack.c.b16 %v3203, %v3199
    %v3252 = vpack.c.b16 %v3204, %v3200
    %v3253 = vpack.c.b16 %v3209, %v3205
    %v3254 = vpack.c.b16 %v3210, %v3206
    %v3255 = vpack.c.b16 %v3211, %v3207
    %v3256 = vpack.c.b16 %v3212, %v3208
    %v3257 = vpack.c.b16 %v3217, %v3213
    %v3258 = vpack.c.b16 %v3218, %v3214
    %v3259 = vpack.c.b16 %v3219, %v3215
    %v3260 = vpack.c.b16 %v3220, %v3216
    %v3261 = vpack.c.b16 %v3225, %v3221
    %v3262 = vpack.c.b16 %v3226, %v3222
    %v3263 = vpack.c.b16 %v3227, %v3223
    %v3264 = vpack.c.b16 %v3228, %v3224
    %v3265 = vpack.c.b16 %v3233, %v3229
    %v3266 = vpack.c.b16 %v3234, %v3230
    %v3267 = vpack.c.b16 %v3235, %v3231
    %v3268 = vpack.c.b16 %v3236, %v3232
    %3301 = vmatprep.subr.bf16.mxu0 %v3238
    %3302 = vmatpush1.bf16.msra.mxu0 %v3237
    %3303 = vmatprep.subr.bf16.mxu0 %v3242
    %3304 = vmatpush1.bf16.msra.mxu0 %v3241
    %3305 = vmatprep.subr.bf16.mxu0 %v3246
    %3306 = vmatpush1.bf16.msra.mxu0 %v3245
    %3307 = vmatprep.subr.bf16.mxu0 %v3250
    %3308 = vmatpush1.bf16.msra.mxu0 %v3249
    %3309 = vmatprep.subr.bf16.mxu0 %v3254
    %3310 = vmatpush1.bf16.msra.mxu0 %v3253
    %3311 = vmatprep.subr.bf16.mxu0 %v3258
    %3312 = vmatpush1.bf16.msra.mxu0 %v3257
    %3313 = vmatprep.subr.bf16.mxu0 %v3262
    %3314 = vmatpush1.bf16.msra.mxu0 %v3261
    %3315 = vmatprep.subr.bf16.mxu0 %v3266
    %3316 = vmatpush1.bf16.msra.mxu0 %v3265
    %3317 = vmatprep.subr.bf16.mxu0 0
    %3318 = vmatpush1.bf16.msra.mxu0 0
    %3319 = vmatprep.subr.bf16.mxu0 0
    %3320 = vmatpush1.bf16.msra.mxu0 0
    %3321 = vmatprep.subr.bf16.mxu0 0
    %3322 = vmatpush1.bf16.msra.mxu0 0
    %3323 = vmatprep.subr.bf16.mxu0 0
    %3324 = vmatpush1.bf16.msra.mxu0 0
    %3325 = vmatprep.subr.bf16.mxu0 0
    %3326 = vmatpush1.bf16.msra.mxu0 0
    %3327 = vmatprep.subr.bf16.mxu0 0
    %3328 = vmatpush1.bf16.msra.mxu0 0
    %3329 = vmatprep.subr.bf16.mxu0 0
    %3330 = vmatpush1.bf16.msra.mxu0 0
    %3331 = vmatprep.subr.bf16.mxu0 0
    %3332 = vmatpush1.bf16.msra.mxu0 0
    %3333 = vmatprep.mubr.bf16.mxu0 0
    %3334 = vmatmul.mubr.bf16.gmra.mrb[0].mxu0 %v3084
    %v3335 = vpop.f32.mrb[0].mxu0
    %v3336 = vadd.f32 %v3124, %v3335
    %v3337 = vpop.f32.mrb[0].mxu0
    %v3338 = vadd.f32 %v3128, %v3337
    %v3339 = vpop.f32.mrb[0].mxu0
    %v3340 = vadd.f32 %v3124, %v3339
    %v3341 = vpop.f32.mrb[0].mxu0
    %v3342 = vadd.f32 %v3128, %v3341
    %3343 = vdwg.mxu0
    %3344 = vmatprep.subr.bf16.mxu0 %v3240
    %3345 = vmatpush1.bf16.msra.mxu0 %v3239
    %3346 = vmatprep.subr.bf16.mxu0 %v3244
    %3347 = vmatpush1.bf16.msra.mxu0 %v3243
    %3348 = vmatprep.subr.bf16.mxu0 %v3248
    %3349 = vmatpush1.bf16.msra.mxu0 %v3247
    %3350 = vmatprep.subr.bf16.mxu0 %v3252
    %3351 = vmatpush1.bf16.msra.mxu0 %v3251
    %3352 = vmatprep.subr.bf16.mxu0 %v3256
    %3353 = vmatpush1.bf16.msra.mxu0 %v3255
    %3354 = vmatprep.subr.bf16.mxu0 %v3260
    %3355 = vmatpush1.bf16.msra.mxu0 %v3259
    %3356 = vmatprep.subr.bf16.mxu0 %v3264
    %3357 = vmatpush1.bf16.msra.mxu0 %v3263
    %3358 = vmatprep.subr.bf16.mxu0 %v3268
    %3359 = vmatpush1.bf16.msra.mxu0 %v3267
    %3360 = vmatprep.subr.bf16.mxu0 0
    %3361 = vmatpush1.bf16.msra.mxu0 0
    %3362 = vmatprep.subr.bf16.mxu0 0
    %3363 = vmatpush1.bf16.msra.mxu0 0
    %3364 = vmatprep.subr.bf16.mxu0 0
    %3365 = vmatpush1.bf16.msra.mxu0 0
    %3366 = vmatprep.subr.bf16.mxu0 0
    %3367 = vmatpush1.bf16.msra.mxu0 0
    %3368 = vmatprep.subr.bf16.mxu0 0
    %3369 = vmatpush1.bf16.msra.mxu0 0
    %3370 = vmatprep.subr.bf16.mxu0 0
    %3371 = vmatpush1.bf16.msra.mxu0 0
    %3372 = vmatprep.subr.bf16.mxu0 0
    %3373 = vmatpush1.bf16.msra.mxu0 0
    %3374 = vmatprep.subr.bf16.mxu0 0
    %3375 = vmatpush1.bf16.msra.mxu0 0
    %3376 = vmatprep.mubr.bf16.mxu0 0
    %3377 = vmatmul.mubr.bf16.gmra.mrb[0].mxu0 %v3084
    %v3378 = vpop.f32.mrb[0].mxu0
    %v3379 = vadd.f32 %v3132, %v3378
    %v3380 = vpop.f32.mrb[0].mxu0
    %v3381 = vadd.f32 %v3136, %v3380
    %v3382 = vpop.f32.mrb[0].mxu0
    %v3383 = vadd.f32 %v3132, %v3382
    %v3384 = vpop.f32.mrb[0].mxu0
    %v3385 = vadd.f32 %v3136, %v3384
    %3386 = vdwg.mxu0
    %v3387 = vmul.f32 %v3336, 0.5
    %v3388 = vmul.f32 %v3338, 0.5
    %v3389 = vmul.f32 %v3379, 0.5
    %v3390 = vmul.f32 %v3381, 0.5
    %v3391 = vmul.f32 %v3340, 0.5
    %v3392 = vmul.f32 %v3342, 0.5
    %v3393 = vmul.f32 %v3383, 0.5
    %v3394 = vmul.f32 %v3385, 0.5
    %v3395 = vmul.f32 %v3336, 0.044715
    %v3396 = vmul.f32 %v3338, 0.044715
    %v3397 = vmul.f32 %v3379, 0.044715
    %v3398 = vmul.f32 %v3381, 0.044715
    %v3399 = vmul.f32 %v3340, 0.044715
    %v3400 = vmul.f32 %v3342, 0.044715
    %v3401 = vmul.f32 %v3383, 0.044715
    %v3402 = vmul.f32 %v3385, 0.044715
    %v3403 = vmul.f32 %v3395, %v3336
    %v3404 = vmul.f32 %v3396, %v3338
    %v3405 = vmul.f32 %v3397, %v3379
    %v3406 = vmul.f32 %v3398, %v3381
    %v3407 = vmul.f32 %v3399, %v3340
    %v3408 = vmul.f32 %v3400, %v3342
    %v3409 = vmul.f32 %v3401, %v3383
    %v3410 = vmul.f32 %v3402, %v3385
    %v3411 = vmul.f32 %v3403, %v3336
    %v3412 = vmul.f32 %v3404, %v3338
    %v3413 = vmul.f32 %v3405, %v3379
    %v3414 = vmul.f32 %v3406, %v3381
    %v3415 = vmul.f32 %v3407, %v3340
    %v3416 = vmul.f32 %v3408, %v3342
    %v3417 = vmul.f32 %v3409, %v3383
    %v3418 = vmul.f32 %v3410, %v3385
    %v3419 = vadd.f32 %v3336, %v3411
    %v3420 = vadd.f32 %v3338, %v3412
    %v3421 = vadd.f32 %v3379, %v3413
    %v3422 = vadd.f32 %v3381, %v3414
    %v3423 = vadd.f32 %v3340, %v3415
    %v3424 = vadd.f32 %v3342, %v3416
    %v3425 = vadd.f32 %v3383, %v3417
    %v3426 = vadd.f32 %v3385, %v3418
    %v3427 = vmul.f32 %v3419, 0.7978846
    %v3428 = vmul.f32 %v3420, 0.7978846
    %v3429 = vmul.f32 %v3421, 0.7978846
    %v3430 = vmul.f32 %v3422, 0.7978846
    %v3431 = vmul.f32 %v3423, 0.7978846
    %v3432 = vmul.f32 %v3424, 0.7978846
    %v3433 = vmul.f32 %v3425, 0.7978846
    %v3434 = vmul.f32 %v3426, 0.7978846
    %v3435 = vtanh.pop %v3427
    %v3436 = vtanh.pop %v3428
    %v3437 = vtanh.pop %v3429
    %v3438 = vtanh.pop %v3430
    %v3439 = vtanh.pop %v3431
    %v3440 = vtanh.pop %v3432
    %v3441 = vtanh.pop %v3433
    %v3442 = vtanh.pop %v3434
    %v3443 = vadd.f32 %v3435, 1.0
    %v3444 = vadd.f32 %v3436, 1.0
    %v3445 = vadd.f32 %v3437, 1.0
    %v3446 = vadd.f32 %v3438, 1.0
    %v3447 = vadd.f32 %v3439, 1.0
    %v3448 = vadd.f32 %v3440, 1.0
    %v3449 = vadd.f32 %v3441, 1.0
    %v3450 = vadd.f32 %v3442, 1.0
    %v3451 = vmul.f32 %v3387, %v3443
    %v3452 = vmul.f32 %v3388, %v3444
    %v3453 = vmul.f32 %v3389, %v3445
    %v3454 = vmul.f32 %v3390, %v3446
    %v3455 = vmul.f32 %v3391, %v3447
    %v3456 = vmul.f32 %v3392, %v3448
    %v3457 = vmul.f32 %v3393, %v3449
    %v3458 = vmul.f32 %v3394, %v3450
    %v3459 = vpack.c.bf16 %v3455, %v3451
    %v3460 = vpack.c.bf16 %v3456, %v3452
    %v3461 = vpack.c.bf16 %v3457, %v3453
    %v3462 = vpack.c.bf16 %v3458, %v3454
    %s3463 = scalar_lea.vmem [#allocation14], 256
    %v3464 = vld [vmem:[%s3463] sm:$0xf]
    %v3465 = vld [vmem:[%s3463 + $0x4] sm:$0xf]
    %v3466 = vld [vmem:[%s3463 + $0x8] sm:$0xf]
    %v3467 = vld [vmem:[%s3463 + $0xc] sm:$0xf]
    %v3468 = vld [vmem:[%s3463 + $0x10] sm:$0xf]
    %v3469 = vld [vmem:[%s3463 + $0x14] sm:$0xf]
    %v3470 = vld [vmem:[%s3463 + $0x18] sm:$0xf]
    %v3471 = vld [vmem:[%s3463 + $0x1c] sm:$0xf]
    %v3472 = vld [vmem:[%s3463 + $0x20] sm:$0xf]
    %v3473 = vld [vmem:[%s3463 + $0x24] sm:$0xf]
    %v3474 = vld [vmem:[%s3463 + $0x28] sm:$0xf]
    %v3475 = vld [vmem:[%s3463 + $0x2c] sm:$0xf]
    %v3476 = vld [vmem:[%s3463 + $0x30] sm:$0xf]
    %v3477 = vld [vmem:[%s3463 + $0x34] sm:$0xf]
    %v3478 = vld [vmem:[%s3463 + $0x38] sm:$0xf]
    %v3479 = vld [vmem:[%s3463 + $0x3c] sm:$0xf]
    %v3480 = vld [vmem:[%s3463 + $0x40] sm:$0xf]
    %v3481 = vld [vmem:[%s3463 + $0x44] sm:$0xf]
    %v3482 = vld [vmem:[%s3463 + $0x48] sm:$0xf]
    %v3483 = vld [vmem:[%s3463 + $0x4c] sm:$0xf]
    %v3484 = vld [vmem:[%s3463 + $0x50] sm:$0xf]
    %v3485 = vld [vmem:[%s3463 + $0x54] sm:$0xf]
    %v3486 = vld [vmem:[%s3463 + $0x58] sm:$0xf]
    %v3487 = vld [vmem:[%s3463 + $0x5c] sm:$0xf]
    %v3488 = vld [vmem:[%s3463 + $0x60] sm:$0xf]
    %v3489 = vld [vmem:[%s3463 + $0x64] sm:$0xf]
    %v3490 = vld [vmem:[%s3463 + $0x68] sm:$0xf]
    %v3491 = vld [vmem:[%s3463 + $0x6c] sm:$0xf]
    %v3492 = vld [vmem:[%s3463 + $0x70] sm:$0xf]
    %v3493 = vld [vmem:[%s3463 + $0x74] sm:$0xf]
    %v3494 = vld [vmem:[%s3463 + $0x78] sm:$0xf]
    %v3495 = vld [vmem:[%s3463 + $0x7c] sm:$0xf]
    %v3496 = vld [vmem:[%s3463 + $0x80] sm:$0xf]
    %v3497 = vld [vmem:[%s3463 + $0x84] sm:$0xf]
    %v3498 = vld [vmem:[%s3463 + $0x88] sm:$0xf]
    %v3499 = vld [vmem:[%s3463 + $0x8c] sm:$0xf]
    %v3500 = vld [vmem:[%s3463 + $0x90] sm:$0xf]
    %v3501 = vld [vmem:[%s3463 + $0x94] sm:$0xf]
    %v3502 = vld [vmem:[%s3463 + $0x98] sm:$0xf]
    %v3503 = vld [vmem:[%s3463 + $0x9c] sm:$0xf]
    %v3504 = vld [vmem:[%s3463 + $0xa0] sm:$0xf]
    %v3505 = vld [vmem:[%s3463 + $0xa4] sm:$0xf]
    %v3506 = vld [vmem:[%s3463 + $0xa8] sm:$0xf]
    %v3507 = vld [vmem:[%s3463 + $0xac] sm:$0xf]
    %v3508 = vld [vmem:[%s3463 + $0xb0] sm:$0xf]
    %v3509 = vld [vmem:[%s3463 + $0xb4] sm:$0xf]
    %v3510 = vld [vmem:[%s3463 + $0xb8] sm:$0xf]
    %v3511 = vld [vmem:[%s3463 + $0xbc] sm:$0xf]
    %v3512 = vld [vmem:[%s3463 + $0xc0] sm:$0xf]
    %v3513 = vld [vmem:[%s3463 + $0xc4] sm:$0xf]
    %v3514 = vld [vmem:[%s3463 + $0xc8] sm:$0xf]
    %v3515 = vld [vmem:[%s3463 + $0xcc] sm:$0xf]
    %v3516 = vld [vmem:[%s3463 + $0xd0] sm:$0xf]
    %v3517 = vld [vmem:[%s3463 + $0xd4] sm:$0xf]
    %v3518 = vld [vmem:[%s3463 + $0xd8] sm:$0xf]
    %v3519 = vld [vmem:[%s3463 + $0xdc] sm:$0xf]
    %v3520 = vld [vmem:[%s3463 + $0xe0] sm:$0xf]
    %v3521 = vld [vmem:[%s3463 + $0xe4] sm:$0xf]
    %v3522 = vld [vmem:[%s3463 + $0xe8] sm:$0xf]
    %v3523 = vld [vmem:[%s3463 + $0xec] sm:$0xf]
    %v3524 = vld [vmem:[%s3463 + $0xf0] sm:$0xf]
    %v3525 = vld [vmem:[%s3463 + $0xf4] sm:$0xf]
    %v3526 = vld [vmem:[%s3463 + $0xf8] sm:$0xf]
    %v3527 = vld [vmem:[%s3463 + $0xfc] sm:$0xf]
    %s3528 = scalar_lea.vmem %s13, 1
    %v3529 = vld [vmem:[%s3528] sm:$0x1]
    %v3531 = vlaneseq
    %v3532 = vshrl.u32 %v3531, 7
    %v3533 = vsub.s32 0, %v3532
    %v3534 = vrot.slane %v3529, %v3533
    %v3600 = vunpack.c.l.b16 %v3464
    %v3601 = vunpack.c.l.b16 %v3465
    %v3602 = vunpack.c.l.b16 %v3466
    %v3603 = vunpack.c.l.b16 %v3467
    %v3604 = vunpack.c.l.b16 %v3468
    %v3605 = vunpack.c.l.b16 %v3469
    %v3606 = vunpack.c.l.b16 %v3470
    %v3607 = vunpack.c.l.b16 %v3471
    %v3608 = vunpack.c.l.b16 %v3472
    %v3609 = vunpack.c.l.b16 %v3473
    %v3610 = vunpack.c.l.b16 %v3474
    %v3611 = vunpack.c.l.b16 %v3475
    %v3612 = vunpack.c.l.b16 %v3476
    %v3613 = vunpack.c.l.b16 %v3477
    %v3614 = vunpack.c.l.b16 %v3478
    %v3615 = vunpack.c.l.b16 %v3479
    %v3616 = vunpack.c.l.b16 %v3480
    %v3617 = vunpack.c.l.b16 %v3481
    %v3618 = vunpack.c.l.b16 %v3482
    %v3619 = vunpack.c.l.b16 %v3483
    %v3620 = vunpack.c.l.b16 %v3484
    %v3621 = vunpack.c.l.b16 %v3485
    %v3622 = vunpack.c.l.b16 %v3486
    %v3623 = vunpack.c.l.b16 %v3487
    %v3624 = vunpack.c.l.b16 %v3488
    %v3625 = vunpack.c.l.b16 %v3489
    %v3626 = vunpack.c.l.b16 %v3490
    %v3627 = vunpack.c.l.b16 %v3491
    %v3628 = vunpack.c.l.b16 %v3492
    %v3629 = vunpack.c.l.b16 %v3493
    %v3630 = vunpack.c.l.b16 %v3494
    %v3631 = vunpack.c.l.b16 %v3495
    %v3632 = vunpack.c.l.b16 %v3496
    %v3633 = vunpack.c.l.b16 %v3497
    %v3634 = vunpack.c.l.b16 %v3498
    %v3635 = vunpack.c.l.b16 %v3499
    %v3636 = vunpack.c.l.b16 %v3500
    %v3637 = vunpack.c.l.b16 %v3501
    %v3638 = vunpack.c.l.b16 %v3502
    %v3639 = vunpack.c.l.b16 %v3503
    %v3640 = vunpack.c.l.b16 %v3504
    %v3641 = vunpack.c.l.b16 %v3505
    %v3642 = vunpack.c.l.b16 %v3506
    %v3643 = vunpack.c.l.b16 %v3507
    %v3644 = vunpack.c.l.b16 %v3508
    %v3645 = vunpack.c.l.b16 %v3509
    %v3646 = vunpack.c.l.b16 %v3510
    %v3647 = vunpack.c.l.b16 %v3511
    %v3648 = vunpack.c.l.b16 %v3512
    %v3649 = vunpack.c.l.b16 %v3513
    %v3650 = vunpack.c.l.b16 %v3514
    %v3651 = vunpack.c.l.b16 %v3515
    %v3652 = vunpack.c.l.b16 %v3516
    %v3653 = vunpack.c.l.b16 %v3517
    %v3654 = vunpack.c.l.b16 %v3518
    %v3655 = vunpack.c.l.b16 %v3519
    %v3656 = vunpack.c.l.b16 %v3520
    %v3657 = vunpack.c.l.b16 %v3521
    %v3658 = vunpack.c.l.b16 %v3522
    %v3659 = vunpack.c.l.b16 %v3523
    %v3660 = vunpack.c.l.b16 %v3524
    %v3661 = vunpack.c.l.b16 %v3525
    %v3662 = vunpack.c.l.b16 %v3526
    %v3663 = vunpack.c.l.b16 %v3527
    %v3664 = vpack.c.b16 %v3601, %v3600
    %v3665 = vpack.c.b16 %v3603, %v3602
    %v3666 = vpack.c.b16 %v3605, %v3604
    %v3667 = vpack.c.b16 %v3607, %v3606
    %v3668 = vpack.c.b16 %v3609, %v3608
    %v3669 = vpack.c.b16 %v3611, %v3610
    %v3670 = vpack.c.b16 %v3613, %v3612
    %v3671 = vpack.c.b16 %v3615, %v3614
    %v3672 = vpack.c.b16 %v3617, %v3616
    %v3673 = vpack.c.b16 %v3619, %v3618
    %v3674 = vpack.c.b16 %v3621, %v3620
    %v3675 = vpack.c.b16 %v3623, %v3622
    %v3676 = vpack.c.b16 %v3625, %v3624
    %v3677 = vpack.c.b16 %v3627, %v3626
    %v3678 = vpack.c.b16 %v3629, %v3628
    %v3679 = vpack.c.b16 %v3631, %v3630
    %v3680 = vpack.c.b16 %v3633, %v3632
    %v3681 = vpack.c.b16 %v3635, %v3634
    %v3682 = vpack.c.b16 %v3637, %v3636
    %v3683 = vpack.c.b16 %v3639, %v3638
    %v3684 = vpack.c.b16 %v3641, %v3640
    %v3685 = vpack.c.b16 %v3643, %v3642
    %v3686 = vpack.c.b16 %v3645, %v3644
    %v3687 = vpack.c.b16 %v3647, %v3646
    %v3688 = vpack.c.b16 %v3649, %v3648
    %v3689 = vpack.c.b16 %v3651, %v3650
    %v3690 = vpack.c.b16 %v3653, %v3652
    %v3691 = vpack.c.b16 %v3655, %v3654
    %v3692 = vpack.c.b16 %v3657, %v3656
    %v3693 = vpack.c.b16 %v3659, %v3658
    %v3694 = vpack.c.b16 %v3661, %v3660
    %v3695 = vpack.c.b16 %v3663, %v3662
    %3728 = vmatprep.subr.bf16.mxu0 0
    %3729 = vmatpush1.bf16.msra.mxu0 %v3664
    %3730 = vmatprep.subr.bf16.mxu0 0
    %3731 = vmatpush1.bf16.msra.mxu0 %v3665
    %3732 = vmatprep.subr.bf16.mxu0 0
    %3733 = vmatpush1.bf16.msra.mxu0 %v3666
    %3734 = vmatprep.subr.bf16.mxu0 0
    %3735 = vmatpush1.bf16.msra.mxu0 %v3667
    %3736 = vmatprep.subr.bf16.mxu0 0
    %3737 = vmatpush1.bf16.msra.mxu0 %v3668
    %3738 = vmatprep.subr.bf16.mxu0 0
    %3739 = vmatpush1.bf16.msra.mxu0 %v3669
    %3740 = vmatprep.subr.bf16.mxu0 0
    %3741 = vmatpush1.bf16.msra.mxu0 %v3670
    %3742 = vmatprep.subr.bf16.mxu0 0
    %3743 = vmatpush1.bf16.msra.mxu0 %v3671
    %3744 = vmatprep.subr.bf16.mxu0 0
    %3745 = vmatpush1.bf16.msra.mxu0 %v3672
    %3746 = vmatprep.subr.bf16.mxu0 0
    %3747 = vmatpush1.bf16.msra.mxu0 %v3673
    %3748 = vmatprep.subr.bf16.mxu0 0
    %3749 = vmatpush1.bf16.msra.mxu0 %v3674
    %3750 = vmatprep.subr.bf16.mxu0 0
    %3751 = vmatpush1.bf16.msra.mxu0 %v3675
    %3752 = vmatprep.subr.bf16.mxu0 0
    %3753 = vmatpush1.bf16.msra.mxu0 %v3676
    %3754 = vmatprep.subr.bf16.mxu0 0
    %3755 = vmatpush1.bf16.msra.mxu0 %v3677
    %3756 = vmatprep.subr.bf16.mxu0 0
    %3757 = vmatpush1.bf16.msra.mxu0 %v3678
    %3758 = vmatprep.subr.bf16.mxu0 0
    %3759 = vmatpush1.bf16.msra.mxu0 %v3679
    %3760 = vmatprep.mubr.bf16.mxu0 %v3460
    %3761 = vmatmul.mubr.bf16.gmra.mrb[0].mxu0 %v3459
    %v3762 = vpop.f32.mrb[0].mxu0
    %v3763 = vadd.f32 %v3534, %v3762
    %v3764 = vpop.f32.mrb[0].mxu0
    %v3765 = vpop.f32.mrb[0].mxu0
    %v3766 = vadd.f32 %v3534, %v3765
    %v3767 = vpop.f32.mrb[0].mxu0
    %3768 = vdwg.mxu0
    %3769 = vmatprep.subr.bf16.mxu0 0
    %3770 = vmatpush1.bf16.msra.mxu0 %v3680
    %3771 = vmatprep.subr.bf16.mxu0 0
    %3772 = vmatpush1.bf16.msra.mxu0 %v3681
    %3773 = vmatprep.subr.bf16.mxu0 0
    %3774 = vmatpush1.bf16.msra.mxu0 %v3682
    %3775 = vmatprep.subr.bf16.mxu0 0
    %3776 = vmatpush1.bf16.msra.mxu0 %v3683
    %3777 = vmatprep.subr.bf16.mxu0 0
    %3778 = vmatpush1.bf16.msra.mxu0 %v3684
    %3779 = vmatprep.subr.bf16.mxu0 0
    %3780 = vmatpush1.bf16.msra.mxu0 %v3685
    %3781 = vmatprep.subr.bf16.mxu0 0
    %3782 = vmatpush1.bf16.msra.mxu0 %v3686
    %3783 = vmatprep.subr.bf16.mxu0 0
    %3784 = vmatpush1.bf16.msra.mxu0 %v3687
    %3785 = vmatprep.subr.bf16.mxu0 0
    %3786 = vmatpush1.bf16.msra.mxu0 %v3688
    %3787 = vmatprep.subr.bf16.mxu0 0
    %3788 = vmatpush1.bf16.msra.mxu0 %v3689
    %3789 = vmatprep.subr.bf16.mxu0 0
    %3790 = vmatpush1.bf16.msra.mxu0 %v3690
    %3791 = vmatprep.subr.bf16.mxu0 0
    %3792 = vmatpush1.bf16.msra.mxu0 %v3691
    %3793 = vmatprep.subr.bf16.mxu0 0
    %3794 = vmatpush1.bf16.msra.mxu0 %v3692
    %3795 = vmatprep.subr.bf16.mxu0 0
    %3796 = vmatpush1.bf16.msra.mxu0 %v3693
    %3797 = vmatprep.subr.bf16.mxu0 0
    %3798 = vmatpush1.bf16.msra.mxu0 %v3694
    %3799 = vmatprep.subr.bf16.mxu0 0
    %3800 = vmatpush1.bf16.msra.mxu0 %v3695
    %3801 = vmatprep.mubr.bf16.mxu0 %v3462
    %3802 = vmatmul.mubr.bf16.gmra.mrb[0].mxu0 %v3461
    %v3803 = vpop.f32.mrb[0].mxu0
    %v3804 = vadd.f32 %v3763, %v3803
    %v3805 = vpop.f32.mrb[0].mxu0
    %v3806 = vpop.f32.mrb[0].mxu0
    %v3807 = vadd.f32 %v3766, %v3806
    %v3808 = vpop.f32.mrb[0].mxu0
    %3809 = vdwg.mxu0
    %v3810 = vadd.f32 %v3804, %v3082
    %v3811 = vadd.f32 %v3807, %v3083
    %s3812 = scalar_lea.vmem %s14, 1
    %v3813 = vld [vmem:[%s3812] sm:$0x1]
    %s3814 = scalar_lea.vmem %s15, 1
    %v3815 = vld [vmem:[%s3814] sm:$0x1]
    %3816 = vadd.xlane.f32.xlu0 %v3810
    %v3817 = vpop.xlane.xlu0 %3816
    %3818 = vadd.xlane.f32.xlu0 %v3811
    %v3819 = vpop.xlane.xlu0 %3818
    %v3820 = vmul.f32 %v3817, %v189
    %v3821 = vmul.f32 %v3819, %v189
    %v3822 = vsub.f32 %v3810, %v3820
    %v3823 = vsub.f32 %v3811, %v3821
    %v3824 = vmul.f32 %v3822, %v3822
    %v3825 = vmul.f32 %v3823, %v3823
    %3826 = vadd.xlane.f32.xlu0 %v3824
    %v3827 = vpop.xlane.xlu0 %3826
    %3828 = vadd.xlane.f32.xlu0 %v3825
    %v3829 = vpop.xlane.xlu0 %3828
    %v3830 = vmul.f32 %v3827, %v189
    %v3831 = vmul.f32 %v3829, %v189
    %v3832 = vadd.f32 %v3830, 1e-12
    %v3833 = vadd.f32 %v3831, 1e-12
    %v3834 = vrsqrt.pop %v3832
    %v3835 = vrsqrt.pop %v3833
    %v3836 = vmul.f32 %v3822, %v3834
    %v3837 = vmul.f32 %v3823, %v3835
    %v3839 = vlaneseq
    %v3840 = vshrl.u32 %v3839, 7
    %v3841 = vsub.s32 0, %v3840
    %v3842 = vrot.slane %v3813, %v3841
    %v3844 = vmul.f32 %v3836, %v3842
    %v3845 = vmul.f32 %v3837, %v3842
    %v3847 = vlaneseq
    %v3848 = vshrl.u32 %v3847, 7
    %v3849 = vsub.s32 0, %v3848
    %v3850 = vrot.slane %v3815, %v3849
    %v3852 = vadd.f32 %v3844, %v3850
    %v3853 = vadd.f32 %v3845, %v3850
    %v3855 = vrot.slane %v3853, 7
    %vm3857 = vcmask 1040384
    %v3858 = vsel %vm3857, %v3852, %v3855
    %v3859 = vpack.c.bf16 %v3858, %v3858
    %v3860 = vld [vmem:[#allocation16] sm:$0xf]
    %v3861 = vld [vmem:[#allocation16 + $0x4] sm:$0xf]
    %v3862 = vld [vmem:[#allocation16 + $0x8] sm:$0xf]
    %v3863 = vld [vmem:[#allocation16 + $0xc] sm:$0xf]
    %v3864 = vld [vmem:[#allocation16 + $0x10] sm:$0xf]
    %v3865 = vld [vmem:[#allocation16 + $0x14] sm:$0xf]
    %v3866 = vld [vmem:[#allocation16 + $0x18] sm:$0xf]
    %v3867 = vld [vmem:[#allocation16 + $0x1c] sm:$0xf]
    %v3868 = vld [vmem:[#allocation16 + $0x20] sm:$0xf]
    %v3869 = vld [vmem:[#allocation16 + $0x24] sm:$0xf]
    %v3870 = vld [vmem:[#allocation16 + $0x28] sm:$0xf]
    %v3871 = vld [vmem:[#allocation16 + $0x2c] sm:$0xf]
    %v3872 = vld [vmem:[#allocation16 + $0x30] sm:$0xf]
    %v3873 = vld [vmem:[#allocation16 + $0x34] sm:$0xf]
    %v3874 = vld [vmem:[#allocation16 + $0x38] sm:$0xf]
    %v3875 = vld [vmem:[#allocation16 + $0x3c] sm:$0xf]
    %v3876 = vld [vmem:[%s17] sm:$0x1]
    %v3878 = vlaneseq
    %v3879 = vshrl.u32 %v3878, 7
    %v3880 = vsub.s32 0, %v3879
    %v3881 = vrot.slane %v3876, %v3880
    %v3899 = vunpack.c.l.b16 %v3860
    %v3900 = vunpack.c.l.b16 %v3861
    %v3901 = vunpack.c.l.b16 %v3862
    %v3902 = vunpack.c.l.b16 %v3863
    %v3903 = vunpack.c.l.b16 %v3864
    %v3904 = vunpack.c.l.b16 %v3865
    %v3905 = vunpack.c.l.b16 %v3866
    %v3906 = vunpack.c.l.b16 %v3867
    %v3907 = vunpack.c.l.b16 %v3868
    %v3908 = vunpack.c.l.b16 %v3869
    %v3909 = vunpack.c.l.b16 %v3870
    %v3910 = vunpack.c.l.b16 %v3871
    %v3911 = vunpack.c.l.b16 %v3872
    %v3912 = vunpack.c.l.b16 %v3873
    %v3913 = vunpack.c.l.b16 %v3874
    %v3914 = vunpack.c.l.b16 %v3875
    %v3915 = vpack.c.b16 %v3900, %v3899
    %v3916 = vpack.c.b16 %v3902, %v3901
    %v3917 = vpack.c.b16 %v3904, %v3903
    %v3918 = vpack.c.b16 %v3906, %v3905
    %v3919 = vpack.c.b16 %v3908, %v3907
    %v3920 = vpack.c.b16 %v3910, %v3909
    %v3921 = vpack.c.b16 %v3912, %v3911
    %v3922 = vpack.c.b16 %v3914, %v3913
    %3931 = vmatprep.subr.bf16.mxu0 0
    %3932 = vmatpush1.bf16.msra.mxu0 %v3915
    %3933 = vmatprep.subr.bf16.mxu0 0
    %3934 = vmatpush1.bf16.msra.mxu0 %v3916
    %3935 = vmatprep.subr.bf16.mxu0 0
    %3936 = vmatpush1.bf16.msra.mxu0 %v3917
    %3937 = vmatprep.subr.bf16.mxu0 0
    %3938 = vmatpush1.bf16.msra.mxu0 %v3918
    %3939 = vmatprep.subr.bf16.mxu0 0
    %3940 = vmatpush1.bf16.msra.mxu0 %v3919
    %3941 = vmatprep.subr.bf16.mxu0 0
    %3942 = vmatpush1.bf16.msra.mxu0 %v3920
    %3943 = vmatprep.subr.bf16.mxu0 0
    %3944 = vmatpush1.bf16.msra.mxu0 %v3921
    %3945 = vmatprep.subr.bf16.mxu0 0
    %3946 = vmatpush1.bf16.msra.mxu0 %v3922
    %3947 = vmatprep.subr.bf16.mxu0 0
    %3948 = vmatpush1.bf16.msra.mxu0 0
    %3949 = vmatprep.subr.bf16.mxu0 0
    %3950 = vmatpush1.bf16.msra.mxu0 0
    %3951 = vmatprep.subr.bf16.mxu0 0
    %3952 = vmatpush1.bf16.msra.mxu0 0
    %3953 = vmatprep.subr.bf16.mxu0 0
    %3954 = vmatpush1.bf16.msra.mxu0 0
    %3955 = vmatprep.subr.bf16.mxu0 0
    %3956 = vmatpush1.bf16.msra.mxu0 0
    %3957 = vmatprep.subr.bf16.mxu0 0
    %3958 = vmatpush1.bf16.msra.mxu0 0
    %3959 = vmatprep.subr.bf16.mxu0 0
    %3960 = vmatpush1.bf16.msra.mxu0 0
    %3961 = vmatprep.subr.bf16.mxu0 0
    %3962 = vmatpush1.bf16.msra.mxu0 0
    %3963 = vmatprep.mubr.bf16.mxu0 0
    %3964 = vmatmul.mubr.bf16.gmra.mrb[0].mxu0 %v3859
    %v3965 = vpop.f32.mrb[0].mxu0
    %v3966 = vadd.f32 %v3881, %v3965
    %v3967 = vpop.f32.mrb[0].mxu0
    %v3968 = vpop.f32.mrb[0].mxu0
    %v3969 = vpop.f32.mrb[0].mxu0
    %3970 = vdwg.mxu0
    %3971 = vst [vmem:[#allocation17] sm:$0x3] %v3966
    // Predicated region
    $region110: #{tpu_custom_call.1} parent=1 // pred_check
      _
    $region111: #{tpu_custom_call.1} parent=1 // pred_check_branch
      %3973 = sbr.rel (0) target = $region113
    $region112: #{tpu_custom_call.1} parent=1 // pred_region
      %s3975 = ssub.s32 32, 32
      %3976 = vsyncadd [#allocation4], %s3975
      %s3978 = sshll.u32 [#allocation17], 4
      %s3979 = int_to_ptr.vmem [resolvable:$true] %s3978
      %3981 = dma.vmem_to_hbm [thread:$0]  %s3979, 32, %s18, [#allocation4]
    $region113: #{tpu_custom_call.1} parent=1 // pred_fallthru
      _
    // Predicated region
    $region114: #{tpu_custom_call.1} parent=1 // pred_check
      _
    $region115: #{tpu_custom_call.1} parent=1 // pred_check_branch
      %3983 = sbr.rel (0) target = $region117
    $region116: #{tpu_custom_call.1} parent=1 // pred_region
      %3984 = dma.done [#allocation4], 32
    $region117: #{tpu_custom_call.1} parent=1 // pred_fallthru
      _
    %3985 = vsyncpa [#allocation3], 1
    %3986 = vsyncpa [#allocation6], 1
    %3987 = vsyncpa [#allocation9], 1
    %3988 = vsyncpa [#allocation12], 1
    %3989 = vsyncpa [#allocation15], 1
    %3990 = vsyncpa [#allocation4], 1

</llo_original>
